<compile_context>
chip_gen: v5e
topology: v5e:2x2
jax: 0.10.0
libtpu: 0.0.40
codegen_flags: <defaults>
</compile_context>

<pallas_src>
import jax
import jax.numpy as jnp
from jax import lax
from jax.experimental import pallas as pl
from jax.experimental.pallas import tpu as pltpu


def _lstm_classifier_kernel(
    x_ref,      # (T*TB, I)     bf16   time-major slab for this batch tile
    wih0_ref,   # (I, 4*Hp)     bf16   layer-0 input weights (gate blocks padded to Hp)
    whh0_ref,   # (Hp, 4*Hp)    bf16   layer-0 recurrent weights
    b0_ref,     # (1, 4*Hp)     f32    layer-0 bias (b_ih + b_hh), gate-padded
    w1_ref,     # (2*Hp, 4*Hp)  bf16   layer-1 combined [W_ih1 ; W_hh1]
    b1_ref,     # (1, 4*Hp)     f32    layer-1 bias
    fcw_ref,    # (Hp, 1)       f32    fc weight, pre-transposed + row-padded
    fcb_ref,    # (1, 1)        f32    fc bias
    out_ref,    # (TB, 1)       f32    sigmoid(logit)
    gx_ref,     # scratch VMEM (T*TB, 4*Hp) f32 : hoisted layer-0 input projection
):
    TB_total, G = gx_ref.shape
    Hp = G // 4
    TB = out_ref.shape[0]
    T = TB_total // TB

    def lstm_update(gates, c):
        # gate order [i | f | o | g]: one contiguous sigmoid slice + one tanh.
        sig = jax.nn.sigmoid(gates[:, : 3 * Hp])
        i_g = sig[:, 0:Hp]
        f_g = sig[:, Hp:2 * Hp]
        o_g = sig[:, 2 * Hp:3 * Hp]
        g_g = jnp.tanh(gates[:, 3 * Hp:4 * Hp])
        c_new = f_g * c + i_g * g_g
        h_new = o_g * jnp.tanh(c_new)
        return h_new, c_new

    def cell0(t, h0, c0):
        # layer-0 cell at time t; gx already holds x_t @ W_ih0^T + bias.
        row = pl.multiple_of(t * TB, TB)
        gates = gx_ref[pl.ds(row, TB), :] + jnp.dot(
            h0.astype(jnp.bfloat16), whh0_ref[...],
            preferred_element_type=jnp.float32)
        return lstm_update(gates, c0)

    def cell1(h0_in, h1, c1):
        # layer-1 cell: input projection folded into one concat matmul.
        xin = jnp.concatenate(
            [h0_in.astype(jnp.bfloat16), h1.astype(jnp.bfloat16)], axis=1)
        gates = b1_ref[...] + jnp.dot(
            xin, w1_ref[...], preferred_element_type=jnp.float32)
        return lstm_update(gates, c1)

    # ---- hoisted layer-0 input projection: one big matmul, bias folded in ----
    gx_ref[...] = (
        jnp.dot(x_ref[...], wih0_ref[...], preferred_element_type=jnp.float32)
        + b0_ref[...]
    )

    zeros = jnp.zeros((TB, Hp), jnp.float32)

    # ---- wavefronted recurrence ----
    # warm-up: layer 0 at t = 0
    h0, c0 = cell0(0, zeros, zeros)

    def step(t, carry):
        h0, c0, h1, c1 = carry
        # layer-1 at time t-1 and layer-0 at time t are independent:
        # both consume only h0_{t-1} (the carry) plus their own state.
        nh1, nc1 = cell1(h0, h1, c1)
        nh0, nc0 = cell0(t, h0, c0)
        return (nh0, nc0, nh1, nc1)

    unroll = True if T <= 16 else 4   # full unroll is fine at small T; cap for large T
    h0, c0, h1, c1 = lax.fori_loop(1, T, step, (h0, c0, zeros, zeros),
                                   unroll=unroll)

    # drain: layer-1 at the final timestep T-1
    h1_last, _ = cell1(h0, h1, c1)

    # ---- classifier head: Linear(H, 1) + Sigmoid on the last timestep ----
    # TODO(synk): for large batch emit a lane-dense (1, Bp) logit slab instead of (Bp, 1).
    logit = (
        jnp.dot(h1_last, fcw_ref[...], preferred_element_type=jnp.float32)
        + fcb_ref[...]
    )
    out_ref[...] = jax.nn.sigmoid(logit)


# PyTorch LSTM gate order is [i, f, g, o]; reorder to [i, f, o, g] so the three
# sigmoid gates form one contiguous 3*Hp slice.
_GATE_ORDER = (0, 1, 3, 2)


def _prep_gate_cols(w_t, H, Hp, order=_GATE_ORDER):
    """w_t: (K, 4H) gate blocks -> (K, 4*Hp), reordered and zero-padded per gate."""
    cols = [
        jnp.pad(w_t[:, g * H:(g + 1) * H], ((0, 0), (0, Hp - H))) for g in order
    ]
    return jnp.concatenate(cols, axis=1)


def _prep_gate_bias(b, H, Hp, order=_GATE_ORDER):
    """b: (4H,) -> (1, 4*Hp), reordered and zero-padded per gate."""
    b4 = jnp.stack([b[g * H:(g + 1) * H] for g in order])       # (4, H)
    return jnp.pad(b4, ((0, 0), (0, Hp - H))).reshape(1, 4 * Hp)


def rnn_classifier_forward(x, params):
    """x: (B, T, I) float32  ->  (B,) float32 (sigmoid output, squeezed)."""
    B, T, I = x.shape
    H = params["w_hh_l0"].shape[1]
    Hp = ((H + 127) // 128) * 128          # gate blocks padded to full 128-lane vregs
    TILE_B = 8                             # f32 sublane count; one batch tile per grid step
    Bp = ((B + TILE_B - 1) // TILE_B) * TILE_B
    n_tiles = Bp // TILE_B

    f32, bf16 = jnp.float32, jnp.bfloat16

    # input: (B, T, I) -> per-batch-tile time-major slabs (n_tiles, T*TILE_B, I), bf16
    # TODO(synk): at production scale feed time-major data directly from the pipeline
    # (or express this via a time-chunked grid) to avoid the extra HBM round trip.
    x_tm = jnp.transpose(x, (1, 0, 2)).astype(f32)               # (T, B, I)
    x_tm = jnp.pad(x_tm, ((0, 0), (0, Bp - B), (0, 0)))          # (T, Bp, I)
    x_tiles = (
        x_tm.reshape(T, n_tiles, TILE_B, I)
            .transpose(1, 0, 2, 3)
            .reshape(n_tiles, T * TILE_B, I)
            .astype(bf16)
    )

    # weights: pre-transpose, reorder + pad gate blocks to Hp lanes, pad recurrent K to Hp.
    wih0 = _prep_gate_cols(params["w_ih_l0"].T.astype(f32), H, Hp).astype(bf16)
    whh0 = jnp.pad(
        _prep_gate_cols(params["w_hh_l0"].T.astype(f32), H, Hp),
        ((0, Hp - H), (0, 0)),
    ).astype(bf16)
    b0 = _prep_gate_bias((params["b_ih_l0"] + params["b_hh_l0"]).astype(f32), H, Hp)

    wih1 = jnp.pad(
        _prep_gate_cols(params["w_ih_l1"].T.astype(f32), H, Hp),
        ((0, Hp - H), (0, 0)),
    )
    whh1 = jnp.pad(
        _prep_gate_cols(params["w_hh_l1"].T.astype(f32), H, Hp),
        ((0, Hp - H), (0, 0)),
    )
    w1 = jnp.concatenate([wih1, whh1], axis=0).astype(bf16)      # (2*Hp, 4*Hp)
    b1 = _prep_gate_bias((params["b_ih_l1"] + params["b_hh_l1"]).astype(f32), H, Hp)

    fcw = jnp.pad(params["fc_w"].T.astype(f32), ((0, Hp - H), (0, 0)))   # (Hp, 1)
    fcb = params["fc_b"].reshape(1, 1).astype(f32)

    full_vmem = pl.BlockSpec(memory_space=pltpu.MemorySpace.VMEM)

    # VMEM per grid step: gx scratch = T*TILE_B*4*Hp*4 B (~128 KiB here) + weights.
    # For large T, chunk time into the grid with h/c carried in scratch instead of
    # growing gx (v5e scoped default 16 MiB, v7x 32 MiB bite before v6e).
    out = pl.pallas_call(
        _lstm_classifier_kernel,
        out_shape=jax.ShapeDtypeStruct((Bp, 1), jnp.float32),
        grid=(n_tiles,),
        in_specs=[
            pl.BlockSpec((None, T * TILE_B, I), lambda b: (b, 0, 0)),  # x batch tile
            full_vmem,  # wih0
            full_vmem,  # whh0
            full_vmem,  # b0
            full_vmem,  # w1
            full_vmem,  # b1
            full_vmem,  # fcw
            full_vmem,  # fcb
        ],
        out_specs=pl.BlockSpec((TILE_B, 1), lambda b: (b, 0)),
        scratch_shapes=[
            pltpu.VMEM((T * TILE_B, 4 * Hp), jnp.float32),  # hoisted layer-0 gates
        ],
        compiler_params=pltpu.CompilerParams(
            dimension_semantics=("parallel",),
            vmem_limit_bytes=32 * 1024 * 1024,
        ),
    )(x_tiles, wih0, whh0, b0, w1, b1, fcw, fcb)

    return out[:B, 0]                                            # squeeze(1)


def init_params(key, input_size=24, hidden_size=64):
    """Deterministic init mirroring PyTorch's U(-1/sqrt(H), 1/sqrt(H)) scheme."""
    H = hidden_size
    bound = 1.0 / jnp.sqrt(jnp.float32(H))
    names_shapes = [
        ("w_ih_l0", (4 * H, input_size)),
        ("w_hh_l0", (4 * H, H)),
        ("b_ih_l0", (4 * H,)),
        ("b_hh_l0", (4 * H,)),
        ("w_ih_l1", (4 * H, H)),
        ("w_hh_l1", (4 * H, H)),
        ("b_ih_l1", (4 * H,)),
        ("b_hh_l1", (4 * H,)),
        ("fc_w", (1, H)),
        ("fc_b", (1,)),
    ]
    keys = jax.random.split(key, len(names_shapes))
    params = {}
    for k, (name, shape) in zip(keys, names_shapes):
        params[name] = jax.random.uniform(
            k, shape, jnp.float32, minval=-bound, maxval=bound
        )
    return params


if __name__ == "__main__":
    B, T, I, H = 2, 8, 24, 64
    key = jax.random.PRNGKey(0)
    kx, kp = jax.random.split(key)

    x = jax.random.normal(kx, (B, T, I), jnp.float32)
    params = init_params(kp, input_size=I, hidden_size=H)

    y = rnn_classifier_forward(x, params)
    y = jax.block_until_ready(y)
    assert y.shape == (B,)
    assert bool(jnp.all(jnp.isfinite(y))) and bool(jnp.all((y >= 0) & (y <= 1)))
    print("KERNEL_OK")
</pallas_src>

<mosaic_0001>
module attributes {stable_mosaic.version = 11 : i64} {
  func.func @_lstm_classifier_kernel(%arg0: i32, %arg1: memref<1x64x24xbf16, #tpu.memory_space<vmem>>, %arg2: memref<24x512xbf16, #tpu.memory_space<vmem>>, %arg3: memref<128x512xbf16, #tpu.memory_space<vmem>>, %arg4: memref<1x512xf32, #tpu.memory_space<vmem>>, %arg5: memref<256x512xbf16, #tpu.memory_space<vmem>>, %arg6: memref<1x512xf32, #tpu.memory_space<vmem>>, %arg7: memref<128x1xf32, #tpu.memory_space<vmem>>, %arg8: memref<1x1xf32, #tpu.memory_space<vmem>>, %arg9: memref<8x1xf32, #tpu.memory_space<vmem>>, %arg10: memref<64x512xf32, #tpu.memory_space<vmem>>) attributes {dimension_semantics = [#tpu.dimension_semantics<parallel>], iteration_bounds = array<i64: 1>, scalar_prefetch = 0 : i64, scratch_operands = 1 : i64, tpu.core_type = #tpu.core_type<tc>, window_params = [{transform_indices = @transform_0, window_bounds = array<i64: 1, 64, 24>}, {pipeline_mode = #tpu.pipeline_mode<synchronous>, transform_indices = @transform_1, window_bounds = array<i64: 24, 512>}, {pipeline_mode = #tpu.pipeline_mode<synchronous>, transform_indices = @transform_2, window_bounds = array<i64: 128, 512>}, {pipeline_mode = #tpu.pipeline_mode<synchronous>, transform_indices = @transform_3, window_bounds = array<i64: 1, 512>}, {pipeline_mode = #tpu.pipeline_mode<synchronous>, transform_indices = @transform_4, window_bounds = array<i64: 256, 512>}, {pipeline_mode = #tpu.pipeline_mode<synchronous>, transform_indices = @transform_5, window_bounds = array<i64: 1, 512>}, {pipeline_mode = #tpu.pipeline_mode<synchronous>, transform_indices = @transform_6, window_bounds = array<i64: 128, 1>}, {pipeline_mode = #tpu.pipeline_mode<synchronous>, transform_indices = @transform_7, window_bounds = array<i64: 1, 1>}, {transform_indices = @transform_8, window_bounds = array<i64: 8, 1>}]} {
    %c0 = arith.constant 0 : index
    %c0_0 = arith.constant 0 : index
    %c0_1 = arith.constant 0 : index
    %0 = vector.load %arg1[%c0, %c0_0, %c0_1] : memref<1x64x24xbf16, #tpu.memory_space<vmem>>, vector<1x64x24xbf16>
    %1 = vector.shape_cast %0 : vector<1x64x24xbf16> to vector<64x24xbf16>
    %c0_2 = arith.constant 0 : index
    %c0_3 = arith.constant 0 : index
    %2 = vector.load %arg2[%c0_2, %c0_3] : memref<24x512xbf16, #tpu.memory_space<vmem>>, vector<24x512xbf16>
    %cst = arith.constant dense<0.000000e+00> : vector<64x512xf32>
    %3 = tpu.matmul %1, %2, %cst {dimension_numbers = #tpu.dot_dimension_numbers<[1], [0], [0], [1], [0, 0, 1, 1], [], []>} : vector<64x24xbf16>, vector<24x512xbf16>, vector<64x512xf32> -> vector<64x512xf32>
    %c0_4 = arith.constant 0 : index
    %c0_5 = arith.constant 0 : index
    %4 = vector.load %arg4[%c0_4, %c0_5] : memref<1x512xf32, #tpu.memory_space<vmem>>, vector<1x512xf32>
    %5 = vector.broadcast %4 : vector<1x512xf32> to vector<64x512xf32>
    %6 = arith.addf %3, %5 : vector<64x512xf32>
    %c0_6 = arith.constant 0 : index
    %c0_7 = arith.constant 0 : index
    %7 = vector.load %arg10[%c0_6, %c0_7] : memref<64x512xf32, #tpu.memory_space<vmem>>, vector<64x512xf32>
    tpu.vector_store %arg10[%c0_6, %c0_7], %6 {strides = array<i32>} : memref<64x512xf32, #tpu.memory_space<vmem>>, vector<64x512xf32>,
    %cst_8 = arith.constant 0.000000e+00 : f32
    %8 = vector.broadcast %cst_8 : f32 to vector<8x128xf32>
    %c0_i32 = arith.constant 0 : i32
    %9 = tpu.assume_multiple %c0_i32, 8 : i32
    %10 = arith.index_cast %9 : i32 to index
    %c0_9 = arith.constant 0 : index
    %11 = vector.load %arg10[%10, %c0_9] : memref<64x512xf32, #tpu.memory_space<vmem>>, vector<8x512xf32>
    %12 = arith.truncf %8 : vector<8x128xf32> to vector<8x128xbf16>
    %c0_10 = arith.constant 0 : index
    %c0_11 = arith.constant 0 : index
    %13 = vector.load %arg3[%c0_10, %c0_11] : memref<128x512xbf16, #tpu.memory_space<vmem>>, vector<128x512xbf16>
    %cst_12 = arith.constant dense<0.000000e+00> : vector<8x512xf32>
    %14 = tpu.matmul %12, %13, %cst_12 {dimension_numbers = #tpu.dot_dimension_numbers<[1], [0], [0], [1], [0, 0, 1, 1], [], []>} : vector<8x128xbf16>, vector<128x512xbf16>, vector<8x512xf32> -> vector<8x512xf32>
    %15 = arith.addf %11, %14 : vector<8x512xf32>
    %16 = vector.extract_strided_slice %15 {offsets = [0, 0], sizes = [8, 384], strides = [1, 1]} : vector<8x512xf32> to vector<8x384xf32>
    %17 = arith.negf %16 : vector<8x384xf32>
    %18 = math.exp %17 : vector<8x384xf32>
    %cst_13 = arith.constant 1.000000e+00 : f32
    %19 = vector.broadcast %cst_13 : f32 to vector<8x384xf32>
    %20 = arith.addf %19, %18 : vector<8x384xf32>
    %21 = arith.divf %19, %20 : vector<8x384xf32>
    %22 = vector.extract_strided_slice %21 {offsets = [0, 0], sizes = [8, 128], strides = [1, 1]} : vector<8x384xf32> to vector<8x128xf32>
    %23 = vector.extract_strided_slice %21 {offsets = [0, 128], sizes = [8, 128], strides = [1, 1]} : vector<8x384xf32> to vector<8x128xf32>
    %24 = vector.extract_strided_slice %21 {offsets = [0, 256], sizes = [8, 128], strides = [1, 1]} : vector<8x384xf32> to vector<8x128xf32>
    %25 = vector.extract_strided_slice %15 {offsets = [0, 384], sizes = [8, 128], strides = [1, 1]} : vector<8x512xf32> to vector<8x128xf32>
    %26 = math.tanh %25 : vector<8x128xf32>
    %27 = arith.mulf %23, %8 : vector<8x128xf32>
    %28 = arith.mulf %22, %26 : vector<8x128xf32>
    %29 = arith.addf %27, %28 : vector<8x128xf32>
    %30 = math.tanh %29 : vector<8x128xf32>
    %31 = arith.mulf %24, %30 : vector<8x128xf32>
    %c1_i32 = arith.constant 1 : i32
    %32 = arith.truncf %31 : vector<8x128xf32> to vector<8x128xbf16>
    %33 = arith.truncf %8 : vector<8x128xf32> to vector<8x128xbf16>
    %34 = tpu.concatenate %32, %33 in 1 : vector<8x128xbf16>, vector<8x128xbf16> -> vector<8x256xbf16>
    %c0_14 = arith.constant 0 : index
    %c0_15 = arith.constant 0 : index
    %35 = vector.load %arg6[%c0_14, %c0_15] : memref<1x512xf32, #tpu.memory_space<vmem>>, vector<1x512xf32>
    %c0_16 = arith.constant 0 : index
    %c0_17 = arith.constant 0 : index
    %36 = vector.load %arg5[%c0_16, %c0_17] : memref<256x512xbf16, #tpu.memory_space<vmem>>, vector<256x512xbf16>
    %cst_18 = arith.constant dense<0.000000e+00> : vector<8x512xf32>
    %37 = tpu.matmul %34, %36, %cst_18 {dimension_numbers = #tpu.dot_dimension_numbers<[1], [0], [0], [1], [0, 0, 1, 1], [], []>} : vector<8x256xbf16>, vector<256x512xbf16>, vector<8x512xf32> -> vector<8x512xf32>
    %38 = vector.broadcast %35 : vector<1x512xf32> to vector<8x512xf32>
    %39 = arith.addf %38, %37 : vector<8x512xf32>
    %40 = vector.extract_strided_slice %39 {offsets = [0, 0], sizes = [8, 384], strides = [1, 1]} : vector<8x512xf32> to vector<8x384xf32>
    %41 = arith.negf %40 : vector<8x384xf32>
    %42 = math.exp %41 : vector<8x384xf32>
    %cst_19 = arith.constant 1.000000e+00 : f32
    %43 = vector.broadcast %cst_19 : f32 to vector<8x384xf32>
    %44 = arith.addf %43, %42 : vector<8x384xf32>
    %45 = arith.divf %43, %44 : vector<8x384xf32>
    %46 = vector.extract_strided_slice %45 {offsets = [0, 0], sizes = [8, 128], strides = [1, 1]} : vector<8x384xf32> to vector<8x128xf32>
    %47 = vector.extract_strided_slice %45 {offsets = [0, 128], sizes = [8, 128], strides = [1, 1]} : vector<8x384xf32> to vector<8x128xf32>
    %48 = vector.extract_strided_slice %45 {offsets = [0, 256], sizes = [8, 128], strides = [1, 1]} : vector<8x384xf32> to vector<8x128xf32>
    %49 = vector.extract_strided_slice %39 {offsets = [0, 384], sizes = [8, 128], strides = [1, 1]} : vector<8x512xf32> to vector<8x128xf32>
    %50 = math.tanh %49 : vector<8x128xf32>
    %51 = arith.mulf %47, %8 : vector<8x128xf32>
    %52 = arith.mulf %46, %50 : vector<8x128xf32>
    %53 = arith.addf %51, %52 : vector<8x128xf32>
    %54 = math.tanh %53 : vector<8x128xf32>
    %55 = arith.mulf %48, %54 : vector<8x128xf32>
    %c8_i32 = arith.constant 8 : i32
    %56 = arith.muli %c1_i32, %c8_i32 : i32
    %57 = tpu.assume_multiple %56, 8 : i32
    %58 = arith.index_cast %57 : i32 to index
    %c0_20 = arith.constant 0 : index
    %59 = vector.load %arg10[%58, %c0_20] : memref<64x512xf32, #tpu.memory_space<vmem>>, vector<8x512xf32>
    %60 = arith.truncf %31 : vector<8x128xf32> to vector<8x128xbf16>
    %c0_21 = arith.constant 0 : index
    %c0_22 = arith.constant 0 : index
    %61 = vector.load %arg3[%c0_21, %c0_22] : memref<128x512xbf16, #tpu.memory_space<vmem>>, vector<128x512xbf16>
    %cst_23 = arith.constant dense<0.000000e+00> : vector<8x512xf32>
    %62 = tpu.matmul %60, %61, %cst_23 {dimension_numbers = #tpu.dot_dimension_numbers<[1], [0], [0], [1], [0, 0, 1, 1], [], []>} : vector<8x128xbf16>, vector<128x512xbf16>, vector<8x512xf32> -> vector<8x512xf32>
    %63 = arith.addf %59, %62 : vector<8x512xf32>
    %64 = vector.extract_strided_slice %63 {offsets = [0, 0], sizes = [8, 384], strides = [1, 1]} : vector<8x512xf32> to vector<8x384xf32>
    %65 = arith.negf %64 : vector<8x384xf32>
    %66 = math.exp %65 : vector<8x384xf32>
    %cst_24 = arith.constant 1.000000e+00 : f32
    %67 = vector.broadcast %cst_24 : f32 to vector<8x384xf32>
    %68 = arith.addf %67, %66 : vector<8x384xf32>
    %69 = arith.divf %67, %68 : vector<8x384xf32>
    %70 = vector.extract_strided_slice %69 {offsets = [0, 0], sizes = [8, 128], strides = [1, 1]} : vector<8x384xf32> to vector<8x128xf32>
    %71 = vector.extract_strided_slice %69 {offsets = [0, 128], sizes = [8, 128], strides = [1, 1]} : vector<8x384xf32> to vector<8x128xf32>
    %72 = vector.extract_strided_slice %69 {offsets = [0, 256], sizes = [8, 128], strides = [1, 1]} : vector<8x384xf32> to vector<8x128xf32>
    %73 = vector.extract_strided_slice %63 {offsets = [0, 384], sizes = [8, 128], strides = [1, 1]} : vector<8x512xf32> to vector<8x128xf32>
    %74 = math.tanh %73 : vector<8x128xf32>
    %75 = arith.mulf %71, %29 : vector<8x128xf32>
    %76 = arith.mulf %70, %74 : vector<8x128xf32>
    %77 = arith.addf %75, %76 : vector<8x128xf32>
    %78 = math.tanh %77 : vector<8x128xf32>
    %79 = arith.mulf %72, %78 : vector<8x128xf32>
    %c2_i32 = arith.constant 2 : i32
    %80 = arith.truncf %79 : vector<8x128xf32> to vector<8x128xbf16>
    %81 = arith.truncf %55 : vector<8x128xf32> to vector<8x128xbf16>
    %82 = tpu.concatenate %80, %81 in 1 : vector<8x128xbf16>, vector<8x128xbf16> -> vector<8x256xbf16>
    %c0_25 = arith.constant 0 : index
    %c0_26 = arith.constant 0 : index
    %83 = vector.load %arg6[%c0_25, %c0_26] : memref<1x512xf32, #tpu.memory_space<vmem>>, vector<1x512xf32>
    %c0_27 = arith.constant 0 : index
    %c0_28 = arith.constant 0 : index
    %84 = vector.load %arg5[%c0_27, %c0_28] : memref<256x512xbf16, #tpu.memory_space<vmem>>, vector<256x512xbf16>
    %cst_29 = arith.constant dense<0.000000e+00> : vector<8x512xf32>
    %85 = tpu.matmul %82, %84, %cst_29 {dimension_numbers = #tpu.dot_dimension_numbers<[1], [0], [0], [1], [0, 0, 1, 1], [], []>} : vector<8x256xbf16>, vector<256x512xbf16>, vector<8x512xf32> -> vector<8x512xf32>
    %86 = vector.broadcast %83 : vector<1x512xf32> to vector<8x512xf32>
    %87 = arith.addf %86, %85 : vector<8x512xf32>
    %88 = vector.extract_strided_slice %87 {offsets = [0, 0], sizes = [8, 384], strides = [1, 1]} : vector<8x512xf32> to vector<8x384xf32>
    %89 = arith.negf %88 : vector<8x384xf32>
    %90 = math.exp %89 : vector<8x384xf32>
    %cst_30 = arith.constant 1.000000e+00 : f32
    %91 = vector.broadcast %cst_30 : f32 to vector<8x384xf32>
    %92 = arith.addf %91, %90 : vector<8x384xf32>
    %93 = arith.divf %91, %92 : vector<8x384xf32>
    %94 = vector.extract_strided_slice %93 {offsets = [0, 0], sizes = [8, 128], strides = [1, 1]} : vector<8x384xf32> to vector<8x128xf32>
    %95 = vector.extract_strided_slice %93 {offsets = [0, 128], sizes = [8, 128], strides = [1, 1]} : vector<8x384xf32> to vector<8x128xf32>
    %96 = vector.extract_strided_slice %93 {offsets = [0, 256], sizes = [8, 128], strides = [1, 1]} : vector<8x384xf32> to vector<8x128xf32>
    %97 = vector.extract_strided_slice %87 {offsets = [0, 384], sizes = [8, 128], strides = [1, 1]} : vector<8x512xf32> to vector<8x128xf32>
    %98 = math.tanh %97 : vector<8x128xf32>
    %99 = arith.mulf %95, %53 : vector<8x128xf32>
    %100 = arith.mulf %94, %98 : vector<8x128xf32>
    %101 = arith.addf %99, %100 : vector<8x128xf32>
    %102 = math.tanh %101 : vector<8x128xf32>
    %103 = arith.mulf %96, %102 : vector<8x128xf32>
    %c8_i32_31 = arith.constant 8 : i32
    %104 = arith.muli %c2_i32, %c8_i32_31 : i32
    %105 = tpu.assume_multiple %104, 8 : i32
    %106 = arith.index_cast %105 : i32 to index
    %c0_32 = arith.constant 0 : index
    %107 = vector.load %arg10[%106, %c0_32] : memref<64x512xf32, #tpu.memory_space<vmem>>, vector<8x512xf32>
    %108 = arith.truncf %79 : vector<8x128xf32> to vector<8x128xbf16>
    %c0_33 = arith.constant 0 : index
    %c0_34 = arith.constant 0 : index
    %109 = vector.load %arg3[%c0_33, %c0_34] : memref<128x512xbf16, #tpu.memory_space<vmem>>, vector<128x512xbf16>
    %cst_35 = arith.constant dense<0.000000e+00> : vector<8x512xf32>
    %110 = tpu.matmul %108, %109, %cst_35 {dimension_numbers = #tpu.dot_dimension_numbers<[1], [0], [0], [1], [0, 0, 1, 1], [], []>} : vector<8x128xbf16>, vector<128x512xbf16>, vector<8x512xf32> -> vector<8x512xf32>
    %111 = arith.addf %107, %110 : vector<8x512xf32>
    %112 = vector.extract_strided_slice %111 {offsets = [0, 0], sizes = [8, 384], strides = [1, 1]} : vector<8x512xf32> to vector<8x384xf32>
    %113 = arith.negf %112 : vector<8x384xf32>
    %114 = math.exp %113 : vector<8x384xf32>
    %cst_36 = arith.constant 1.000000e+00 : f32
    %115 = vector.broadcast %cst_36 : f32 to vector<8x384xf32>
    %116 = arith.addf %115, %114 : vector<8x384xf32>
    %117 = arith.divf %115, %116 : vector<8x384xf32>
    %118 = vector.extract_strided_slice %117 {offsets = [0, 0], sizes = [8, 128], strides = [1, 1]} : vector<8x384xf32> to vector<8x128xf32>
    %119 = vector.extract_strided_slice %117 {offsets = [0, 128], sizes = [8, 128], strides = [1, 1]} : vector<8x384xf32> to vector<8x128xf32>
    %120 = vector.extract_strided_slice %117 {offsets = [0, 256], sizes = [8, 128], strides = [1, 1]} : vector<8x384xf32> to vector<8x128xf32>
    %121 = vector.extract_strided_slice %111 {offsets = [0, 384], sizes = [8, 128], strides = [1, 1]} : vector<8x512xf32> to vector<8x128xf32>
    %122 = math.tanh %121 : vector<8x128xf32>
    %123 = arith.mulf %119, %77 : vector<8x128xf32>
    %124 = arith.mulf %118, %122 : vector<8x128xf32>
    %125 = arith.addf %123, %124 : vector<8x128xf32>
    %126 = math.tanh %125 : vector<8x128xf32>
    %127 = arith.mulf %120, %126 : vector<8x128xf32>
    %c3_i32 = arith.constant 3 : i32
    %128 = arith.truncf %127 : vector<8x128xf32> to vector<8x128xbf16>
    %129 = arith.truncf %103 : vector<8x128xf32> to vector<8x128xbf16>
    %130 = tpu.concatenate %128, %129 in 1 : vector<8x128xbf16>, vector<8x128xbf16> -> vector<8x256xbf16>
    %c0_37 = arith.constant 0 : index
    %c0_38 = arith.constant 0 : index
    %131 = vector.load %arg6[%c0_37, %c0_38] : memref<1x512xf32, #tpu.memory_space<vmem>>, vector<1x512xf32>
    %c0_39 = arith.constant 0 : index
    %c0_40 = arith.constant 0 : index
    %132 = vector.load %arg5[%c0_39, %c0_40] : memref<256x512xbf16, #tpu.memory_space<vmem>>, vector<256x512xbf16>
    %cst_41 = arith.constant dense<0.000000e+00> : vector<8x512xf32>
    %133 = tpu.matmul %130, %132, %cst_41 {dimension_numbers = #tpu.dot_dimension_numbers<[1], [0], [0], [1], [0, 0, 1, 1], [], []>} : vector<8x256xbf16>, vector<256x512xbf16>, vector<8x512xf32> -> vector<8x512xf32>
    %134 = vector.broadcast %131 : vector<1x512xf32> to vector<8x512xf32>
    %135 = arith.addf %134, %133 : vector<8x512xf32>
    %136 = vector.extract_strided_slice %135 {offsets = [0, 0], sizes = [8, 384], strides = [1, 1]} : vector<8x512xf32> to vector<8x384xf32>
    %137 = arith.negf %136 : vector<8x384xf32>
    %138 = math.exp %137 : vector<8x384xf32>
    %cst_42 = arith.constant 1.000000e+00 : f32
    %139 = vector.broadcast %cst_42 : f32 to vector<8x384xf32>
    %140 = arith.addf %139, %138 : vector<8x384xf32>
    %141 = arith.divf %139, %140 : vector<8x384xf32>
    %142 = vector.extract_strided_slice %141 {offsets = [0, 0], sizes = [8, 128], strides = [1, 1]} : vector<8x384xf32> to vector<8x128xf32>
    %143 = vector.extract_strided_slice %141 {offsets = [0, 128], sizes = [8, 128], strides = [1, 1]} : vector<8x384xf32> to vector<8x128xf32>
    %144 = vector.extract_strided_slice %141 {offsets = [0, 256], sizes = [8, 128], strides = [1, 1]} : vector<8x384xf32> to vector<8x128xf32>
    %145 = vector.extract_strided_slice %135 {offsets = [0, 384], sizes = [8, 128], strides = [1, 1]} : vector<8x512xf32> to vector<8x128xf32>
    %146 = math.tanh %145 : vector<8x128xf32>
    %147 = arith.mulf %143, %101 : vector<8x128xf32>
    %148 = arith.mulf %142, %146 : vector<8x128xf32>
    %149 = arith.addf %147, %148 : vector<8x128xf32>
    %150 = math.tanh %149 : vector<8x128xf32>
    %151 = arith.mulf %144, %150 : vector<8x128xf32>
    %c8_i32_43 = arith.constant 8 : i32
    %152 = arith.muli %c3_i32, %c8_i32_43 : i32
    %153 = tpu.assume_multiple %152, 8 : i32
    %154 = arith.index_cast %153 : i32 to index
    %c0_44 = arith.constant 0 : index
    %155 = vector.load %arg10[%154, %c0_44] : memref<64x512xf32, #tpu.memory_space<vmem>>, vector<8x512xf32>
    %156 = arith.truncf %127 : vector<8x128xf32> to vector<8x128xbf16>
    %c0_45 = arith.constant 0 : index
    %c0_46 = arith.constant 0 : index
    %157 = vector.load %arg3[%c0_45, %c0_46] : memref<128x512xbf16, #tpu.memory_space<vmem>>, vector<128x512xbf16>
    %cst_47 = arith.constant dense<0.000000e+00> : vector<8x512xf32>
    %158 = tpu.matmul %156, %157, %cst_47 {dimension_numbers = #tpu.dot_dimension_numbers<[1], [0], [0], [1], [0, 0, 1, 1], [], []>} : vector<8x128xbf16>, vector<128x512xbf16>, vector<8x512xf32> -> vector<8x512xf32>
    %159 = arith.addf %155, %158 : vector<8x512xf32>
    %160 = vector.extract_strided_slice %159 {offsets = [0, 0], sizes = [8, 384], strides = [1, 1]} : vector<8x512xf32> to vector<8x384xf32>
    %161 = arith.negf %160 : vector<8x384xf32>
    %162 = math.exp %161 : vector<8x384xf32>
    %cst_48 = arith.constant 1.000000e+00 : f32
    %163 = vector.broadcast %cst_48 : f32 to vector<8x384xf32>
    %164 = arith.addf %163, %162 : vector<8x384xf32>
    %165 = arith.divf %163, %164 : vector<8x384xf32>
    %166 = vector.extract_strided_slice %165 {offsets = [0, 0], sizes = [8, 128], strides = [1, 1]} : vector<8x384xf32> to vector<8x128xf32>
    %167 = vector.extract_strided_slice %165 {offsets = [0, 128], sizes = [8, 128], strides = [1, 1]} : vector<8x384xf32> to vector<8x128xf32>
    %168 = vector.extract_strided_slice %165 {offsets = [0, 256], sizes = [8, 128], strides = [1, 1]} : vector<8x384xf32> to vector<8x128xf32>
    %169 = vector.extract_strided_slice %159 {offsets = [0, 384], sizes = [8, 128], strides = [1, 1]} : vector<8x512xf32> to vector<8x128xf32>
    %170 = math.tanh %169 : vector<8x128xf32>
    %171 = arith.mulf %167, %125 : vector<8x128xf32>
    %172 = arith.mulf %166, %170 : vector<8x128xf32>
    %173 = arith.addf %171, %172 : vector<8x128xf32>
    %174 = math.tanh %173 : vector<8x128xf32>
    %175 = arith.mulf %168, %174 : vector<8x128xf32>
    %c4_i32 = arith.constant 4 : i32
    %176 = arith.truncf %175 : vector<8x128xf32> to vector<8x128xbf16>
    %177 = arith.truncf %151 : vector<8x128xf32> to vector<8x128xbf16>
    %178 = tpu.concatenate %176, %177 in 1 : vector<8x128xbf16>, vector<8x128xbf16> -> vector<8x256xbf16>
    %c0_49 = arith.constant 0 : index
    %c0_50 = arith.constant 0 : index
    %179 = vector.load %arg6[%c0_49, %c0_50] : memref<1x512xf32, #tpu.memory_space<vmem>>, vector<1x512xf32>
    %c0_51 = arith.constant 0 : index
    %c0_52 = arith.constant 0 : index
    %180 = vector.load %arg5[%c0_51, %c0_52] : memref<256x512xbf16, #tpu.memory_space<vmem>>, vector<256x512xbf16>
    %cst_53 = arith.constant dense<0.000000e+00> : vector<8x512xf32>
    %181 = tpu.matmul %178, %180, %cst_53 {dimension_numbers = #tpu.dot_dimension_numbers<[1], [0], [0], [1], [0, 0, 1, 1], [], []>} : vector<8x256xbf16>, vector<256x512xbf16>, vector<8x512xf32> -> vector<8x512xf32>
    %182 = vector.broadcast %179 : vector<1x512xf32> to vector<8x512xf32>
    %183 = arith.addf %182, %181 : vector<8x512xf32>
    %184 = vector.extract_strided_slice %183 {offsets = [0, 0], sizes = [8, 384], strides = [1, 1]} : vector<8x512xf32> to vector<8x384xf32>
    %185 = arith.negf %184 : vector<8x384xf32>
    %186 = math.exp %185 : vector<8x384xf32>
    %cst_54 = arith.constant 1.000000e+00 : f32
    %187 = vector.broadcast %cst_54 : f32 to vector<8x384xf32>
    %188 = arith.addf %187, %186 : vector<8x384xf32>
    %189 = arith.divf %187, %188 : vector<8x384xf32>
    %190 = vector.extract_strided_slice %189 {offsets = [0, 0], sizes = [8, 128], strides = [1, 1]} : vector<8x384xf32> to vector<8x128xf32>
    %191 = vector.extract_strided_slice %189 {offsets = [0, 128], sizes = [8, 128], strides = [1, 1]} : vector<8x384xf32> to vector<8x128xf32>
    %192 = vector.extract_strided_slice %189 {offsets = [0, 256], sizes = [8, 128], strides = [1, 1]} : vector<8x384xf32> to vector<8x128xf32>
    %193 = vector.extract_strided_slice %183 {offsets = [0, 384], sizes = [8, 128], strides = [1, 1]} : vector<8x512xf32> to vector<8x128xf32>
    %194 = math.tanh %193 : vector<8x128xf32>
    %195 = arith.mulf %191, %149 : vector<8x128xf32>
    %196 = arith.mulf %190, %194 : vector<8x128xf32>
    %197 = arith.addf %195, %196 : vector<8x128xf32>
    %198 = math.tanh %197 : vector<8x128xf32>
    %199 = arith.mulf %192, %198 : vector<8x128xf32>
    %c8_i32_55 = arith.constant 8 : i32
    %200 = arith.muli %c4_i32, %c8_i32_55 : i32
    %201 = tpu.assume_multiple %200, 8 : i32
    %202 = arith.index_cast %201 : i32 to index
    %c0_56 = arith.constant 0 : index
    %203 = vector.load %arg10[%202, %c0_56] : memref<64x512xf32, #tpu.memory_space<vmem>>, vector<8x512xf32>
    %204 = arith.truncf %175 : vector<8x128xf32> to vector<8x128xbf16>
    %c0_57 = arith.constant 0 : index
    %c0_58 = arith.constant 0 : index
    %205 = vector.load %arg3[%c0_57, %c0_58] : memref<128x512xbf16, #tpu.memory_space<vmem>>, vector<128x512xbf16>
    %cst_59 = arith.constant dense<0.000000e+00> : vector<8x512xf32>
    %206 = tpu.matmul %204, %205, %cst_59 {dimension_numbers = #tpu.dot_dimension_numbers<[1], [0], [0], [1], [0, 0, 1, 1], [], []>} : vector<8x128xbf16>, vector<128x512xbf16>, vector<8x512xf32> -> vector<8x512xf32>
    %207 = arith.addf %203, %206 : vector<8x512xf32>
    %208 = vector.extract_strided_slice %207 {offsets = [0, 0], sizes = [8, 384], strides = [1, 1]} : vector<8x512xf32> to vector<8x384xf32>
    %209 = arith.negf %208 : vector<8x384xf32>
    %210 = math.exp %209 : vector<8x384xf32>
    %cst_60 = arith.constant 1.000000e+00 : f32
    %211 = vector.broadcast %cst_60 : f32 to vector<8x384xf32>
    %212 = arith.addf %211, %210 : vector<8x384xf32>
    %213 = arith.divf %211, %212 : vector<8x384xf32>
    %214 = vector.extract_strided_slice %213 {offsets = [0, 0], sizes = [8, 128], strides = [1, 1]} : vector<8x384xf32> to vector<8x128xf32>
    %215 = vector.extract_strided_slice %213 {offsets = [0, 128], sizes = [8, 128], strides = [1, 1]} : vector<8x384xf32> to vector<8x128xf32>
    %216 = vector.extract_strided_slice %213 {offsets = [0, 256], sizes = [8, 128], strides = [1, 1]} : vector<8x384xf32> to vector<8x128xf32>
    %217 = vector.extract_strided_slice %207 {offsets = [0, 384], sizes = [8, 128], strides = [1, 1]} : vector<8x512xf32> to vector<8x128xf32>
    %218 = math.tanh %217 : vector<8x128xf32>
    %219 = arith.mulf %215, %173 : vector<8x128xf32>
    %220 = arith.mulf %214, %218 : vector<8x128xf32>
    %221 = arith.addf %219, %220 : vector<8x128xf32>
    %222 = math.tanh %221 : vector<8x128xf32>
    %223 = arith.mulf %216, %222 : vector<8x128xf32>
    %c5_i32 = arith.constant 5 : i32
    %224 = arith.truncf %223 : vector<8x128xf32> to vector<8x128xbf16>
    %225 = arith.truncf %199 : vector<8x128xf32> to vector<8x128xbf16>
    %226 = tpu.concatenate %224, %225 in 1 : vector<8x128xbf16>, vector<8x128xbf16> -> vector<8x256xbf16>
    %c0_61 = arith.constant 0 : index
    %c0_62 = arith.constant 0 : index
    %227 = vector.load %arg6[%c0_61, %c0_62] : memref<1x512xf32, #tpu.memory_space<vmem>>, vector<1x512xf32>
    %c0_63 = arith.constant 0 : index
    %c0_64 = arith.constant 0 : index
    %228 = vector.load %arg5[%c0_63, %c0_64] : memref<256x512xbf16, #tpu.memory_space<vmem>>, vector<256x512xbf16>
    %cst_65 = arith.constant dense<0.000000e+00> : vector<8x512xf32>
    %229 = tpu.matmul %226, %228, %cst_65 {dimension_numbers = #tpu.dot_dimension_numbers<[1], [0], [0], [1], [0, 0, 1, 1], [], []>} : vector<8x256xbf16>, vector<256x512xbf16>, vector<8x512xf32> -> vector<8x512xf32>
    %230 = vector.broadcast %227 : vector<1x512xf32> to vector<8x512xf32>
    %231 = arith.addf %230, %229 : vector<8x512xf32>
    %232 = vector.extract_strided_slice %231 {offsets = [0, 0], sizes = [8, 384], strides = [1, 1]} : vector<8x512xf32> to vector<8x384xf32>
    %233 = arith.negf %232 : vector<8x384xf32>
    %234 = math.exp %233 : vector<8x384xf32>
    %cst_66 = arith.constant 1.000000e+00 : f32
    %235 = vector.broadcast %cst_66 : f32 to vector<8x384xf32>
    %236 = arith.addf %235, %234 : vector<8x384xf32>
    %237 = arith.divf %235, %236 : vector<8x384xf32>
    %238 = vector.extract_strided_slice %237 {offsets = [0, 0], sizes = [8, 128], strides = [1, 1]} : vector<8x384xf32> to vector<8x128xf32>
    %239 = vector.extract_strided_slice %237 {offsets = [0, 128], sizes = [8, 128], strides = [1, 1]} : vector<8x384xf32> to vector<8x128xf32>
    %240 = vector.extract_strided_slice %237 {offsets = [0, 256], sizes = [8, 128], strides = [1, 1]} : vector<8x384xf32> to vector<8x128xf32>
    %241 = vector.extract_strided_slice %231 {offsets = [0, 384], sizes = [8, 128], strides = [1, 1]} : vector<8x512xf32> to vector<8x128xf32>
    %242 = math.tanh %241 : vector<8x128xf32>
    %243 = arith.mulf %239, %197 : vector<8x128xf32>
    %244 = arith.mulf %238, %242 : vector<8x128xf32>
    %245 = arith.addf %243, %244 : vector<8x128xf32>
    %246 = math.tanh %245 : vector<8x128xf32>
    %247 = arith.mulf %240, %246 : vector<8x128xf32>
    %c8_i32_67 = arith.constant 8 : i32
    %248 = arith.muli %c5_i32, %c8_i32_67 : i32
    %249 = tpu.assume_multiple %248, 8 : i32
    %250 = arith.index_cast %249 : i32 to index
    %c0_68 = arith.constant 0 : index
    %251 = vector.load %arg10[%250, %c0_68] : memref<64x512xf32, #tpu.memory_space<vmem>>, vector<8x512xf32>
    %252 = arith.truncf %223 : vector<8x128xf32> to vector<8x128xbf16>
    %c0_69 = arith.constant 0 : index
    %c0_70 = arith.constant 0 : index
    %253 = vector.load %arg3[%c0_69, %c0_70] : memref<128x512xbf16, #tpu.memory_space<vmem>>, vector<128x512xbf16>
    %cst_71 = arith.constant dense<0.000000e+00> : vector<8x512xf32>
    %254 = tpu.matmul %252, %253, %cst_71 {dimension_numbers = #tpu.dot_dimension_numbers<[1], [0], [0], [1], [0, 0, 1, 1], [], []>} : vector<8x128xbf16>, vector<128x512xbf16>, vector<8x512xf32> -> vector<8x512xf32>
    %255 = arith.addf %251, %254 : vector<8x512xf32>
    %256 = vector.extract_strided_slice %255 {offsets = [0, 0], sizes = [8, 384], strides = [1, 1]} : vector<8x512xf32> to vector<8x384xf32>
    %257 = arith.negf %256 : vector<8x384xf32>
    %258 = math.exp %257 : vector<8x384xf32>
    %cst_72 = arith.constant 1.000000e+00 : f32
    %259 = vector.broadcast %cst_72 : f32 to vector<8x384xf32>
    %260 = arith.addf %259, %258 : vector<8x384xf32>
    %261 = arith.divf %259, %260 : vector<8x384xf32>
    %262 = vector.extract_strided_slice %261 {offsets = [0, 0], sizes = [8, 128], strides = [1, 1]} : vector<8x384xf32> to vector<8x128xf32>
    %263 = vector.extract_strided_slice %261 {offsets = [0, 128], sizes = [8, 128], strides = [1, 1]} : vector<8x384xf32> to vector<8x128xf32>
    %264 = vector.extract_strided_slice %261 {offsets = [0, 256], sizes = [8, 128], strides = [1, 1]} : vector<8x384xf32> to vector<8x128xf32>
    %265 = vector.extract_strided_slice %255 {offsets = [0, 384], sizes = [8, 128], strides = [1, 1]} : vector<8x512xf32> to vector<8x128xf32>
    %266 = math.tanh %265 : vector<8x128xf32>
    %267 = arith.mulf %263, %221 : vector<8x128xf32>
    %268 = arith.mulf %262, %266 : vector<8x128xf32>
    %269 = arith.addf %267, %268 : vector<8x128xf32>
    %270 = math.tanh %269 : vector<8x128xf32>
    %271 = arith.mulf %264, %270 : vector<8x128xf32>
    %c6_i32 = arith.constant 6 : i32
    %272 = arith.truncf %271 : vector<8x128xf32> to vector<8x128xbf16>
    %273 = arith.truncf %247 : vector<8x128xf32> to vector<8x128xbf16>
    %274 = tpu.concatenate %272, %273 in 1 : vector<8x128xbf16>, vector<8x128xbf16> -> vector<8x256xbf16>
    %c0_73 = arith.constant 0 : index
    %c0_74 = arith.constant 0 : index
    %275 = vector.load %arg6[%c0_73, %c0_74] : memref<1x512xf32, #tpu.memory_space<vmem>>, vector<1x512xf32>
    %c0_75 = arith.constant 0 : index
    %c0_76 = arith.constant 0 : index
    %276 = vector.load %arg5[%c0_75, %c0_76] : memref<256x512xbf16, #tpu.memory_space<vmem>>, vector<256x512xbf16>
    %cst_77 = arith.constant dense<0.000000e+00> : vector<8x512xf32>
    %277 = tpu.matmul %274, %276, %cst_77 {dimension_numbers = #tpu.dot_dimension_numbers<[1], [0], [0], [1], [0, 0, 1, 1], [], []>} : vector<8x256xbf16>, vector<256x512xbf16>, vector<8x512xf32> -> vector<8x512xf32>
    %278 = vector.broadcast %275 : vector<1x512xf32> to vector<8x512xf32>
    %279 = arith.addf %278, %277 : vector<8x512xf32>
    %280 = vector.extract_strided_slice %279 {offsets = [0, 0], sizes = [8, 384], strides = [1, 1]} : vector<8x512xf32> to vector<8x384xf32>
    %281 = arith.negf %280 : vector<8x384xf32>
    %282 = math.exp %281 : vector<8x384xf32>
    %cst_78 = arith.constant 1.000000e+00 : f32
    %283 = vector.broadcast %cst_78 : f32 to vector<8x384xf32>
    %284 = arith.addf %283, %282 : vector<8x384xf32>
    %285 = arith.divf %283, %284 : vector<8x384xf32>
    %286 = vector.extract_strided_slice %285 {offsets = [0, 0], sizes = [8, 128], strides = [1, 1]} : vector<8x384xf32> to vector<8x128xf32>
    %287 = vector.extract_strided_slice %285 {offsets = [0, 128], sizes = [8, 128], strides = [1, 1]} : vector<8x384xf32> to vector<8x128xf32>
    %288 = vector.extract_strided_slice %285 {offsets = [0, 256], sizes = [8, 128], strides = [1, 1]} : vector<8x384xf32> to vector<8x128xf32>
    %289 = vector.extract_strided_slice %279 {offsets = [0, 384], sizes = [8, 128], strides = [1, 1]} : vector<8x512xf32> to vector<8x128xf32>
    %290 = math.tanh %289 : vector<8x128xf32>
    %291 = arith.mulf %287, %245 : vector<8x128xf32>
    %292 = arith.mulf %286, %290 : vector<8x128xf32>
    %293 = arith.addf %291, %292 : vector<8x128xf32>
    %294 = math.tanh %293 : vector<8x128xf32>
    %295 = arith.mulf %288, %294 : vector<8x128xf32>
    %c8_i32_79 = arith.constant 8 : i32
    %296 = arith.muli %c6_i32, %c8_i32_79 : i32
    %297 = tpu.assume_multiple %296, 8 : i32
    %298 = arith.index_cast %297 : i32 to index
    %c0_80 = arith.constant 0 : index
    %299 = vector.load %arg10[%298, %c0_80] : memref<64x512xf32, #tpu.memory_space<vmem>>, vector<8x512xf32>
    %300 = arith.truncf %271 : vector<8x128xf32> to vector<8x128xbf16>
    %c0_81 = arith.constant 0 : index
    %c0_82 = arith.constant 0 : index
    %301 = vector.load %arg3[%c0_81, %c0_82] : memref<128x512xbf16, #tpu.memory_space<vmem>>, vector<128x512xbf16>
    %cst_83 = arith.constant dense<0.000000e+00> : vector<8x512xf32>
    %302 = tpu.matmul %300, %301, %cst_83 {dimension_numbers = #tpu.dot_dimension_numbers<[1], [0], [0], [1], [0, 0, 1, 1], [], []>} : vector<8x128xbf16>, vector<128x512xbf16>, vector<8x512xf32> -> vector<8x512xf32>
    %303 = arith.addf %299, %302 : vector<8x512xf32>
    %304 = vector.extract_strided_slice %303 {offsets = [0, 0], sizes = [8, 384], strides = [1, 1]} : vector<8x512xf32> to vector<8x384xf32>
    %305 = arith.negf %304 : vector<8x384xf32>
    %306 = math.exp %305 : vector<8x384xf32>
    %cst_84 = arith.constant 1.000000e+00 : f32
    %307 = vector.broadcast %cst_84 : f32 to vector<8x384xf32>
    %308 = arith.addf %307, %306 : vector<8x384xf32>
    %309 = arith.divf %307, %308 : vector<8x384xf32>
    %310 = vector.extract_strided_slice %309 {offsets = [0, 0], sizes = [8, 128], strides = [1, 1]} : vector<8x384xf32> to vector<8x128xf32>
    %311 = vector.extract_strided_slice %309 {offsets = [0, 128], sizes = [8, 128], strides = [1, 1]} : vector<8x384xf32> to vector<8x128xf32>
    %312 = vector.extract_strided_slice %309 {offsets = [0, 256], sizes = [8, 128], strides = [1, 1]} : vector<8x384xf32> to vector<8x128xf32>
    %313 = vector.extract_strided_slice %303 {offsets = [0, 384], sizes = [8, 128], strides = [1, 1]} : vector<8x512xf32> to vector<8x128xf32>
    %314 = math.tanh %313 : vector<8x128xf32>
    %315 = arith.mulf %311, %269 : vector<8x128xf32>
    %316 = arith.mulf %310, %314 : vector<8x128xf32>
    %317 = arith.addf %315, %316 : vector<8x128xf32>
    %318 = math.tanh %317 : vector<8x128xf32>
    %319 = arith.mulf %312, %318 : vector<8x128xf32>
    %c7_i32 = arith.constant 7 : i32
    %320 = arith.truncf %319 : vector<8x128xf32> to vector<8x128xbf16>
    %321 = arith.truncf %295 : vector<8x128xf32> to vector<8x128xbf16>
    %322 = tpu.concatenate %320, %321 in 1 : vector<8x128xbf16>, vector<8x128xbf16> -> vector<8x256xbf16>
    %c0_85 = arith.constant 0 : index
    %c0_86 = arith.constant 0 : index
    %323 = vector.load %arg6[%c0_85, %c0_86] : memref<1x512xf32, #tpu.memory_space<vmem>>, vector<1x512xf32>
    %c0_87 = arith.constant 0 : index
    %c0_88 = arith.constant 0 : index
    %324 = vector.load %arg5[%c0_87, %c0_88] : memref<256x512xbf16, #tpu.memory_space<vmem>>, vector<256x512xbf16>
    %cst_89 = arith.constant dense<0.000000e+00> : vector<8x512xf32>
    %325 = tpu.matmul %322, %324, %cst_89 {dimension_numbers = #tpu.dot_dimension_numbers<[1], [0], [0], [1], [0, 0, 1, 1], [], []>} : vector<8x256xbf16>, vector<256x512xbf16>, vector<8x512xf32> -> vector<8x512xf32>
    %326 = vector.broadcast %323 : vector<1x512xf32> to vector<8x512xf32>
    %327 = arith.addf %326, %325 : vector<8x512xf32>
    %328 = vector.extract_strided_slice %327 {offsets = [0, 0], sizes = [8, 384], strides = [1, 1]} : vector<8x512xf32> to vector<8x384xf32>
    %329 = arith.negf %328 : vector<8x384xf32>
    %330 = math.exp %329 : vector<8x384xf32>
    %cst_90 = arith.constant 1.000000e+00 : f32
    %331 = vector.broadcast %cst_90 : f32 to vector<8x384xf32>
    %332 = arith.addf %331, %330 : vector<8x384xf32>
    %333 = arith.divf %331, %332 : vector<8x384xf32>
    %334 = vector.extract_strided_slice %333 {offsets = [0, 0], sizes = [8, 128], strides = [1, 1]} : vector<8x384xf32> to vector<8x128xf32>
    %335 = vector.extract_strided_slice %333 {offsets = [0, 128], sizes = [8, 128], strides = [1, 1]} : vector<8x384xf32> to vector<8x128xf32>
    %336 = vector.extract_strided_slice %333 {offsets = [0, 256], sizes = [8, 128], strides = [1, 1]} : vector<8x384xf32> to vector<8x128xf32>
    %337 = vector.extract_strided_slice %327 {offsets = [0, 384], sizes = [8, 128], strides = [1, 1]} : vector<8x512xf32> to vector<8x128xf32>
    %338 = math.tanh %337 : vector<8x128xf32>
    %339 = arith.mulf %335, %293 : vector<8x128xf32>
    %340 = arith.mulf %334, %338 : vector<8x128xf32>
    %341 = arith.addf %339, %340 : vector<8x128xf32>
    %342 = math.tanh %341 : vector<8x128xf32>
    %343 = arith.mulf %336, %342 : vector<8x128xf32>
    %c8_i32_91 = arith.constant 8 : i32
    %344 = arith.muli %c7_i32, %c8_i32_91 : i32
    %345 = tpu.assume_multiple %344, 8 : i32
    %346 = arith.index_cast %345 : i32 to index
    %c0_92 = arith.constant 0 : index
    %347 = vector.load %arg10[%346, %c0_92] : memref<64x512xf32, #tpu.memory_space<vmem>>, vector<8x512xf32>
    %348 = arith.truncf %319 : vector<8x128xf32> to vector<8x128xbf16>
    %c0_93 = arith.constant 0 : index
    %c0_94 = arith.constant 0 : index
    %349 = vector.load %arg3[%c0_93, %c0_94] : memref<128x512xbf16, #tpu.memory_space<vmem>>, vector<128x512xbf16>
    %cst_95 = arith.constant dense<0.000000e+00> : vector<8x512xf32>
    %350 = tpu.matmul %348, %349, %cst_95 {dimension_numbers = #tpu.dot_dimension_numbers<[1], [0], [0], [1], [0, 0, 1, 1], [], []>} : vector<8x128xbf16>, vector<128x512xbf16>, vector<8x512xf32> -> vector<8x512xf32>
    %351 = arith.addf %347, %350 : vector<8x512xf32>
    %352 = vector.extract_strided_slice %351 {offsets = [0, 0], sizes = [8, 384], strides = [1, 1]} : vector<8x512xf32> to vector<8x384xf32>
    %353 = arith.negf %352 : vector<8x384xf32>
    %354 = math.exp %353 : vector<8x384xf32>
    %cst_96 = arith.constant 1.000000e+00 : f32
    %355 = vector.broadcast %cst_96 : f32 to vector<8x384xf32>
    %356 = arith.addf %355, %354 : vector<8x384xf32>
    %357 = arith.divf %355, %356 : vector<8x384xf32>
    %358 = vector.extract_strided_slice %357 {offsets = [0, 0], sizes = [8, 128], strides = [1, 1]} : vector<8x384xf32> to vector<8x128xf32>
    %359 = vector.extract_strided_slice %357 {offsets = [0, 128], sizes = [8, 128], strides = [1, 1]} : vector<8x384xf32> to vector<8x128xf32>
    %360 = vector.extract_strided_slice %357 {offsets = [0, 256], sizes = [8, 128], strides = [1, 1]} : vector<8x384xf32> to vector<8x128xf32>
    %361 = vector.extract_strided_slice %351 {offsets = [0, 384], sizes = [8, 128], strides = [1, 1]} : vector<8x512xf32> to vector<8x128xf32>
    %362 = math.tanh %361 : vector<8x128xf32>
    %363 = arith.mulf %359, %317 : vector<8x128xf32>
    %364 = arith.mulf %358, %362 : vector<8x128xf32>
    %365 = arith.addf %363, %364 : vector<8x128xf32>
    %366 = math.tanh %365 : vector<8x128xf32>
    %367 = arith.mulf %360, %366 : vector<8x128xf32>
    %c7_i32_97 = arith.constant 7 : i32
    %368 = arith.truncf %367 : vector<8x128xf32> to vector<8x128xbf16>
    %369 = arith.truncf %343 : vector<8x128xf32> to vector<8x128xbf16>
    %370 = tpu.concatenate %368, %369 in 1 : vector<8x128xbf16>, vector<8x128xbf16> -> vector<8x256xbf16>
    %c0_98 = arith.constant 0 : index
    %c0_99 = arith.constant 0 : index
    %371 = vector.load %arg6[%c0_98, %c0_99] : memref<1x512xf32, #tpu.memory_space<vmem>>, vector<1x512xf32>
    %c0_100 = arith.constant 0 : index
    %c0_101 = arith.constant 0 : index
    %372 = vector.load %arg5[%c0_100, %c0_101] : memref<256x512xbf16, #tpu.memory_space<vmem>>, vector<256x512xbf16>
    %cst_102 = arith.constant dense<0.000000e+00> : vector<8x512xf32>
    %373 = tpu.matmul %370, %372, %cst_102 {dimension_numbers = #tpu.dot_dimension_numbers<[1], [0], [0], [1], [0, 0, 1, 1], [], []>} : vector<8x256xbf16>, vector<256x512xbf16>, vector<8x512xf32> -> vector<8x512xf32>
    %374 = vector.broadcast %371 : vector<1x512xf32> to vector<8x512xf32>
    %375 = arith.addf %374, %373 : vector<8x512xf32>
    %376 = vector.extract_strided_slice %375 {offsets = [0, 0], sizes = [8, 384], strides = [1, 1]} : vector<8x512xf32> to vector<8x384xf32>
    %377 = arith.negf %376 : vector<8x384xf32>
    %378 = math.exp %377 : vector<8x384xf32>
    %cst_103 = arith.constant 1.000000e+00 : f32
    %379 = vector.broadcast %cst_103 : f32 to vector<8x384xf32>
    %380 = arith.addf %379, %378 : vector<8x384xf32>
    %381 = arith.divf %379, %380 : vector<8x384xf32>
    %382 = vector.extract_strided_slice %381 {offsets = [0, 0], sizes = [8, 128], strides = [1, 1]} : vector<8x384xf32> to vector<8x128xf32>
    %383 = vector.extract_strided_slice %381 {offsets = [0, 128], sizes = [8, 128], strides = [1, 1]} : vector<8x384xf32> to vector<8x128xf32>
    %384 = vector.extract_strided_slice %381 {offsets = [0, 256], sizes = [8, 128], strides = [1, 1]} : vector<8x384xf32> to vector<8x128xf32>
    %385 = vector.extract_strided_slice %375 {offsets = [0, 384], sizes = [8, 128], strides = [1, 1]} : vector<8x512xf32> to vector<8x128xf32>
    %386 = math.tanh %385 : vector<8x128xf32>
    %387 = arith.mulf %383, %341 : vector<8x128xf32>
    %388 = arith.mulf %382, %386 : vector<8x128xf32>
    %389 = arith.addf %387, %388 : vector<8x128xf32>
    %390 = math.tanh %389 : vector<8x128xf32>
    %391 = arith.mulf %384, %390 : vector<8x128xf32>
    %c0_104 = arith.constant 0 : index
    %c0_105 = arith.constant 0 : index
    %392 = vector.load %arg7[%c0_104, %c0_105] : memref<128x1xf32, #tpu.memory_space<vmem>>, vector<128x1xf32>
    %cst_106 = arith.constant dense<0.000000e+00> : vector<8x1xf32>
    %393 = tpu.matmul %391, %392, %cst_106 {dimension_numbers = #tpu.dot_dimension_numbers<[1], [0], [0], [1], [0, 0, 1, 1], [], []>} : vector<8x128xf32>, vector<128x1xf32>, vector<8x1xf32> -> vector<8x1xf32>
    %c0_107 = arith.constant 0 : index
    %c0_108 = arith.constant 0 : index
    %394 = vector.load %arg8[%c0_107, %c0_108] : memref<1x1xf32, #tpu.memory_space<vmem>>, vector<1x1xf32>
    %395 = vector.broadcast %394 : vector<1x1xf32> to vector<8x1xf32>
    %396 = arith.addf %393, %395 : vector<8x1xf32>
    %397 = arith.negf %396 : vector<8x1xf32>
    %398 = math.exp %397 : vector<8x1xf32>
    %cst_109 = arith.constant 1.000000e+00 : f32
    %399 = vector.broadcast %cst_109 : f32 to vector<8x1xf32>
    %400 = arith.addf %399, %398 : vector<8x1xf32>
    %401 = arith.divf %399, %400 : vector<8x1xf32>
    %c0_110 = arith.constant 0 : index
    %c0_111 = arith.constant 0 : index
    %402 = vector.load %arg9[%c0_110, %c0_111] : memref<8x1xf32, #tpu.memory_space<vmem>>, vector<8x1xf32>
    tpu.vector_store %arg9[%c0_110, %c0_111], %401 {strides = array<i32>} : memref<8x1xf32, #tpu.memory_space<vmem>>, vector<8x1xf32>,
    return
  }
  func.func @transform_0(%arg0: i32) -> (i32, i32, i32) {
    %c0_i32 = arith.constant 0 : i32
    %c0_i32_0 = arith.constant 0 : i32
    %c0_i32_1 = arith.constant 0 : i32
    return %arg0, %c0_i32, %c0_i32_0 : i32, i32, i32
  }
  func.func @transform_1(%arg0: i32) -> (i32, i32) {
    %c0_i32 = arith.constant 0 : i32
    %c0_i32_0 = arith.constant 0 : i32
    %c0_i32_1 = arith.constant 0 : i32
    return %c0_i32, %c0_i32_0 : i32, i32
  }
  func.func @transform_2(%arg0: i32) -> (i32, i32) {
    %c0_i32 = arith.constant 0 : i32
    %c0_i32_0 = arith.constant 0 : i32
    %c0_i32_1 = arith.constant 0 : i32
    return %c0_i32, %c0_i32_0 : i32, i32
  }
  func.func @transform_3(%arg0: i32) -> (i32, i32) {
    %c0_i32 = arith.constant 0 : i32
    %c0_i32_0 = arith.constant 0 : i32
    %c0_i32_1 = arith.constant 0 : i32
    return %c0_i32, %c0_i32_0 : i32, i32
  }
  func.func @transform_4(%arg0: i32) -> (i32, i32) {
    %c0_i32 = arith.constant 0 : i32
    %c0_i32_0 = arith.constant 0 : i32
    %c0_i32_1 = arith.constant 0 : i32
    return %c0_i32, %c0_i32_0 : i32, i32
  }
  func.func @transform_5(%arg0: i32) -> (i32, i32) {
    %c0_i32 = arith.constant 0 : i32
    %c0_i32_0 = arith.constant 0 : i32
    %c0_i32_1 = arith.constant 0 : i32
    return %c0_i32, %c0_i32_0 : i32, i32
  }
  func.func @transform_6(%arg0: i32) -> (i32, i32) {
    %c0_i32 = arith.constant 0 : i32
    %c0_i32_0 = arith.constant 0 : i32
    %c0_i32_1 = arith.constant 0 : i32
    return %c0_i32, %c0_i32_0 : i32, i32
  }
  func.func @transform_7(%arg0: i32) -> (i32, i32) {
    %c0_i32 = arith.constant 0 : i32
    %c0_i32_0 = arith.constant 0 : i32
    %c0_i32_1 = arith.constant 0 : i32
    return %c0_i32, %c0_i32_0 : i32, i32
  }
  func.func @transform_8(%arg0: i32) -> (i32, i32) {
    %c0_i32 = arith.constant 0 : i32
    %c0_i32_0 = arith.constant 0 : i32
    return %arg0, %c0_i32 : i32, i32
  }
}

</mosaic_0001>

<llo_original>
// kernel: tpu_custom_call.1
$region0: #{tpu_custom_call.1}
  #allocation0 [shape = 'u32[]', space=smem, size = 0x4, offset = 0x4, fixed_abs, tag = 'smem constant byte address 0x4 - core index']
  #allocation1 [shape = 'u32[72,128]{1,0:T(1,128)}', space=vmem, size = 0x9000, scoped, tag = 'internal scratch']
  #allocation2 [shape = 'f32[64,512]{1,0:T(8,128)}', space=vmem, size = 0x20000, scoped, tag = 'scratch operand']
  #allocation3 [shape = 'f32[1,1]{1,0:T(1,128)S(1)}', space=vmem, size = 0x200, scoped, tag = 'scoped memory for tpu_custom_call.1']
  %s0 = inlined_call_operand.vmem [shape: bf16[1,64,24], index: 0, kind: input, shape index: {}]
  %s1 = inlined_call_operand.vmem [shape: bf16[24,512], index: 1, kind: input, shape index: {}]
  %s2 = inlined_call_operand.hbm [shape: bf16[128,512], index: 2, kind: input, shape index: {}]
  %s3 = inlined_call_operand.vmem [shape: f32[1,512], index: 3, kind: input, shape index: {}]
  %s4 = inlined_call_operand.hbm [shape: bf16[256,512], index: 4, kind: input, shape index: {}]
  %s5 = inlined_call_operand.vmem [shape: f32[1,512], index: 5, kind: input, shape index: {}]
  %s6 = inlined_call_operand.vmem [shape: f32[128,1], index: 6, kind: input, shape index: {}]
  %s7 = inlined_call_operand.<no memory space> [shape: f32[1,1], index: 7, kind: input, shape index: {}]
  %s8 = inlined_call_operand.vmem [shape: f32[8,1], index: 8, kind: output, shape index: {}]
  %s9 = sld [smem:[#allocation0]]
  $region50: #{tpu_custom_call.1} parent=0
    _
  %s11 = ssub.s32 1, %s9
  %s12 = scalar_select 0, %s11, %s9
  %v13 = vstv %s7
  %14 = vst [vmem:[#allocation3] sm:$0x1] %v13
  $region1: #{tpu_custom_call.1} parent=0
    #allocation4 [shape = 'u8[131072]{0}', space=vmem, size = 0x20000, scoped, tag = 'input window, operand 2, single buffered']
    #allocation5 [shape = 's32[1]{0}', space=sflag, size = 0x4, scoped, tag = 'scoped memory for tpu_custom_call.1']
    #allocation6 [shape = 'u8[262144]{0}', space=vmem, size = 0x40000, scoped, tag = 'input window, operand 4, single buffered']
    #allocation7 [shape = 's32[1]{0}', space=sflag, size = 0x4, scoped, tag = 'scoped memory for tpu_custom_call.1']
    %15 = vsyncpa [#allocation5], 0
    %16 = vsyncpa [#allocation7], 0
    // Predicated region
    $region2: #{tpu_custom_call.1} parent=1 // pred_check
      _
    $region3: #{tpu_custom_call.1} parent=1 // pred_check_branch
      %18 = sbr.rel (0) target = $region5
    $region4: #{tpu_custom_call.1} parent=1 // pred_region
      _
    $region5: #{tpu_custom_call.1} parent=1 // pred_fallthru
      _
    // Predicated region
    $region6: #{tpu_custom_call.1} parent=1 // pred_check
      _
    $region7: #{tpu_custom_call.1} parent=1 // pred_check_branch
      %20 = sbr.rel (0) target = $region9
    $region8: #{tpu_custom_call.1} parent=1 // pred_region
      _
    $region9: #{tpu_custom_call.1} parent=1 // pred_fallthru
      _
    // Predicated region
    $region10: #{tpu_custom_call.1} parent=1 // pred_check
      _
    $region11: #{tpu_custom_call.1} parent=1 // pred_check_branch
      %22 = sbr.rel (0) target = $region13
    $region12: #{tpu_custom_call.1} parent=1 // pred_region
      %24 = vsyncadd [#allocation5], 0
      %s25 = sshll.u32 %s2, 4
      %s26 = int_to_ptr.hbm [resolvable:$true] %s25
      %s27 = sshll.u32 [#allocation4], 4
      %s28 = int_to_ptr.vmem [resolvable:$true] %s27
      %33 = dma.hbm_to_vmem [thread:$0]  %s26, 4096, %s28, [#allocation5], 256, 256, 16
    $region13: #{tpu_custom_call.1} parent=1 // pred_fallthru
      _
    // Predicated region
    $region14: #{tpu_custom_call.1} parent=1 // pred_check
      _
    $region15: #{tpu_custom_call.1} parent=1 // pred_check_branch
      %35 = sbr.rel (0) target = $region17
    $region16: #{tpu_custom_call.1} parent=1 // pred_region
      _
    $region17: #{tpu_custom_call.1} parent=1 // pred_fallthru
      _
    // Predicated region
    $region18: #{tpu_custom_call.1} parent=1 // pred_check
      _
    $region19: #{tpu_custom_call.1} parent=1 // pred_check_branch
      %37 = sbr.rel (0) target = $region21
    $region20: #{tpu_custom_call.1} parent=1 // pred_region
      %39 = vsyncadd [#allocation7], 0
      %s40 = sshll.u32 %s4, 4
      %s41 = int_to_ptr.hbm [resolvable:$true] %s40
      %s42 = sshll.u32 [#allocation6], 4
      %s43 = int_to_ptr.vmem [resolvable:$true] %s42
      %48 = dma.hbm_to_vmem [thread:$0]  %s41, 8192, %s43, [#allocation7], 256, 256, 16
    $region21: #{tpu_custom_call.1} parent=1 // pred_fallthru
      _
    // Predicated region
    $region22: #{tpu_custom_call.1} parent=1 // pred_check
      _
    $region23: #{tpu_custom_call.1} parent=1 // pred_check_branch
      %50 = sbr.rel (0) target = $region25
    $region24: #{tpu_custom_call.1} parent=1 // pred_region
      _
    $region25: #{tpu_custom_call.1} parent=1 // pred_fallthru
      _
    // Predicated region
    $region26: #{tpu_custom_call.1} parent=1 // pred_check
      _
    $region27: #{tpu_custom_call.1} parent=1 // pred_check_branch
      %52 = sbr.rel (0) target = $region29
    $region28: #{tpu_custom_call.1} parent=1 // pred_region
      _
    $region29: #{tpu_custom_call.1} parent=1 // pred_fallthru
      _
    // Predicated region
    $region30: #{tpu_custom_call.1} parent=1 // pred_check
      _
    $region31: #{tpu_custom_call.1} parent=1 // pred_check_branch
      %54 = sbr.rel (0) target = $region33
    $region32: #{tpu_custom_call.1} parent=1 // pred_region
      _
    $region33: #{tpu_custom_call.1} parent=1 // pred_fallthru
      _
    // Predicated region
    $region34: #{tpu_custom_call.1} parent=1 // pred_check
      _
    $region35: #{tpu_custom_call.1} parent=1 // pred_check_branch
      %56 = sbr.rel (0) target = $region37
    $region36: #{tpu_custom_call.1} parent=1 // pred_region
      %58 = dma.done [#allocation5], 4096
    $region37: #{tpu_custom_call.1} parent=1 // pred_fallthru
      _
    // Predicated region
    $region38: #{tpu_custom_call.1} parent=1 // pred_check
      _
    $region39: #{tpu_custom_call.1} parent=1 // pred_check_branch
      %60 = sbr.rel (0) target = $region41
    $region40: #{tpu_custom_call.1} parent=1 // pred_region
      %62 = dma.done [#allocation7], 8192
    $region41: #{tpu_custom_call.1} parent=1 // pred_fallthru
      _
    %v64 = vld [vmem:[%s0] sm:$0xf]
    %v65 = vld [vmem:[%s0 + $0x4] sm:$0xf]
    %v66 = vld [vmem:[%s0 + $0x8] sm:$0xf]
    %v67 = vld [vmem:[%s0 + $0xc] sm:$0xf]
    %v68 = vld [vmem:[%s0 + $0x10] sm:$0xf]
    %v69 = vld [vmem:[%s0 + $0x14] sm:$0xf]
    %v70 = vld [vmem:[%s0 + $0x18] sm:$0xf]
    %v71 = vld [vmem:[%s0 + $0x1c] sm:$0xf]
    %v72 = vld [vmem:[%s1] sm:$0xff]
    %v73 = vld [vmem:[%s1 + $0x8] sm:$0xff]
    %v74 = vld [vmem:[%s1 + $0x10] sm:$0xff]
    %v75 = vld [vmem:[%s1 + $0x18] sm:$0xff]
    %v76 = vld [vmem:[%s1 + $0x20] sm:$0xff]
    %v77 = vld [vmem:[%s1 + $0x28] sm:$0xff]
    %v78 = vld [vmem:[%s3] sm:$0xf]
    %v80 = vperm.slane %v78, 0
    %v81 = vperm.slane %v78, 1
    %v82 = vperm.slane %v78, 2
    %v83 = vperm.slane %v78, 3
    %v96 = vunpack.c.l.b16 %v64
    %v97 = vunpack.c.l.b16 %v65
    %v98 = vunpack.c.l.b16 %v66
    %v99 = vunpack.c.l.b16 %v67
    %v100 = vunpack.c.l.b16 %v68
    %v101 = vunpack.c.l.b16 %v69
    %v102 = vunpack.c.l.b16 %v70
    %v103 = vunpack.c.l.b16 %v71
    %v104 = vpack.c.b16 %v97, %v96
    %v105 = vpack.c.b16 %v99, %v98
    %v106 = vpack.c.b16 %v101, %v100
    %v107 = vpack.c.b16 %v103, %v102
    %v114 = vunpack.c.l.b16 %v72
    %v115 = vunpack.c.h.b16 %v72
    %v116 = vunpack.c.l.b16 %v73
    %v117 = vunpack.c.h.b16 %v73
    %v118 = vunpack.c.l.b16 %v74
    %v119 = vunpack.c.h.b16 %v74
    %v120 = vunpack.c.l.b16 %v75
    %v121 = vunpack.c.h.b16 %v75
    %v122 = vunpack.c.l.b16 %v76
    %v123 = vunpack.c.h.b16 %v76
    %v124 = vunpack.c.l.b16 %v77
    %v125 = vunpack.c.h.b16 %v77
    %v126 = vpack.c.b16 %v118, %v114
    %v127 = vpack.c.b16 %v119, %v115
    %v128 = vpack.c.b16 %v120, %v116
    %v129 = vpack.c.b16 %v121, %v117
    %v130 = vpack.c.b16 %v122, %v122
    %v131 = vpack.c.b16 %v123, %v123
    %v132 = vpack.c.b16 %v124, %v124
    %v133 = vpack.c.b16 %v125, %v125
    %vm138 = vcmask 195584
    %v140 = vsel %vm138, %v104, 0
    %v143 = vsel %vm138, %v105, 0
    %v146 = vsel %vm138, %v106, 0
    %v149 = vsel %vm138, %v107, 0
    %vm151 = vcmask 1043456
    %v153 = vsel %vm151, %v130, 0
    %v156 = vsel %vm151, %v131, 0
    %v159 = vsel %vm151, %v132, 0
    %v162 = vsel %vm151, %v133, 0
    %164 = vmatpush.bf16.msra.mxu0 0
    %165 = vmatpush.bf16.msra.mxu0 0
    %166 = vmatpush.bf16.msra.mxu0 0
    %167 = vmatpush.bf16.msra.mxu0 0
    %168 = vmatpush.bf16.msra.mxu0 0
    %169 = vmatpush.bf16.msra.mxu0 0
    %170 = vmatpush.bf16.msra.mxu0 %v153
    %171 = vmatpush.bf16.msra.mxu0 %v126
    %172 = vmatmul.bf16.gmra.mxu0 %v140
    %v173 = vpop.f32.mrf.mxu0
    %v174 = vadd.f32 %v80, %v173
    %v175 = vpop.f32.mrf.mxu0
    %v176 = vadd.f32 %v80, %v175
    %177 = vmatmul.bf16.gmra.mxu0 %v143
    %v178 = vpop.f32.mrf.mxu0
    %v179 = vadd.f32 %v80, %v178
    %v180 = vpop.f32.mrf.mxu0
    %v181 = vadd.f32 %v80, %v180
    %182 = vmatmul.bf16.gmra.mxu0 %v146
    %v183 = vpop.f32.mrf.mxu0
    %v184 = vadd.f32 %v80, %v183
    %v185 = vpop.f32.mrf.mxu0
    %v186 = vadd.f32 %v80, %v185
    %187 = vmatmul.bf16.gmra.mxu0 %v149
    %v188 = vpop.f32.mrf.mxu0
    %v189 = vadd.f32 %v80, %v188
    %v190 = vpop.f32.mrf.mxu0
    %v191 = vadd.f32 %v80, %v190
    %192 = vdwg.mxu0
    %193 = vmatpush.bf16.msra.mxu0 0
    %194 = vmatpush.bf16.msra.mxu0 0
    %195 = vmatpush.bf16.msra.mxu0 0
    %196 = vmatpush.bf16.msra.mxu0 0
    %197 = vmatpush.bf16.msra.mxu0 0
    %198 = vmatpush.bf16.msra.mxu0 0
    %199 = vmatpush.bf16.msra.mxu0 %v156
    %200 = vmatpush.bf16.msra.mxu0 %v127
    %201 = vmatmul.bf16.gmra.mxu0 %v140
    %v202 = vpop.f32.mrf.mxu0
    %v203 = vadd.f32 %v81, %v202
    %v204 = vpop.f32.mrf.mxu0
    %v205 = vadd.f32 %v81, %v204
    %206 = vmatmul.bf16.gmra.mxu0 %v143
    %v207 = vpop.f32.mrf.mxu0
    %v208 = vadd.f32 %v81, %v207
    %v209 = vpop.f32.mrf.mxu0
    %v210 = vadd.f32 %v81, %v209
    %211 = vmatmul.bf16.gmra.mxu0 %v146
    %v212 = vpop.f32.mrf.mxu0
    %v213 = vadd.f32 %v81, %v212
    %v214 = vpop.f32.mrf.mxu0
    %v215 = vadd.f32 %v81, %v214
    %216 = vmatmul.bf16.gmra.mxu0 %v149
    %v217 = vpop.f32.mrf.mxu0
    %v218 = vadd.f32 %v81, %v217
    %v219 = vpop.f32.mrf.mxu0
    %v220 = vadd.f32 %v81, %v219
    %221 = vdwg.mxu0
    %222 = vmatpush.bf16.msra.mxu0 0
    %223 = vmatpush.bf16.msra.mxu0 0
    %224 = vmatpush.bf16.msra.mxu0 0
    %225 = vmatpush.bf16.msra.mxu0 0
    %226 = vmatpush.bf16.msra.mxu0 0
    %227 = vmatpush.bf16.msra.mxu0 0
    %228 = vmatpush.bf16.msra.mxu0 %v159
    %229 = vmatpush.bf16.msra.mxu0 %v128
    %230 = vmatmul.bf16.gmra.mxu0 %v140
    %v231 = vpop.f32.mrf.mxu0
    %v232 = vadd.f32 %v82, %v231
    %v233 = vpop.f32.mrf.mxu0
    %v234 = vadd.f32 %v82, %v233
    %235 = vmatmul.bf16.gmra.mxu0 %v143
    %v236 = vpop.f32.mrf.mxu0
    %v237 = vadd.f32 %v82, %v236
    %v238 = vpop.f32.mrf.mxu0
    %v239 = vadd.f32 %v82, %v238
    %240 = vmatmul.bf16.gmra.mxu0 %v146
    %v241 = vpop.f32.mrf.mxu0
    %v242 = vadd.f32 %v82, %v241
    %v243 = vpop.f32.mrf.mxu0
    %v244 = vadd.f32 %v82, %v243
    %245 = vmatmul.bf16.gmra.mxu0 %v149
    %v246 = vpop.f32.mrf.mxu0
    %v247 = vadd.f32 %v82, %v246
    %v248 = vpop.f32.mrf.mxu0
    %v249 = vadd.f32 %v82, %v248
    %250 = vdwg.mxu0
    %251 = vmatpush.bf16.msra.mxu0 0
    %252 = vmatpush.bf16.msra.mxu0 0
    %253 = vmatpush.bf16.msra.mxu0 0
    %254 = vmatpush.bf16.msra.mxu0 0
    %255 = vmatpush.bf16.msra.mxu0 0
    %256 = vmatpush.bf16.msra.mxu0 0
    %257 = vmatpush.bf16.msra.mxu0 %v162
    %258 = vmatpush.bf16.msra.mxu0 %v129
    %259 = vmatmul.bf16.gmra.mxu0 %v140
    %v260 = vpop.f32.mrf.mxu0
    %v261 = vadd.f32 %v83, %v260
    %v262 = vpop.f32.mrf.mxu0
    %v263 = vadd.f32 %v83, %v262
    %264 = vmatmul.bf16.gmra.mxu0 %v143
    %v265 = vpop.f32.mrf.mxu0
    %v266 = vadd.f32 %v83, %v265
    %v267 = vpop.f32.mrf.mxu0
    %v268 = vadd.f32 %v83, %v267
    %269 = vmatmul.bf16.gmra.mxu0 %v146
    %v270 = vpop.f32.mrf.mxu0
    %v271 = vadd.f32 %v83, %v270
    %v272 = vpop.f32.mrf.mxu0
    %v273 = vadd.f32 %v83, %v272
    %274 = vmatmul.bf16.gmra.mxu0 %v149
    %v275 = vpop.f32.mrf.mxu0
    %v276 = vadd.f32 %v83, %v275
    %v277 = vpop.f32.mrf.mxu0
    %v278 = vadd.f32 %v83, %v277
    %279 = vdwg.mxu0
    %280 = vst [vmem:[#allocation2] sm:$0xff] %v174
    %281 = vst [vmem:[#allocation2 + $0x8] sm:$0xff] %v203
    %282 = vst [vmem:[#allocation2 + $0x10] sm:$0xff] %v232
    %283 = vst [vmem:[#allocation2 + $0x18] sm:$0xff] %v261
    %284 = vst [vmem:[#allocation2 + $0x20] sm:$0xff] %v176
    %285 = vst [vmem:[#allocation2 + $0x28] sm:$0xff] %v205
    %286 = vst [vmem:[#allocation2 + $0x30] sm:$0xff] %v234
    %287 = vst [vmem:[#allocation2 + $0x38] sm:$0xff] %v263
    %288 = vst [vmem:[#allocation2 + $0x40] sm:$0xff] %v179
    %289 = vst [vmem:[#allocation2 + $0x48] sm:$0xff] %v208
    %290 = vst [vmem:[#allocation2 + $0x50] sm:$0xff] %v237
    %291 = vst [vmem:[#allocation2 + $0x58] sm:$0xff] %v266
    %292 = vst [vmem:[#allocation2 + $0x60] sm:$0xff] %v181
    %293 = vst [vmem:[#allocation2 + $0x68] sm:$0xff] %v210
    %294 = vst [vmem:[#allocation2 + $0x70] sm:$0xff] %v239
    %295 = vst [vmem:[#allocation2 + $0x78] sm:$0xff] %v268
    %296 = vst [vmem:[#allocation2 + $0x80] sm:$0xff] %v184
    %297 = vst [vmem:[#allocation2 + $0x88] sm:$0xff] %v213
    %298 = vst [vmem:[#allocation2 + $0x90] sm:$0xff] %v242
    %299 = vst [vmem:[#allocation2 + $0x98] sm:$0xff] %v271
    %300 = vst [vmem:[#allocation2 + $0xa0] sm:$0xff] %v186
    %301 = vst [vmem:[#allocation2 + $0xa8] sm:$0xff] %v215
    %302 = vst [vmem:[#allocation2 + $0xb0] sm:$0xff] %v244
    %303 = vst [vmem:[#allocation2 + $0xb8] sm:$0xff] %v273
    %304 = vst [vmem:[#allocation2 + $0xc0] sm:$0xff] %v189
    %305 = vst [vmem:[#allocation2 + $0xc8] sm:$0xff] %v218
    %306 = vst [vmem:[#allocation2 + $0xd0] sm:$0xff] %v247
    %307 = vst [vmem:[#allocation2 + $0xd8] sm:$0xff] %v276
    %308 = vst [vmem:[#allocation2 + $0xe0] sm:$0xff] %v191
    %309 = vst [vmem:[#allocation2 + $0xe8] sm:$0xff] %v220
    %310 = vst [vmem:[#allocation2 + $0xf0] sm:$0xff] %v249
    %311 = vst [vmem:[#allocation2 + $0xf8] sm:$0xff] %v278
    %s312 = smul.u32 0, 4
    %s313 = smul.addr %s312, 8
    %s314 = scalar_lea.vmem [#allocation2], %s313
    %v315 = vld [vmem:[%s314] sm:$0xff]
    %v316 = vld [vmem:[%s314 + $0x8] sm:$0xff]
    %v317 = vld [vmem:[%s314 + $0x10] sm:$0xff]
    %v318 = vld [vmem:[%s314 + $0x18] sm:$0xff]
    %v319 = vld [vmem:[#allocation4] sm:$0xff]
    %v320 = vld [vmem:[#allocation4 + $0x8] sm:$0xff]
    %v321 = vld [vmem:[#allocation4 + $0x10] sm:$0xff]
    %v322 = vld [vmem:[#allocation4 + $0x18] sm:$0xff]
    %v323 = vld [vmem:[#allocation4 + $0x20] sm:$0xff]
    %v324 = vld [vmem:[#allocation4 + $0x28] sm:$0xff]
    %v325 = vld [vmem:[#allocation4 + $0x30] sm:$0xff]
    %v326 = vld [vmem:[#allocation4 + $0x38] sm:$0xff]
    %v327 = vld [vmem:[#allocation4 + $0x40] sm:$0xff]
    %v328 = vld [vmem:[#allocation4 + $0x48] sm:$0xff]
    %v329 = vld [vmem:[#allocation4 + $0x50] sm:$0xff]
    %v330 = vld [vmem:[#allocation4 + $0x58] sm:$0xff]
    %v331 = vld [vmem:[#allocation4 + $0x60] sm:$0xff]
    %v332 = vld [vmem:[#allocation4 + $0x68] sm:$0xff]
    %v333 = vld [vmem:[#allocation4 + $0x70] sm:$0xff]
    %v334 = vld [vmem:[#allocation4 + $0x78] sm:$0xff]
    %v335 = vld [vmem:[#allocation4 + $0x80] sm:$0xff]
    %v336 = vld [vmem:[#allocation4 + $0x88] sm:$0xff]
    %v337 = vld [vmem:[#allocation4 + $0x90] sm:$0xff]
    %v338 = vld [vmem:[#allocation4 + $0x98] sm:$0xff]
    %v339 = vld [vmem:[#allocation4 + $0xa0] sm:$0xff]
    %v340 = vld [vmem:[#allocation4 + $0xa8] sm:$0xff]
    %v341 = vld [vmem:[#allocation4 + $0xb0] sm:$0xff]
    %v342 = vld [vmem:[#allocation4 + $0xb8] sm:$0xff]
    %v343 = vld [vmem:[#allocation4 + $0xc0] sm:$0xff]
    %v344 = vld [vmem:[#allocation4 + $0xc8] sm:$0xff]
    %v345 = vld [vmem:[#allocation4 + $0xd0] sm:$0xff]
    %v346 = vld [vmem:[#allocation4 + $0xd8] sm:$0xff]
    %v347 = vld [vmem:[#allocation4 + $0xe0] sm:$0xff]
    %v348 = vld [vmem:[#allocation4 + $0xe8] sm:$0xff]
    %v349 = vld [vmem:[#allocation4 + $0xf0] sm:$0xff]
    %v350 = vld [vmem:[#allocation4 + $0xf8] sm:$0xff]
    %v383 = vunpack.c.l.b16 %v319
    %v384 = vunpack.c.h.b16 %v319
    %v385 = vunpack.c.l.b16 %v320
    %v386 = vunpack.c.h.b16 %v320
    %v387 = vunpack.c.l.b16 %v321
    %v388 = vunpack.c.h.b16 %v321
    %v389 = vunpack.c.l.b16 %v322
    %v390 = vunpack.c.h.b16 %v322
    %v391 = vunpack.c.l.b16 %v323
    %v392 = vunpack.c.h.b16 %v323
    %v393 = vunpack.c.l.b16 %v324
    %v394 = vunpack.c.h.b16 %v324
    %v395 = vunpack.c.l.b16 %v325
    %v396 = vunpack.c.h.b16 %v325
    %v397 = vunpack.c.l.b16 %v326
    %v398 = vunpack.c.h.b16 %v326
    %v399 = vunpack.c.l.b16 %v327
    %v400 = vunpack.c.h.b16 %v327
    %v401 = vunpack.c.l.b16 %v328
    %v402 = vunpack.c.h.b16 %v328
    %v403 = vunpack.c.l.b16 %v329
    %v404 = vunpack.c.h.b16 %v329
    %v405 = vunpack.c.l.b16 %v330
    %v406 = vunpack.c.h.b16 %v330
    %v407 = vunpack.c.l.b16 %v331
    %v408 = vunpack.c.h.b16 %v331
    %v409 = vunpack.c.l.b16 %v332
    %v410 = vunpack.c.h.b16 %v332
    %v411 = vunpack.c.l.b16 %v333
    %v412 = vunpack.c.h.b16 %v333
    %v413 = vunpack.c.l.b16 %v334
    %v414 = vunpack.c.h.b16 %v334
    %v415 = vunpack.c.l.b16 %v335
    %v416 = vunpack.c.h.b16 %v335
    %v417 = vunpack.c.l.b16 %v336
    %v418 = vunpack.c.h.b16 %v336
    %v419 = vunpack.c.l.b16 %v337
    %v420 = vunpack.c.h.b16 %v337
    %v421 = vunpack.c.l.b16 %v338
    %v422 = vunpack.c.h.b16 %v338
    %v423 = vunpack.c.l.b16 %v339
    %v424 = vunpack.c.h.b16 %v339
    %v425 = vunpack.c.l.b16 %v340
    %v426 = vunpack.c.h.b16 %v340
    %v427 = vunpack.c.l.b16 %v341
    %v428 = vunpack.c.h.b16 %v341
    %v429 = vunpack.c.l.b16 %v342
    %v430 = vunpack.c.h.b16 %v342
    %v431 = vunpack.c.l.b16 %v343
    %v432 = vunpack.c.h.b16 %v343
    %v433 = vunpack.c.l.b16 %v344
    %v434 = vunpack.c.h.b16 %v344
    %v435 = vunpack.c.l.b16 %v345
    %v436 = vunpack.c.h.b16 %v345
    %v437 = vunpack.c.l.b16 %v346
    %v438 = vunpack.c.h.b16 %v346
    %v439 = vunpack.c.l.b16 %v347
    %v440 = vunpack.c.h.b16 %v347
    %v441 = vunpack.c.l.b16 %v348
    %v442 = vunpack.c.h.b16 %v348
    %v443 = vunpack.c.l.b16 %v349
    %v444 = vunpack.c.h.b16 %v349
    %v445 = vunpack.c.l.b16 %v350
    %v446 = vunpack.c.h.b16 %v350
    %v447 = vpack.c.b16 %v387, %v383
    %v448 = vpack.c.b16 %v388, %v384
    %v449 = vpack.c.b16 %v389, %v385
    %v450 = vpack.c.b16 %v390, %v386
    %v451 = vpack.c.b16 %v395, %v391
    %v452 = vpack.c.b16 %v396, %v392
    %v453 = vpack.c.b16 %v397, %v393
    %v454 = vpack.c.b16 %v398, %v394
    %v455 = vpack.c.b16 %v403, %v399
    %v456 = vpack.c.b16 %v404, %v400
    %v457 = vpack.c.b16 %v405, %v401
    %v458 = vpack.c.b16 %v406, %v402
    %v459 = vpack.c.b16 %v411, %v407
    %v460 = vpack.c.b16 %v412, %v408
    %v461 = vpack.c.b16 %v413, %v409
    %v462 = vpack.c.b16 %v414, %v410
    %v463 = vpack.c.b16 %v419, %v415
    %v464 = vpack.c.b16 %v420, %v416
    %v465 = vpack.c.b16 %v421, %v417
    %v466 = vpack.c.b16 %v422, %v418
    %v467 = vpack.c.b16 %v427, %v423
    %v468 = vpack.c.b16 %v428, %v424
    %v469 = vpack.c.b16 %v429, %v425
    %v470 = vpack.c.b16 %v430, %v426
    %v471 = vpack.c.b16 %v435, %v431
    %v472 = vpack.c.b16 %v436, %v432
    %v473 = vpack.c.b16 %v437, %v433
    %v474 = vpack.c.b16 %v438, %v434
    %v475 = vpack.c.b16 %v443, %v439
    %v476 = vpack.c.b16 %v444, %v440
    %v477 = vpack.c.b16 %v445, %v441
    %v478 = vpack.c.b16 %v446, %v442
    %511 = vmatpush.bf16.msra.mxu0 %v475
    %512 = vmatpush.bf16.msra.mxu0 %v471
    %513 = vmatpush.bf16.msra.mxu0 %v467
    %514 = vmatpush.bf16.msra.mxu0 %v463
    %515 = vmatpush.bf16.msra.mxu0 %v459
    %516 = vmatpush.bf16.msra.mxu0 %v455
    %517 = vmatpush.bf16.msra.mxu0 %v451
    %518 = vmatpush.bf16.msra.mxu0 %v447
    %519 = vmatmul.bf16.gmra.mxu0 0
    %v520 = vpop.f32.mrf.mxu0
    %v521 = vadd.f32 0.0, %v520
    %v522 = vpop.f32.mrf.mxu0
    %523 = vdwg.mxu0
    %524 = vmatpush.bf16.msra.mxu0 %v476
    %525 = vmatpush.bf16.msra.mxu0 %v472
    %526 = vmatpush.bf16.msra.mxu0 %v468
    %527 = vmatpush.bf16.msra.mxu0 %v464
    %528 = vmatpush.bf16.msra.mxu0 %v460
    %529 = vmatpush.bf16.msra.mxu0 %v456
    %530 = vmatpush.bf16.msra.mxu0 %v452
    %531 = vmatpush.bf16.msra.mxu0 %v448
    %532 = vmatmul.bf16.gmra.mxu0 0
    %v533 = vpop.f32.mrf.mxu0
    %v534 = vadd.f32 0.0, %v533
    %v535 = vpop.f32.mrf.mxu0
    %536 = vdwg.mxu0
    %537 = vmatpush.bf16.msra.mxu0 %v477
    %538 = vmatpush.bf16.msra.mxu0 %v473
    %539 = vmatpush.bf16.msra.mxu0 %v469
    %540 = vmatpush.bf16.msra.mxu0 %v465
    %541 = vmatpush.bf16.msra.mxu0 %v461
    %542 = vmatpush.bf16.msra.mxu0 %v457
    %543 = vmatpush.bf16.msra.mxu0 %v453
    %544 = vmatpush.bf16.msra.mxu0 %v449
    %545 = vmatmul.bf16.gmra.mxu0 0
    %v546 = vpop.f32.mrf.mxu0
    %v547 = vadd.f32 0.0, %v546
    %v548 = vpop.f32.mrf.mxu0
    %549 = vdwg.mxu0
    %550 = vmatpush.bf16.msra.mxu0 %v478
    %551 = vmatpush.bf16.msra.mxu0 %v474
    %552 = vmatpush.bf16.msra.mxu0 %v470
    %553 = vmatpush.bf16.msra.mxu0 %v466
    %554 = vmatpush.bf16.msra.mxu0 %v462
    %555 = vmatpush.bf16.msra.mxu0 %v458
    %556 = vmatpush.bf16.msra.mxu0 %v454
    %557 = vmatpush.bf16.msra.mxu0 %v450
    %558 = vmatmul.bf16.gmra.mxu0 0
    %v559 = vpop.f32.mrf.mxu0
    %v560 = vadd.f32 0.0, %v559
    %v561 = vpop.f32.mrf.mxu0
    %562 = vdwg.mxu0
    %v563 = vadd.f32 %v315, %v521
    %v564 = vadd.f32 %v316, %v534
    %v565 = vadd.f32 %v317, %v547
    %v566 = vadd.f32 %v318, %v560
    %v567 = vxor.u32 %v563, 2147483648
    %v568 = vxor.u32 %v564, 2147483648
    %v569 = vxor.u32 %v565, 2147483648
    %v570 = vmul.f32 %v567, 1.442695
    %v571 = vpow.pop %v570
    %v572 = vmul.f32 %v568, 1.442695
    %v573 = vpow.pop %v572
    %v574 = vmul.f32 %v569, 1.442695
    %v575 = vpow.pop %v574
    %v576 = vadd.f32 %v571, 1.0
    %v577 = vadd.f32 %v573, 1.0
    %v578 = vadd.f32 %v575, 1.0
    %v579 = vrcp.pop %v576
    %v580 = vmul.f32 %v576, %v579
    %v581 = vsub.f32 1.0, %v580
    %v582 = vmul.f32 %v579, %v581
    %v583 = vadd.f32 %v579, %v582
    %vm584 = vweird.f32 %v576
    %vm585 = vweird.f32 %v579
    %vm586 = vmor %vm584, %vm585
    %v587 = vsel %vm586, %v579, %v583
    %v588 = vand.u32 2147483647, %v576
    %vm589 = vcmp.eq.f32.partialorder %v588, 8.507059e+37
    %v590 = vand.u32 %v576, 2147483648
    %v591 = vor.u32 1.1754944e-38, %v590
    %v592 = vsel %vm589, %v591, %v587
    %v593 = vmul.f32 1.0, %v592
    %v594 = vrcp.pop %v577
    %v595 = vmul.f32 %v577, %v594
    %v596 = vsub.f32 1.0, %v595
    %v597 = vmul.f32 %v594, %v596
    %v598 = vadd.f32 %v594, %v597
    %vm599 = vweird.f32 %v577
    %vm600 = vweird.f32 %v594
    %vm601 = vmor %vm599, %vm600
    %v602 = vsel %vm601, %v594, %v598
    %v603 = vand.u32 2147483647, %v577
    %vm604 = vcmp.eq.f32.partialorder %v603, 8.507059e+37
    %v605 = vand.u32 %v577, 2147483648
    %v606 = vor.u32 1.1754944e-38, %v605
    %v607 = vsel %vm604, %v606, %v602
    %v608 = vmul.f32 1.0, %v607
    %v609 = vrcp.pop %v578
    %v610 = vmul.f32 %v578, %v609
    %v611 = vsub.f32 1.0, %v610
    %v612 = vmul.f32 %v609, %v611
    %v613 = vadd.f32 %v609, %v612
    %vm614 = vweird.f32 %v578
    %vm615 = vweird.f32 %v609
    %vm616 = vmor %vm614, %vm615
    %v617 = vsel %vm616, %v609, %v613
    %v618 = vand.u32 2147483647, %v578
    %vm619 = vcmp.eq.f32.partialorder %v618, 8.507059e+37
    %v620 = vand.u32 %v578, 2147483648
    %v621 = vor.u32 1.1754944e-38, %v620
    %v622 = vsel %vm619, %v621, %v617
    %v623 = vmul.f32 1.0, %v622
    %v624 = vtanh.pop %v566
    %v625 = vmul.f32 %v608, 0.0
    %v626 = vmul.f32 %v593, %v624
    %v627 = vadd.f32 %v625, %v626
    %v628 = vtanh.pop %v627
    %v629 = vmul.f32 %v623, %v628
    %v630 = vpack.c.bf16 %v629, %v629
    %v631 = vld [vmem:[%s5] sm:$0xf]
    %v632 = vld [vmem:[#allocation6] sm:$0xff]
    %v633 = vld [vmem:[#allocation6 + $0x8] sm:$0xff]
    %v634 = vld [vmem:[#allocation6 + $0x10] sm:$0xff]
    %v635 = vld [vmem:[#allocation6 + $0x18] sm:$0xff]
    %v636 = vld [vmem:[#allocation6 + $0x20] sm:$0xff]
    %v637 = vld [vmem:[#allocation6 + $0x28] sm:$0xff]
    %v638 = vld [vmem:[#allocation6 + $0x30] sm:$0xff]
    %v639 = vld [vmem:[#allocation6 + $0x38] sm:$0xff]
    %v640 = vld [vmem:[#allocation6 + $0x40] sm:$0xff]
    %v641 = vld [vmem:[#allocation6 + $0x48] sm:$0xff]
    %v642 = vld [vmem:[#allocation6 + $0x50] sm:$0xff]
    %v643 = vld [vmem:[#allocation6 + $0x58] sm:$0xff]
    %v644 = vld [vmem:[#allocation6 + $0x60] sm:$0xff]
    %v645 = vld [vmem:[#allocation6 + $0x68] sm:$0xff]
    %v646 = vld [vmem:[#allocation6 + $0x70] sm:$0xff]
    %v647 = vld [vmem:[#allocation6 + $0x78] sm:$0xff]
    %v648 = vld [vmem:[#allocation6 + $0x80] sm:$0xff]
    %v649 = vld [vmem:[#allocation6 + $0x88] sm:$0xff]
    %v650 = vld [vmem:[#allocation6 + $0x90] sm:$0xff]
    %v651 = vld [vmem:[#allocation6 + $0x98] sm:$0xff]
    %v652 = vld [vmem:[#allocation6 + $0xa0] sm:$0xff]
    %v653 = vld [vmem:[#allocation6 + $0xa8] sm:$0xff]
    %v654 = vld [vmem:[#allocation6 + $0xb0] sm:$0xff]
    %v655 = vld [vmem:[#allocation6 + $0xb8] sm:$0xff]
    %v656 = vld [vmem:[#allocation6 + $0xc0] sm:$0xff]
    %v657 = vld [vmem:[#allocation6 + $0xc8] sm:$0xff]
    %v658 = vld [vmem:[#allocation6 + $0xd0] sm:$0xff]
    %v659 = vld [vmem:[#allocation6 + $0xd8] sm:$0xff]
    %v660 = vld [vmem:[#allocation6 + $0xe0] sm:$0xff]
    %v661 = vld [vmem:[#allocation6 + $0xe8] sm:$0xff]
    %v662 = vld [vmem:[#allocation6 + $0xf0] sm:$0xff]
    %v663 = vld [vmem:[#allocation6 + $0xf8] sm:$0xff]
    %v664 = vld [vmem:[#allocation6 + $0x100] sm:$0xff]
    %v665 = vld [vmem:[#allocation6 + $0x108] sm:$0xff]
    %v666 = vld [vmem:[#allocation6 + $0x110] sm:$0xff]
    %v667 = vld [vmem:[#allocation6 + $0x118] sm:$0xff]
    %v668 = vld [vmem:[#allocation6 + $0x120] sm:$0xff]
    %v669 = vld [vmem:[#allocation6 + $0x128] sm:$0xff]
    %v670 = vld [vmem:[#allocation6 + $0x130] sm:$0xff]
    %v671 = vld [vmem:[#allocation6 + $0x138] sm:$0xff]
    %v672 = vld [vmem:[#allocation6 + $0x140] sm:$0xff]
    %v673 = vld [vmem:[#allocation6 + $0x148] sm:$0xff]
    %v674 = vld [vmem:[#allocation6 + $0x150] sm:$0xff]
    %v675 = vld [vmem:[#allocation6 + $0x158] sm:$0xff]
    %v676 = vld [vmem:[#allocation6 + $0x160] sm:$0xff]
    %v677 = vld [vmem:[#allocation6 + $0x168] sm:$0xff]
    %v678 = vld [vmem:[#allocation6 + $0x170] sm:$0xff]
    %v679 = vld [vmem:[#allocation6 + $0x178] sm:$0xff]
    %v680 = vld [vmem:[#allocation6 + $0x180] sm:$0xff]
    %v681 = vld [vmem:[#allocation6 + $0x188] sm:$0xff]
    %v682 = vld [vmem:[#allocation6 + $0x190] sm:$0xff]
    %v683 = vld [vmem:[#allocation6 + $0x198] sm:$0xff]
    %v684 = vld [vmem:[#allocation6 + $0x1a0] sm:$0xff]
    %v685 = vld [vmem:[#allocation6 + $0x1a8] sm:$0xff]
    %v686 = vld [vmem:[#allocation6 + $0x1b0] sm:$0xff]
    %v687 = vld [vmem:[#allocation6 + $0x1b8] sm:$0xff]
    %v688 = vld [vmem:[#allocation6 + $0x1c0] sm:$0xff]
    %v689 = vld [vmem:[#allocation6 + $0x1c8] sm:$0xff]
    %v690 = vld [vmem:[#allocation6 + $0x1d0] sm:$0xff]
    %v691 = vld [vmem:[#allocation6 + $0x1d8] sm:$0xff]
    %v692 = vld [vmem:[#allocation6 + $0x1e0] sm:$0xff]
    %v693 = vld [vmem:[#allocation6 + $0x1e8] sm:$0xff]
    %v694 = vld [vmem:[#allocation6 + $0x1f0] sm:$0xff]
    %v695 = vld [vmem:[#allocation6 + $0x1f8] sm:$0xff]
    %v760 = vunpack.c.l.b16 %v632
    %v761 = vunpack.c.h.b16 %v632
    %v762 = vunpack.c.l.b16 %v633
    %v763 = vunpack.c.h.b16 %v633
    %v764 = vunpack.c.l.b16 %v634
    %v765 = vunpack.c.h.b16 %v634
    %v766 = vunpack.c.l.b16 %v635
    %v767 = vunpack.c.h.b16 %v635
    %v768 = vunpack.c.l.b16 %v636
    %v769 = vunpack.c.h.b16 %v636
    %v770 = vunpack.c.l.b16 %v637
    %v771 = vunpack.c.h.b16 %v637
    %v772 = vunpack.c.l.b16 %v638
    %v773 = vunpack.c.h.b16 %v638
    %v774 = vunpack.c.l.b16 %v639
    %v775 = vunpack.c.h.b16 %v639
    %v776 = vunpack.c.l.b16 %v640
    %v777 = vunpack.c.h.b16 %v640
    %v778 = vunpack.c.l.b16 %v641
    %v779 = vunpack.c.h.b16 %v641
    %v780 = vunpack.c.l.b16 %v642
    %v781 = vunpack.c.h.b16 %v642
    %v782 = vunpack.c.l.b16 %v643
    %v783 = vunpack.c.h.b16 %v643
    %v784 = vunpack.c.l.b16 %v644
    %v785 = vunpack.c.h.b16 %v644
    %v786 = vunpack.c.l.b16 %v645
    %v787 = vunpack.c.h.b16 %v645
    %v788 = vunpack.c.l.b16 %v646
    %v789 = vunpack.c.h.b16 %v646
    %v790 = vunpack.c.l.b16 %v647
    %v791 = vunpack.c.h.b16 %v647
    %v792 = vunpack.c.l.b16 %v648
    %v793 = vunpack.c.h.b16 %v648
    %v794 = vunpack.c.l.b16 %v649
    %v795 = vunpack.c.h.b16 %v649
    %v796 = vunpack.c.l.b16 %v650
    %v797 = vunpack.c.h.b16 %v650
    %v798 = vunpack.c.l.b16 %v651
    %v799 = vunpack.c.h.b16 %v651
    %v800 = vunpack.c.l.b16 %v652
    %v801 = vunpack.c.h.b16 %v652
    %v802 = vunpack.c.l.b16 %v653
    %v803 = vunpack.c.h.b16 %v653
    %v804 = vunpack.c.l.b16 %v654
    %v805 = vunpack.c.h.b16 %v654
    %v806 = vunpack.c.l.b16 %v655
    %v807 = vunpack.c.h.b16 %v655
    %v808 = vunpack.c.l.b16 %v656
    %v809 = vunpack.c.h.b16 %v656
    %v810 = vunpack.c.l.b16 %v657
    %v811 = vunpack.c.h.b16 %v657
    %v812 = vunpack.c.l.b16 %v658
    %v813 = vunpack.c.h.b16 %v658
    %v814 = vunpack.c.l.b16 %v659
    %v815 = vunpack.c.h.b16 %v659
    %v816 = vunpack.c.l.b16 %v660
    %v817 = vunpack.c.h.b16 %v660
    %v818 = vunpack.c.l.b16 %v661
    %v819 = vunpack.c.h.b16 %v661
    %v820 = vunpack.c.l.b16 %v662
    %v821 = vunpack.c.h.b16 %v662
    %v822 = vunpack.c.l.b16 %v663
    %v823 = vunpack.c.h.b16 %v663
    %v824 = vunpack.c.l.b16 %v664
    %v825 = vunpack.c.h.b16 %v664
    %v826 = vunpack.c.l.b16 %v665
    %v827 = vunpack.c.h.b16 %v665
    %v828 = vunpack.c.l.b16 %v666
    %v829 = vunpack.c.h.b16 %v666
    %v830 = vunpack.c.l.b16 %v667
    %v831 = vunpack.c.h.b16 %v667
    %v832 = vunpack.c.l.b16 %v668
    %v833 = vunpack.c.h.b16 %v668
    %v834 = vunpack.c.l.b16 %v669
    %v835 = vunpack.c.h.b16 %v669
    %v836 = vunpack.c.l.b16 %v670
    %v837 = vunpack.c.h.b16 %v670
    %v838 = vunpack.c.l.b16 %v671
    %v839 = vunpack.c.h.b16 %v671
    %v840 = vunpack.c.l.b16 %v672
    %v841 = vunpack.c.h.b16 %v672
    %v842 = vunpack.c.l.b16 %v673
    %v843 = vunpack.c.h.b16 %v673
    %v844 = vunpack.c.l.b16 %v674
    %v845 = vunpack.c.h.b16 %v674
    %v846 = vunpack.c.l.b16 %v675
    %v847 = vunpack.c.h.b16 %v675
    %v848 = vunpack.c.l.b16 %v676
    %v849 = vunpack.c.h.b16 %v676
    %v850 = vunpack.c.l.b16 %v677
    %v851 = vunpack.c.h.b16 %v677
    %v852 = vunpack.c.l.b16 %v678
    %v853 = vunpack.c.h.b16 %v678
    %v854 = vunpack.c.l.b16 %v679
    %v855 = vunpack.c.h.b16 %v679
    %v856 = vunpack.c.l.b16 %v680
    %v857 = vunpack.c.h.b16 %v680
    %v858 = vunpack.c.l.b16 %v681
    %v859 = vunpack.c.h.b16 %v681
    %v860 = vunpack.c.l.b16 %v682
    %v861 = vunpack.c.h.b16 %v682
    %v862 = vunpack.c.l.b16 %v683
    %v863 = vunpack.c.h.b16 %v683
    %v864 = vunpack.c.l.b16 %v684
    %v865 = vunpack.c.h.b16 %v684
    %v866 = vunpack.c.l.b16 %v685
    %v867 = vunpack.c.h.b16 %v685
    %v868 = vunpack.c.l.b16 %v686
    %v869 = vunpack.c.h.b16 %v686
    %v870 = vunpack.c.l.b16 %v687
    %v871 = vunpack.c.h.b16 %v687
    %v872 = vunpack.c.l.b16 %v688
    %v873 = vunpack.c.h.b16 %v688
    %v874 = vunpack.c.l.b16 %v689
    %v875 = vunpack.c.h.b16 %v689
    %v876 = vunpack.c.l.b16 %v690
    %v877 = vunpack.c.h.b16 %v690
    %v878 = vunpack.c.l.b16 %v691
    %v879 = vunpack.c.h.b16 %v691
    %v880 = vunpack.c.l.b16 %v692
    %v881 = vunpack.c.h.b16 %v692
    %v882 = vunpack.c.l.b16 %v693
    %v883 = vunpack.c.h.b16 %v693
    %v884 = vunpack.c.l.b16 %v694
    %v885 = vunpack.c.h.b16 %v694
    %v886 = vunpack.c.l.b16 %v695
    %v887 = vunpack.c.h.b16 %v695
    %v888 = vpack.c.b16 %v764, %v760
    %v889 = vpack.c.b16 %v765, %v761
    %v890 = vpack.c.b16 %v766, %v762
    %v891 = vpack.c.b16 %v767, %v763
    %v892 = vpack.c.b16 %v772, %v768
    %v893 = vpack.c.b16 %v773, %v769
    %v894 = vpack.c.b16 %v774, %v770
    %v895 = vpack.c.b16 %v775, %v771
    %v896 = vpack.c.b16 %v780, %v776
    %v897 = vpack.c.b16 %v781, %v777
    %v898 = vpack.c.b16 %v782, %v778
    %v899 = vpack.c.b16 %v783, %v779
    %v900 = vpack.c.b16 %v788, %v784
    %v901 = vpack.c.b16 %v789, %v785
    %v902 = vpack.c.b16 %v790, %v786
    %v903 = vpack.c.b16 %v791, %v787
    %v904 = vpack.c.b16 %v796, %v792
    %v905 = vpack.c.b16 %v797, %v793
    %v906 = vpack.c.b16 %v798, %v794
    %v907 = vpack.c.b16 %v799, %v795
    %v908 = vpack.c.b16 %v804, %v800
    %v909 = vpack.c.b16 %v805, %v801
    %v910 = vpack.c.b16 %v806, %v802
    %v911 = vpack.c.b16 %v807, %v803
    %v912 = vpack.c.b16 %v812, %v808
    %v913 = vpack.c.b16 %v813, %v809
    %v914 = vpack.c.b16 %v814, %v810
    %v915 = vpack.c.b16 %v815, %v811
    %v916 = vpack.c.b16 %v820, %v816
    %v917 = vpack.c.b16 %v821, %v817
    %v918 = vpack.c.b16 %v822, %v818
    %v919 = vpack.c.b16 %v823, %v819
    %v920 = vpack.c.b16 %v828, %v824
    %v921 = vpack.c.b16 %v829, %v825
    %v922 = vpack.c.b16 %v830, %v826
    %v923 = vpack.c.b16 %v831, %v827
    %v924 = vpack.c.b16 %v836, %v832
    %v925 = vpack.c.b16 %v837, %v833
    %v926 = vpack.c.b16 %v838, %v834
    %v927 = vpack.c.b16 %v839, %v835
    %v928 = vpack.c.b16 %v844, %v840
    %v929 = vpack.c.b16 %v845, %v841
    %v930 = vpack.c.b16 %v846, %v842
    %v931 = vpack.c.b16 %v847, %v843
    %v932 = vpack.c.b16 %v852, %v848
    %v933 = vpack.c.b16 %v853, %v849
    %v934 = vpack.c.b16 %v854, %v850
    %v935 = vpack.c.b16 %v855, %v851
    %v936 = vpack.c.b16 %v860, %v856
    %v937 = vpack.c.b16 %v861, %v857
    %v938 = vpack.c.b16 %v862, %v858
    %v939 = vpack.c.b16 %v863, %v859
    %v940 = vpack.c.b16 %v868, %v864
    %v941 = vpack.c.b16 %v869, %v865
    %v942 = vpack.c.b16 %v870, %v866
    %v943 = vpack.c.b16 %v871, %v867
    %v944 = vpack.c.b16 %v876, %v872
    %v945 = vpack.c.b16 %v877, %v873
    %v946 = vpack.c.b16 %v878, %v874
    %v947 = vpack.c.b16 %v879, %v875
    %v948 = vpack.c.b16 %v884, %v880
    %v949 = vpack.c.b16 %v885, %v881
    %v950 = vpack.c.b16 %v886, %v882
    %v951 = vpack.c.b16 %v887, %v883
    %1016 = vmatpush.bf16.msra.mxu0 %v916
    %1017 = vmatpush.bf16.msra.mxu0 %v912
    %1018 = vmatpush.bf16.msra.mxu0 %v908
    %1019 = vmatpush.bf16.msra.mxu0 %v904
    %1020 = vmatpush.bf16.msra.mxu0 %v900
    %1021 = vmatpush.bf16.msra.mxu0 %v896
    %1022 = vmatpush.bf16.msra.mxu0 %v892
    %1023 = vmatpush.bf16.msra.mxu0 %v888
    %1024 = vmatmul.bf16.gmra.mxu0 %v630
    %v1025 = vpop.f32.mrf.mxu0
    %v1026 = vadd.f32 0.0, %v1025
    %v1027 = vpop.f32.mrf.mxu0
    %1028 = vdwg.mxu0
    %1029 = vmatpush.bf16.msra.mxu0 %v948
    %1030 = vmatpush.bf16.msra.mxu0 %v944
    %1031 = vmatpush.bf16.msra.mxu0 %v940
    %1032 = vmatpush.bf16.msra.mxu0 %v936
    %1033 = vmatpush.bf16.msra.mxu0 %v932
    %1034 = vmatpush.bf16.msra.mxu0 %v928
    %1035 = vmatpush.bf16.msra.mxu0 %v924
    %1036 = vmatpush.bf16.msra.mxu0 %v920
    %1037 = vmatmul.bf16.gmra.mxu0 0
    %v1038 = vpop.f32.mrf.mxu0
    %v1039 = vadd.f32 %v1026, %v1038
    %v1040 = vpop.f32.mrf.mxu0
    %1041 = vdwg.mxu0
    %1042 = vmatpush.bf16.msra.mxu0 %v917
    %1043 = vmatpush.bf16.msra.mxu0 %v913
    %1044 = vmatpush.bf16.msra.mxu0 %v909
    %1045 = vmatpush.bf16.msra.mxu0 %v905
    %1046 = vmatpush.bf16.msra.mxu0 %v901
    %1047 = vmatpush.bf16.msra.mxu0 %v897
    %1048 = vmatpush.bf16.msra.mxu0 %v893
    %1049 = vmatpush.bf16.msra.mxu0 %v889
    %1050 = vmatmul.bf16.gmra.mxu0 %v630
    %v1051 = vpop.f32.mrf.mxu0
    %v1052 = vadd.f32 0.0, %v1051
    %v1053 = vpop.f32.mrf.mxu0
    %1054 = vdwg.mxu0
    %1055 = vmatpush.bf16.msra.mxu0 %v949
    %1056 = vmatpush.bf16.msra.mxu0 %v945
    %1057 = vmatpush.bf16.msra.mxu0 %v941
    %1058 = vmatpush.bf16.msra.mxu0 %v937
    %1059 = vmatpush.bf16.msra.mxu0 %v933
    %1060 = vmatpush.bf16.msra.mxu0 %v929
    %1061 = vmatpush.bf16.msra.mxu0 %v925
    %1062 = vmatpush.bf16.msra.mxu0 %v921
    %1063 = vmatmul.bf16.gmra.mxu0 0
    %v1064 = vpop.f32.mrf.mxu0
    %v1065 = vadd.f32 %v1052, %v1064
    %v1066 = vpop.f32.mrf.mxu0
    %1067 = vdwg.mxu0
    %1068 = vmatpush.bf16.msra.mxu0 %v918
    %1069 = vmatpush.bf16.msra.mxu0 %v914
    %1070 = vmatpush.bf16.msra.mxu0 %v910
    %1071 = vmatpush.bf16.msra.mxu0 %v906
    %1072 = vmatpush.bf16.msra.mxu0 %v902
    %1073 = vmatpush.bf16.msra.mxu0 %v898
    %1074 = vmatpush.bf16.msra.mxu0 %v894
    %1075 = vmatpush.bf16.msra.mxu0 %v890
    %1076 = vmatmul.bf16.gmra.mxu0 %v630
    %v1077 = vpop.f32.mrf.mxu0
    %v1078 = vadd.f32 0.0, %v1077
    %v1079 = vpop.f32.mrf.mxu0
    %1080 = vdwg.mxu0
    %1081 = vmatpush.bf16.msra.mxu0 %v950
    %1082 = vmatpush.bf16.msra.mxu0 %v946
    %1083 = vmatpush.bf16.msra.mxu0 %v942
    %1084 = vmatpush.bf16.msra.mxu0 %v938
    %1085 = vmatpush.bf16.msra.mxu0 %v934
    %1086 = vmatpush.bf16.msra.mxu0 %v930
    %1087 = vmatpush.bf16.msra.mxu0 %v926
    %1088 = vmatpush.bf16.msra.mxu0 %v922
    %1089 = vmatmul.bf16.gmra.mxu0 0
    %v1090 = vpop.f32.mrf.mxu0
    %v1091 = vadd.f32 %v1078, %v1090
    %v1092 = vpop.f32.mrf.mxu0
    %1093 = vdwg.mxu0
    %1094 = vmatpush.bf16.msra.mxu0 %v919
    %1095 = vmatpush.bf16.msra.mxu0 %v915
    %1096 = vmatpush.bf16.msra.mxu0 %v911
    %1097 = vmatpush.bf16.msra.mxu0 %v907
    %1098 = vmatpush.bf16.msra.mxu0 %v903
    %1099 = vmatpush.bf16.msra.mxu0 %v899
    %1100 = vmatpush.bf16.msra.mxu0 %v895
    %1101 = vmatpush.bf16.msra.mxu0 %v891
    %1102 = vmatmul.bf16.gmra.mxu0 %v630
    %v1103 = vpop.f32.mrf.mxu0
    %v1104 = vadd.f32 0.0, %v1103
    %v1105 = vpop.f32.mrf.mxu0
    %1106 = vdwg.mxu0
    %1107 = vmatpush.bf16.msra.mxu0 %v951
    %1108 = vmatpush.bf16.msra.mxu0 %v947
    %1109 = vmatpush.bf16.msra.mxu0 %v943
    %1110 = vmatpush.bf16.msra.mxu0 %v939
    %1111 = vmatpush.bf16.msra.mxu0 %v935
    %1112 = vmatpush.bf16.msra.mxu0 %v931
    %1113 = vmatpush.bf16.msra.mxu0 %v927
    %1114 = vmatpush.bf16.msra.mxu0 %v923
    %1115 = vmatmul.bf16.gmra.mxu0 0
    %v1116 = vpop.f32.mrf.mxu0
    %v1117 = vadd.f32 %v1104, %v1116
    %v1118 = vpop.f32.mrf.mxu0
    %1119 = vdwg.mxu0
    %v1121 = vperm.slane %v631, 0
    %v1122 = vperm.slane %v631, 1
    %v1123 = vperm.slane %v631, 2
    %v1124 = vperm.slane %v631, 3
    %v1129 = vadd.f32 %v1121, %v1039
    %v1130 = vadd.f32 %v1122, %v1065
    %v1131 = vadd.f32 %v1123, %v1091
    %v1132 = vadd.f32 %v1124, %v1117
    %v1133 = vxor.u32 %v1129, 2147483648
    %v1134 = vxor.u32 %v1130, 2147483648
    %v1135 = vxor.u32 %v1131, 2147483648
    %v1136 = vmul.f32 %v1133, 1.442695
    %v1137 = vpow.pop %v1136
    %v1138 = vmul.f32 %v1134, 1.442695
    %v1139 = vpow.pop %v1138
    %v1140 = vmul.f32 %v1135, 1.442695
    %v1141 = vpow.pop %v1140
    %v1142 = vadd.f32 %v1137, 1.0
    %v1143 = vadd.f32 %v1139, 1.0
    %v1144 = vadd.f32 %v1141, 1.0
    %v1145 = vrcp.pop %v1142
    %v1146 = vmul.f32 %v1142, %v1145
    %v1147 = vsub.f32 1.0, %v1146
    %v1148 = vmul.f32 %v1145, %v1147
    %v1149 = vadd.f32 %v1145, %v1148
    %vm1150 = vweird.f32 %v1142
    %vm1151 = vweird.f32 %v1145
    %vm1152 = vmor %vm1150, %vm1151
    %v1153 = vsel %vm1152, %v1145, %v1149
    %v1154 = vand.u32 2147483647, %v1142
    %vm1155 = vcmp.eq.f32.partialorder %v1154, 8.507059e+37
    %v1156 = vand.u32 %v1142, 2147483648
    %v1157 = vor.u32 1.1754944e-38, %v1156
    %v1158 = vsel %vm1155, %v1157, %v1153
    %v1159 = vmul.f32 1.0, %v1158
    %v1160 = vrcp.pop %v1143
    %v1161 = vmul.f32 %v1143, %v1160
    %v1162 = vsub.f32 1.0, %v1161
    %v1163 = vmul.f32 %v1160, %v1162
    %v1164 = vadd.f32 %v1160, %v1163
    %vm1165 = vweird.f32 %v1143
    %vm1166 = vweird.f32 %v1160
    %vm1167 = vmor %vm1165, %vm1166
    %v1168 = vsel %vm1167, %v1160, %v1164
    %v1169 = vand.u32 2147483647, %v1143
    %vm1170 = vcmp.eq.f32.partialorder %v1169, 8.507059e+37
    %v1171 = vand.u32 %v1143, 2147483648
    %v1172 = vor.u32 1.1754944e-38, %v1171
    %v1173 = vsel %vm1170, %v1172, %v1168
    %v1174 = vmul.f32 1.0, %v1173
    %v1175 = vrcp.pop %v1144
    %v1176 = vmul.f32 %v1144, %v1175
    %v1177 = vsub.f32 1.0, %v1176
    %v1178 = vmul.f32 %v1175, %v1177
    %v1179 = vadd.f32 %v1175, %v1178
    %vm1180 = vweird.f32 %v1144
    %vm1181 = vweird.f32 %v1175
    %vm1182 = vmor %vm1180, %vm1181
    %v1183 = vsel %vm1182, %v1175, %v1179
    %v1184 = vand.u32 2147483647, %v1144
    %vm1185 = vcmp.eq.f32.partialorder %v1184, 8.507059e+37
    %v1186 = vand.u32 %v1144, 2147483648
    %v1187 = vor.u32 1.1754944e-38, %v1186
    %v1188 = vsel %vm1185, %v1187, %v1183
    %v1189 = vmul.f32 1.0, %v1188
    %v1190 = vtanh.pop %v1132
    %v1191 = vmul.f32 %v1174, 0.0
    %v1192 = vmul.f32 %v1159, %v1190
    %v1193 = vadd.f32 %v1191, %v1192
    %v1194 = vtanh.pop %v1193
    %v1195 = vmul.f32 %v1189, %v1194
    %s1196 = smul.u32 1, 4
    %s1197 = smul.addr %s1196, 8
    %s1198 = scalar_lea.vmem [#allocation2], %s1197
    %v1199 = vld [vmem:[%s1198] sm:$0xff]
    %v1200 = vld [vmem:[%s1198 + $0x8] sm:$0xff]
    %v1201 = vld [vmem:[%s1198 + $0x10] sm:$0xff]
    %v1202 = vld [vmem:[%s1198 + $0x18] sm:$0xff]
    %1203 = vmatpush.bf16.msra.mxu0 %v475
    %1204 = vmatpush.bf16.msra.mxu0 %v471
    %1205 = vmatpush.bf16.msra.mxu0 %v467
    %1206 = vmatpush.bf16.msra.mxu0 %v463
    %1207 = vmatpush.bf16.msra.mxu0 %v459
    %1208 = vmatpush.bf16.msra.mxu0 %v455
    %1209 = vmatpush.bf16.msra.mxu0 %v451
    %1210 = vmatpush.bf16.msra.mxu0 %v447
    %1211 = vmatmul.bf16.gmra.mxu0 %v630
    %v1212 = vpop.f32.mrf.mxu0
    %v1213 = vadd.f32 0.0, %v1212
    %v1214 = vpop.f32.mrf.mxu0
    %1215 = vdwg.mxu0
    %1216 = vmatpush.bf16.msra.mxu0 %v476
    %1217 = vmatpush.bf16.msra.mxu0 %v472
    %1218 = vmatpush.bf16.msra.mxu0 %v468
    %1219 = vmatpush.bf16.msra.mxu0 %v464
    %1220 = vmatpush.bf16.msra.mxu0 %v460
    %1221 = vmatpush.bf16.msra.mxu0 %v456
    %1222 = vmatpush.bf16.msra.mxu0 %v452
    %1223 = vmatpush.bf16.msra.mxu0 %v448
    %1224 = vmatmul.bf16.gmra.mxu0 %v630
    %v1225 = vpop.f32.mrf.mxu0
    %v1226 = vadd.f32 0.0, %v1225
    %v1227 = vpop.f32.mrf.mxu0
    %1228 = vdwg.mxu0
    %1229 = vmatpush.bf16.msra.mxu0 %v477
    %1230 = vmatpush.bf16.msra.mxu0 %v473
    %1231 = vmatpush.bf16.msra.mxu0 %v469
    %1232 = vmatpush.bf16.msra.mxu0 %v465
    %1233 = vmatpush.bf16.msra.mxu0 %v461
    %1234 = vmatpush.bf16.msra.mxu0 %v457
    %1235 = vmatpush.bf16.msra.mxu0 %v453
    %1236 = vmatpush.bf16.msra.mxu0 %v449
    %1237 = vmatmul.bf16.gmra.mxu0 %v630
    %v1238 = vpop.f32.mrf.mxu0
    %v1239 = vadd.f32 0.0, %v1238
    %v1240 = vpop.f32.mrf.mxu0
    %1241 = vdwg.mxu0
    %1242 = vmatpush.bf16.msra.mxu0 %v478
    %1243 = vmatpush.bf16.msra.mxu0 %v474
    %1244 = vmatpush.bf16.msra.mxu0 %v470
    %1245 = vmatpush.bf16.msra.mxu0 %v466
    %1246 = vmatpush.bf16.msra.mxu0 %v462
    %1247 = vmatpush.bf16.msra.mxu0 %v458
    %1248 = vmatpush.bf16.msra.mxu0 %v454
    %1249 = vmatpush.bf16.msra.mxu0 %v450
    %1250 = vmatmul.bf16.gmra.mxu0 %v630
    %v1251 = vpop.f32.mrf.mxu0
    %v1252 = vadd.f32 0.0, %v1251
    %v1253 = vpop.f32.mrf.mxu0
    %1254 = vdwg.mxu0
    %v1255 = vadd.f32 %v1199, %v1213
    %v1256 = vadd.f32 %v1200, %v1226
    %v1257 = vadd.f32 %v1201, %v1239
    %v1258 = vadd.f32 %v1202, %v1252
    %v1259 = vxor.u32 %v1255, 2147483648
    %v1260 = vxor.u32 %v1256, 2147483648
    %v1261 = vxor.u32 %v1257, 2147483648
    %v1262 = vmul.f32 %v1259, 1.442695
    %v1263 = vpow.pop %v1262
    %v1264 = vmul.f32 %v1260, 1.442695
    %v1265 = vpow.pop %v1264
    %v1266 = vmul.f32 %v1261, 1.442695
    %v1267 = vpow.pop %v1266
    %v1268 = vadd.f32 %v1263, 1.0
    %v1269 = vadd.f32 %v1265, 1.0
    %v1270 = vadd.f32 %v1267, 1.0
    %v1271 = vrcp.pop %v1268
    %v1272 = vmul.f32 %v1268, %v1271
    %v1273 = vsub.f32 1.0, %v1272
    %v1274 = vmul.f32 %v1271, %v1273
    %v1275 = vadd.f32 %v1271, %v1274
    %vm1276 = vweird.f32 %v1268
    %vm1277 = vweird.f32 %v1271
    %vm1278 = vmor %vm1276, %vm1277
    %v1279 = vsel %vm1278, %v1271, %v1275
    %v1280 = vand.u32 2147483647, %v1268
    %vm1281 = vcmp.eq.f32.partialorder %v1280, 8.507059e+37
    %v1282 = vand.u32 %v1268, 2147483648
    %v1283 = vor.u32 1.1754944e-38, %v1282
    %v1284 = vsel %vm1281, %v1283, %v1279
    %v1285 = vmul.f32 1.0, %v1284
    %v1286 = vrcp.pop %v1269
    %v1287 = vmul.f32 %v1269, %v1286
    %v1288 = vsub.f32 1.0, %v1287
    %v1289 = vmul.f32 %v1286, %v1288
    %v1290 = vadd.f32 %v1286, %v1289
    %vm1291 = vweird.f32 %v1269
    %vm1292 = vweird.f32 %v1286
    %vm1293 = vmor %vm1291, %vm1292
    %v1294 = vsel %vm1293, %v1286, %v1290
    %v1295 = vand.u32 2147483647, %v1269
    %vm1296 = vcmp.eq.f32.partialorder %v1295, 8.507059e+37
    %v1297 = vand.u32 %v1269, 2147483648
    %v1298 = vor.u32 1.1754944e-38, %v1297
    %v1299 = vsel %vm1296, %v1298, %v1294
    %v1300 = vmul.f32 1.0, %v1299
    %v1301 = vrcp.pop %v1270
    %v1302 = vmul.f32 %v1270, %v1301
    %v1303 = vsub.f32 1.0, %v1302
    %v1304 = vmul.f32 %v1301, %v1303
    %v1305 = vadd.f32 %v1301, %v1304
    %vm1306 = vweird.f32 %v1270
    %vm1307 = vweird.f32 %v1301
    %vm1308 = vmor %vm1306, %vm1307
    %v1309 = vsel %vm1308, %v1301, %v1305
    %v1310 = vand.u32 2147483647, %v1270
    %vm1311 = vcmp.eq.f32.partialorder %v1310, 8.507059e+37
    %v1312 = vand.u32 %v1270, 2147483648
    %v1313 = vor.u32 1.1754944e-38, %v1312
    %v1314 = vsel %vm1311, %v1313, %v1309
    %v1315 = vmul.f32 1.0, %v1314
    %v1316 = vtanh.pop %v1258
    %v1317 = vmul.f32 %v1300, %v627
    %v1318 = vmul.f32 %v1285, %v1316
    %v1319 = vadd.f32 %v1317, %v1318
    %v1320 = vtanh.pop %v1319
    %v1321 = vmul.f32 %v1315, %v1320
    %v1322 = vpack.c.bf16 %v1321, %v1321
    %v1323 = vpack.c.bf16 %v1195, %v1195
    %1324 = vmatpush.bf16.msra.mxu0 %v916
    %1325 = vmatpush.bf16.msra.mxu0 %v912
    %1326 = vmatpush.bf16.msra.mxu0 %v908
    %1327 = vmatpush.bf16.msra.mxu0 %v904
    %1328 = vmatpush.bf16.msra.mxu0 %v900
    %1329 = vmatpush.bf16.msra.mxu0 %v896
    %1330 = vmatpush.bf16.msra.mxu0 %v892
    %1331 = vmatpush.bf16.msra.mxu0 %v888
    %1332 = vmatmul.bf16.gmra.mxu0 %v1322
    %v1333 = vpop.f32.mrf.mxu0
    %v1334 = vadd.f32 0.0, %v1333
    %v1335 = vpop.f32.mrf.mxu0
    %1336 = vdwg.mxu0
    %1337 = vmatpush.bf16.msra.mxu0 %v948
    %1338 = vmatpush.bf16.msra.mxu0 %v944
    %1339 = vmatpush.bf16.msra.mxu0 %v940
    %1340 = vmatpush.bf16.msra.mxu0 %v936
    %1341 = vmatpush.bf16.msra.mxu0 %v932
    %1342 = vmatpush.bf16.msra.mxu0 %v928
    %1343 = vmatpush.bf16.msra.mxu0 %v924
    %1344 = vmatpush.bf16.msra.mxu0 %v920
    %1345 = vmatmul.bf16.gmra.mxu0 %v1323
    %v1346 = vpop.f32.mrf.mxu0
    %v1347 = vadd.f32 %v1334, %v1346
    %v1348 = vpop.f32.mrf.mxu0
    %1349 = vdwg.mxu0
    %1350 = vmatpush.bf16.msra.mxu0 %v917
    %1351 = vmatpush.bf16.msra.mxu0 %v913
    %1352 = vmatpush.bf16.msra.mxu0 %v909
    %1353 = vmatpush.bf16.msra.mxu0 %v905
    %1354 = vmatpush.bf16.msra.mxu0 %v901
    %1355 = vmatpush.bf16.msra.mxu0 %v897
    %1356 = vmatpush.bf16.msra.mxu0 %v893
    %1357 = vmatpush.bf16.msra.mxu0 %v889
    %1358 = vmatmul.bf16.gmra.mxu0 %v1322
    %v1359 = vpop.f32.mrf.mxu0
    %v1360 = vadd.f32 0.0, %v1359
    %v1361 = vpop.f32.mrf.mxu0
    %1362 = vdwg.mxu0
    %1363 = vmatpush.bf16.msra.mxu0 %v949
    %1364 = vmatpush.bf16.msra.mxu0 %v945
    %1365 = vmatpush.bf16.msra.mxu0 %v941
    %1366 = vmatpush.bf16.msra.mxu0 %v937
    %1367 = vmatpush.bf16.msra.mxu0 %v933
    %1368 = vmatpush.bf16.msra.mxu0 %v929
    %1369 = vmatpush.bf16.msra.mxu0 %v925
    %1370 = vmatpush.bf16.msra.mxu0 %v921
    %1371 = vmatmul.bf16.gmra.mxu0 %v1323
    %v1372 = vpop.f32.mrf.mxu0
    %v1373 = vadd.f32 %v1360, %v1372
    %v1374 = vpop.f32.mrf.mxu0
    %1375 = vdwg.mxu0
    %1376 = vmatpush.bf16.msra.mxu0 %v918
    %1377 = vmatpush.bf16.msra.mxu0 %v914
    %1378 = vmatpush.bf16.msra.mxu0 %v910
    %1379 = vmatpush.bf16.msra.mxu0 %v906
    %1380 = vmatpush.bf16.msra.mxu0 %v902
    %1381 = vmatpush.bf16.msra.mxu0 %v898
    %1382 = vmatpush.bf16.msra.mxu0 %v894
    %1383 = vmatpush.bf16.msra.mxu0 %v890
    %1384 = vmatmul.bf16.gmra.mxu0 %v1322
    %v1385 = vpop.f32.mrf.mxu0
    %v1386 = vadd.f32 0.0, %v1385
    %v1387 = vpop.f32.mrf.mxu0
    %1388 = vdwg.mxu0
    %1389 = vmatpush.bf16.msra.mxu0 %v950
    %1390 = vmatpush.bf16.msra.mxu0 %v946
    %1391 = vmatpush.bf16.msra.mxu0 %v942
    %1392 = vmatpush.bf16.msra.mxu0 %v938
    %1393 = vmatpush.bf16.msra.mxu0 %v934
    %1394 = vmatpush.bf16.msra.mxu0 %v930
    %1395 = vmatpush.bf16.msra.mxu0 %v926
    %1396 = vmatpush.bf16.msra.mxu0 %v922
    %1397 = vmatmul.bf16.gmra.mxu0 %v1323
    %v1398 = vpop.f32.mrf.mxu0
    %v1399 = vadd.f32 %v1386, %v1398
    %v1400 = vpop.f32.mrf.mxu0
    %1401 = vdwg.mxu0
    %1402 = vmatpush.bf16.msra.mxu0 %v919
    %1403 = vmatpush.bf16.msra.mxu0 %v915
    %1404 = vmatpush.bf16.msra.mxu0 %v911
    %1405 = vmatpush.bf16.msra.mxu0 %v907
    %1406 = vmatpush.bf16.msra.mxu0 %v903
    %1407 = vmatpush.bf16.msra.mxu0 %v899
    %1408 = vmatpush.bf16.msra.mxu0 %v895
    %1409 = vmatpush.bf16.msra.mxu0 %v891
    %1410 = vmatmul.bf16.gmra.mxu0 %v1322
    %v1411 = vpop.f32.mrf.mxu0
    %v1412 = vadd.f32 0.0, %v1411
    %v1413 = vpop.f32.mrf.mxu0
    %1414 = vdwg.mxu0
    %1415 = vmatpush.bf16.msra.mxu0 %v951
    %1416 = vmatpush.bf16.msra.mxu0 %v947
    %1417 = vmatpush.bf16.msra.mxu0 %v943
    %1418 = vmatpush.bf16.msra.mxu0 %v939
    %1419 = vmatpush.bf16.msra.mxu0 %v935
    %1420 = vmatpush.bf16.msra.mxu0 %v931
    %1421 = vmatpush.bf16.msra.mxu0 %v927
    %1422 = vmatpush.bf16.msra.mxu0 %v923
    %1423 = vmatmul.bf16.gmra.mxu0 %v1323
    %v1424 = vpop.f32.mrf.mxu0
    %v1425 = vadd.f32 %v1412, %v1424
    %v1426 = vpop.f32.mrf.mxu0
    %1427 = vdwg.mxu0
    %v1428 = vadd.f32 %v1121, %v1347
    %v1429 = vadd.f32 %v1122, %v1373
    %v1430 = vadd.f32 %v1123, %v1399
    %v1431 = vadd.f32 %v1124, %v1425
    %v1432 = vxor.u32 %v1428, 2147483648
    %v1433 = vxor.u32 %v1429, 2147483648
    %v1434 = vxor.u32 %v1430, 2147483648
    %v1435 = vmul.f32 %v1432, 1.442695
    %v1436 = vpow.pop %v1435
    %v1437 = vmul.f32 %v1433, 1.442695
    %v1438 = vpow.pop %v1437
    %v1439 = vmul.f32 %v1434, 1.442695
    %v1440 = vpow.pop %v1439
    %v1441 = vadd.f32 %v1436, 1.0
    %v1442 = vadd.f32 %v1438, 1.0
    %v1443 = vadd.f32 %v1440, 1.0
    %v1444 = vrcp.pop %v1441
    %v1445 = vmul.f32 %v1441, %v1444
    %v1446 = vsub.f32 1.0, %v1445
    %v1447 = vmul.f32 %v1444, %v1446
    %v1448 = vadd.f32 %v1444, %v1447
    %vm1449 = vweird.f32 %v1441
    %vm1450 = vweird.f32 %v1444
    %vm1451 = vmor %vm1449, %vm1450
    %v1452 = vsel %vm1451, %v1444, %v1448
    %v1453 = vand.u32 2147483647, %v1441
    %vm1454 = vcmp.eq.f32.partialorder %v1453, 8.507059e+37
    %v1455 = vand.u32 %v1441, 2147483648
    %v1456 = vor.u32 1.1754944e-38, %v1455
    %v1457 = vsel %vm1454, %v1456, %v1452
    %v1458 = vmul.f32 1.0, %v1457
    %v1459 = vrcp.pop %v1442
    %v1460 = vmul.f32 %v1442, %v1459
    %v1461 = vsub.f32 1.0, %v1460
    %v1462 = vmul.f32 %v1459, %v1461
    %v1463 = vadd.f32 %v1459, %v1462
    %vm1464 = vweird.f32 %v1442
    %vm1465 = vweird.f32 %v1459
    %vm1466 = vmor %vm1464, %vm1465
    %v1467 = vsel %vm1466, %v1459, %v1463
    %v1468 = vand.u32 2147483647, %v1442
    %vm1469 = vcmp.eq.f32.partialorder %v1468, 8.507059e+37
    %v1470 = vand.u32 %v1442, 2147483648
    %v1471 = vor.u32 1.1754944e-38, %v1470
    %v1472 = vsel %vm1469, %v1471, %v1467
    %v1473 = vmul.f32 1.0, %v1472
    %v1474 = vrcp.pop %v1443
    %v1475 = vmul.f32 %v1443, %v1474
    %v1476 = vsub.f32 1.0, %v1475
    %v1477 = vmul.f32 %v1474, %v1476
    %v1478 = vadd.f32 %v1474, %v1477
    %vm1479 = vweird.f32 %v1443
    %vm1480 = vweird.f32 %v1474
    %vm1481 = vmor %vm1479, %vm1480
    %v1482 = vsel %vm1481, %v1474, %v1478
    %v1483 = vand.u32 2147483647, %v1443
    %vm1484 = vcmp.eq.f32.partialorder %v1483, 8.507059e+37
    %v1485 = vand.u32 %v1443, 2147483648
    %v1486 = vor.u32 1.1754944e-38, %v1485
    %v1487 = vsel %vm1484, %v1486, %v1482
    %v1488 = vmul.f32 1.0, %v1487
    %v1489 = vtanh.pop %v1431
    %v1490 = vmul.f32 %v1473, %v1193
    %v1491 = vmul.f32 %v1458, %v1489
    %v1492 = vadd.f32 %v1490, %v1491
    %v1493 = vtanh.pop %v1492
    %v1494 = vmul.f32 %v1488, %v1493
    %s1495 = smul.u32 2, 4
    %s1496 = smul.addr %s1495, 8
    %s1497 = scalar_lea.vmem [#allocation2], %s1496
    %v1498 = vld [vmem:[%s1497] sm:$0xff]
    %v1499 = vld [vmem:[%s1497 + $0x8] sm:$0xff]
    %v1500 = vld [vmem:[%s1497 + $0x10] sm:$0xff]
    %v1501 = vld [vmem:[%s1497 + $0x18] sm:$0xff]
    %1502 = vmatpush.bf16.msra.mxu0 %v475
    %1503 = vmatpush.bf16.msra.mxu0 %v471
    %1504 = vmatpush.bf16.msra.mxu0 %v467
    %1505 = vmatpush.bf16.msra.mxu0 %v463
    %1506 = vmatpush.bf16.msra.mxu0 %v459
    %1507 = vmatpush.bf16.msra.mxu0 %v455
    %1508 = vmatpush.bf16.msra.mxu0 %v451
    %1509 = vmatpush.bf16.msra.mxu0 %v447
    %1510 = vmatmul.bf16.gmra.mxu0 %v1322
    %v1511 = vpop.f32.mrf.mxu0
    %v1512 = vadd.f32 0.0, %v1511
    %v1513 = vpop.f32.mrf.mxu0
    %1514 = vdwg.mxu0
    %1515 = vmatpush.bf16.msra.mxu0 %v476
    %1516 = vmatpush.bf16.msra.mxu0 %v472
    %1517 = vmatpush.bf16.msra.mxu0 %v468
    %1518 = vmatpush.bf16.msra.mxu0 %v464
    %1519 = vmatpush.bf16.msra.mxu0 %v460
    %1520 = vmatpush.bf16.msra.mxu0 %v456
    %1521 = vmatpush.bf16.msra.mxu0 %v452
    %1522 = vmatpush.bf16.msra.mxu0 %v448
    %1523 = vmatmul.bf16.gmra.mxu0 %v1322
    %v1524 = vpop.f32.mrf.mxu0
    %v1525 = vadd.f32 0.0, %v1524
    %v1526 = vpop.f32.mrf.mxu0
    %1527 = vdwg.mxu0
    %1528 = vmatpush.bf16.msra.mxu0 %v477
    %1529 = vmatpush.bf16.msra.mxu0 %v473
    %1530 = vmatpush.bf16.msra.mxu0 %v469
    %1531 = vmatpush.bf16.msra.mxu0 %v465
    %1532 = vmatpush.bf16.msra.mxu0 %v461
    %1533 = vmatpush.bf16.msra.mxu0 %v457
    %1534 = vmatpush.bf16.msra.mxu0 %v453
    %1535 = vmatpush.bf16.msra.mxu0 %v449
    %1536 = vmatmul.bf16.gmra.mxu0 %v1322
    %v1537 = vpop.f32.mrf.mxu0
    %v1538 = vadd.f32 0.0, %v1537
    %v1539 = vpop.f32.mrf.mxu0
    %1540 = vdwg.mxu0
    %1541 = vmatpush.bf16.msra.mxu0 %v478
    %1542 = vmatpush.bf16.msra.mxu0 %v474
    %1543 = vmatpush.bf16.msra.mxu0 %v470
    %1544 = vmatpush.bf16.msra.mxu0 %v466
    %1545 = vmatpush.bf16.msra.mxu0 %v462
    %1546 = vmatpush.bf16.msra.mxu0 %v458
    %1547 = vmatpush.bf16.msra.mxu0 %v454
    %1548 = vmatpush.bf16.msra.mxu0 %v450
    %1549 = vmatmul.bf16.gmra.mxu0 %v1322
    %v1550 = vpop.f32.mrf.mxu0
    %v1551 = vadd.f32 0.0, %v1550
    %v1552 = vpop.f32.mrf.mxu0
    %1553 = vdwg.mxu0
    %v1554 = vadd.f32 %v1498, %v1512
    %v1555 = vadd.f32 %v1499, %v1525
    %v1556 = vadd.f32 %v1500, %v1538
    %v1557 = vadd.f32 %v1501, %v1551
    %v1558 = vxor.u32 %v1554, 2147483648
    %v1559 = vxor.u32 %v1555, 2147483648
    %v1560 = vxor.u32 %v1556, 2147483648
    %v1561 = vmul.f32 %v1558, 1.442695
    %v1562 = vpow.pop %v1561
    %v1563 = vmul.f32 %v1559, 1.442695
    %v1564 = vpow.pop %v1563
    %v1565 = vmul.f32 %v1560, 1.442695
    %v1566 = vpow.pop %v1565
    %v1567 = vadd.f32 %v1562, 1.0
    %v1568 = vadd.f32 %v1564, 1.0
    %v1569 = vadd.f32 %v1566, 1.0
    %v1570 = vrcp.pop %v1567
    %v1571 = vmul.f32 %v1567, %v1570
    %v1572 = vsub.f32 1.0, %v1571
    %v1573 = vmul.f32 %v1570, %v1572
    %v1574 = vadd.f32 %v1570, %v1573
    %vm1575 = vweird.f32 %v1567
    %vm1576 = vweird.f32 %v1570
    %vm1577 = vmor %vm1575, %vm1576
    %v1578 = vsel %vm1577, %v1570, %v1574
    %v1579 = vand.u32 2147483647, %v1567
    %vm1580 = vcmp.eq.f32.partialorder %v1579, 8.507059e+37
    %v1581 = vand.u32 %v1567, 2147483648
    %v1582 = vor.u32 1.1754944e-38, %v1581
    %v1583 = vsel %vm1580, %v1582, %v1578
    %v1584 = vmul.f32 1.0, %v1583
    %v1585 = vrcp.pop %v1568
    %v1586 = vmul.f32 %v1568, %v1585
    %v1587 = vsub.f32 1.0, %v1586
    %v1588 = vmul.f32 %v1585, %v1587
    %v1589 = vadd.f32 %v1585, %v1588
    %vm1590 = vweird.f32 %v1568
    %vm1591 = vweird.f32 %v1585
    %vm1592 = vmor %vm1590, %vm1591
    %v1593 = vsel %vm1592, %v1585, %v1589
    %v1594 = vand.u32 2147483647, %v1568
    %vm1595 = vcmp.eq.f32.partialorder %v1594, 8.507059e+37
    %v1596 = vand.u32 %v1568, 2147483648
    %v1597 = vor.u32 1.1754944e-38, %v1596
    %v1598 = vsel %vm1595, %v1597, %v1593
    %v1599 = vmul.f32 1.0, %v1598
    %v1600 = vrcp.pop %v1569
    %v1601 = vmul.f32 %v1569, %v1600
    %v1602 = vsub.f32 1.0, %v1601
    %v1603 = vmul.f32 %v1600, %v1602
    %v1604 = vadd.f32 %v1600, %v1603
    %vm1605 = vweird.f32 %v1569
    %vm1606 = vweird.f32 %v1600
    %vm1607 = vmor %vm1605, %vm1606
    %v1608 = vsel %vm1607, %v1600, %v1604
    %v1609 = vand.u32 2147483647, %v1569
    %vm1610 = vcmp.eq.f32.partialorder %v1609, 8.507059e+37
    %v1611 = vand.u32 %v1569, 2147483648
    %v1612 = vor.u32 1.1754944e-38, %v1611
    %v1613 = vsel %vm1610, %v1612, %v1608
    %v1614 = vmul.f32 1.0, %v1613
    %v1615 = vtanh.pop %v1557
    %v1616 = vmul.f32 %v1599, %v1319
    %v1617 = vmul.f32 %v1584, %v1615
    %v1618 = vadd.f32 %v1616, %v1617
    %v1619 = vtanh.pop %v1618
    %v1620 = vmul.f32 %v1614, %v1619
    %v1621 = vpack.c.bf16 %v1620, %v1620
    %v1622 = vpack.c.bf16 %v1494, %v1494
    %1623 = vmatpush.bf16.msra.mxu0 %v916
    %1624 = vmatpush.bf16.msra.mxu0 %v912
    %1625 = vmatpush.bf16.msra.mxu0 %v908
    %1626 = vmatpush.bf16.msra.mxu0 %v904
    %1627 = vmatpush.bf16.msra.mxu0 %v900
    %1628 = vmatpush.bf16.msra.mxu0 %v896
    %1629 = vmatpush.bf16.msra.mxu0 %v892
    %1630 = vmatpush.bf16.msra.mxu0 %v888
    %1631 = vmatmul.bf16.gmra.mxu0 %v1621
    %v1632 = vpop.f32.mrf.mxu0
    %v1633 = vadd.f32 0.0, %v1632
    %v1634 = vpop.f32.mrf.mxu0
    %1635 = vdwg.mxu0
    %1636 = vmatpush.bf16.msra.mxu0 %v948
    %1637 = vmatpush.bf16.msra.mxu0 %v944
    %1638 = vmatpush.bf16.msra.mxu0 %v940
    %1639 = vmatpush.bf16.msra.mxu0 %v936
    %1640 = vmatpush.bf16.msra.mxu0 %v932
    %1641 = vmatpush.bf16.msra.mxu0 %v928
    %1642 = vmatpush.bf16.msra.mxu0 %v924
    %1643 = vmatpush.bf16.msra.mxu0 %v920
    %1644 = vmatmul.bf16.gmra.mxu0 %v1622
    %v1645 = vpop.f32.mrf.mxu0
    %v1646 = vadd.f32 %v1633, %v1645
    %v1647 = vpop.f32.mrf.mxu0
    %1648 = vdwg.mxu0
    %1649 = vmatpush.bf16.msra.mxu0 %v917
    %1650 = vmatpush.bf16.msra.mxu0 %v913
    %1651 = vmatpush.bf16.msra.mxu0 %v909
    %1652 = vmatpush.bf16.msra.mxu0 %v905
    %1653 = vmatpush.bf16.msra.mxu0 %v901
    %1654 = vmatpush.bf16.msra.mxu0 %v897
    %1655 = vmatpush.bf16.msra.mxu0 %v893
    %1656 = vmatpush.bf16.msra.mxu0 %v889
    %1657 = vmatmul.bf16.gmra.mxu0 %v1621
    %v1658 = vpop.f32.mrf.mxu0
    %v1659 = vadd.f32 0.0, %v1658
    %v1660 = vpop.f32.mrf.mxu0
    %1661 = vdwg.mxu0
    %1662 = vmatpush.bf16.msra.mxu0 %v949
    %1663 = vmatpush.bf16.msra.mxu0 %v945
    %1664 = vmatpush.bf16.msra.mxu0 %v941
    %1665 = vmatpush.bf16.msra.mxu0 %v937
    %1666 = vmatpush.bf16.msra.mxu0 %v933
    %1667 = vmatpush.bf16.msra.mxu0 %v929
    %1668 = vmatpush.bf16.msra.mxu0 %v925
    %1669 = vmatpush.bf16.msra.mxu0 %v921
    %1670 = vmatmul.bf16.gmra.mxu0 %v1622
    %v1671 = vpop.f32.mrf.mxu0
    %v1672 = vadd.f32 %v1659, %v1671
    %v1673 = vpop.f32.mrf.mxu0
    %1674 = vdwg.mxu0
    %1675 = vmatpush.bf16.msra.mxu0 %v918
    %1676 = vmatpush.bf16.msra.mxu0 %v914
    %1677 = vmatpush.bf16.msra.mxu0 %v910
    %1678 = vmatpush.bf16.msra.mxu0 %v906
    %1679 = vmatpush.bf16.msra.mxu0 %v902
    %1680 = vmatpush.bf16.msra.mxu0 %v898
    %1681 = vmatpush.bf16.msra.mxu0 %v894
    %1682 = vmatpush.bf16.msra.mxu0 %v890
    %1683 = vmatmul.bf16.gmra.mxu0 %v1621
    %v1684 = vpop.f32.mrf.mxu0
    %v1685 = vadd.f32 0.0, %v1684
    %v1686 = vpop.f32.mrf.mxu0
    %1687 = vdwg.mxu0
    %1688 = vmatpush.bf16.msra.mxu0 %v950
    %1689 = vmatpush.bf16.msra.mxu0 %v946
    %1690 = vmatpush.bf16.msra.mxu0 %v942
    %1691 = vmatpush.bf16.msra.mxu0 %v938
    %1692 = vmatpush.bf16.msra.mxu0 %v934
    %1693 = vmatpush.bf16.msra.mxu0 %v930
    %1694 = vmatpush.bf16.msra.mxu0 %v926
    %1695 = vmatpush.bf16.msra.mxu0 %v922
    %1696 = vmatmul.bf16.gmra.mxu0 %v1622
    %v1697 = vpop.f32.mrf.mxu0
    %v1698 = vadd.f32 %v1685, %v1697
    %v1699 = vpop.f32.mrf.mxu0
    %1700 = vdwg.mxu0
    %1701 = vmatpush.bf16.msra.mxu0 %v919
    %1702 = vmatpush.bf16.msra.mxu0 %v915
    %1703 = vmatpush.bf16.msra.mxu0 %v911
    %1704 = vmatpush.bf16.msra.mxu0 %v907
    %1705 = vmatpush.bf16.msra.mxu0 %v903
    %1706 = vmatpush.bf16.msra.mxu0 %v899
    %1707 = vmatpush.bf16.msra.mxu0 %v895
    %1708 = vmatpush.bf16.msra.mxu0 %v891
    %1709 = vmatmul.bf16.gmra.mxu0 %v1621
    %v1710 = vpop.f32.mrf.mxu0
    %v1711 = vadd.f32 0.0, %v1710
    %v1712 = vpop.f32.mrf.mxu0
    %1713 = vdwg.mxu0
    %1714 = vmatpush.bf16.msra.mxu0 %v951
    %1715 = vmatpush.bf16.msra.mxu0 %v947
    %1716 = vmatpush.bf16.msra.mxu0 %v943
    %1717 = vmatpush.bf16.msra.mxu0 %v939
    %1718 = vmatpush.bf16.msra.mxu0 %v935
    %1719 = vmatpush.bf16.msra.mxu0 %v931
    %1720 = vmatpush.bf16.msra.mxu0 %v927
    %1721 = vmatpush.bf16.msra.mxu0 %v923
    %1722 = vmatmul.bf16.gmra.mxu0 %v1622
    %v1723 = vpop.f32.mrf.mxu0
    %v1724 = vadd.f32 %v1711, %v1723
    %v1725 = vpop.f32.mrf.mxu0
    %1726 = vdwg.mxu0
    %v1727 = vadd.f32 %v1121, %v1646
    %v1728 = vadd.f32 %v1122, %v1672
    %v1729 = vadd.f32 %v1123, %v1698
    %v1730 = vadd.f32 %v1124, %v1724
    %v1731 = vxor.u32 %v1727, 2147483648
    %v1732 = vxor.u32 %v1728, 2147483648
    %v1733 = vxor.u32 %v1729, 2147483648
    %v1734 = vmul.f32 %v1731, 1.442695
    %v1735 = vpow.pop %v1734
    %v1736 = vmul.f32 %v1732, 1.442695
    %v1737 = vpow.pop %v1736
    %v1738 = vmul.f32 %v1733, 1.442695
    %v1739 = vpow.pop %v1738
    %v1740 = vadd.f32 %v1735, 1.0
    %v1741 = vadd.f32 %v1737, 1.0
    %v1742 = vadd.f32 %v1739, 1.0
    %v1743 = vrcp.pop %v1740
    %v1744 = vmul.f32 %v1740, %v1743
    %v1745 = vsub.f32 1.0, %v1744
    %v1746 = vmul.f32 %v1743, %v1745
    %v1747 = vadd.f32 %v1743, %v1746
    %vm1748 = vweird.f32 %v1740
    %vm1749 = vweird.f32 %v1743
    %vm1750 = vmor %vm1748, %vm1749
    %v1751 = vsel %vm1750, %v1743, %v1747
    %v1752 = vand.u32 2147483647, %v1740
    %vm1753 = vcmp.eq.f32.partialorder %v1752, 8.507059e+37
    %v1754 = vand.u32 %v1740, 2147483648
    %v1755 = vor.u32 1.1754944e-38, %v1754
    %v1756 = vsel %vm1753, %v1755, %v1751
    %v1757 = vmul.f32 1.0, %v1756
    %v1758 = vrcp.pop %v1741
    %v1759 = vmul.f32 %v1741, %v1758
    %v1760 = vsub.f32 1.0, %v1759
    %v1761 = vmul.f32 %v1758, %v1760
    %v1762 = vadd.f32 %v1758, %v1761
    %vm1763 = vweird.f32 %v1741
    %vm1764 = vweird.f32 %v1758
    %vm1765 = vmor %vm1763, %vm1764
    %v1766 = vsel %vm1765, %v1758, %v1762
    %v1767 = vand.u32 2147483647, %v1741
    %vm1768 = vcmp.eq.f32.partialorder %v1767, 8.507059e+37
    %v1769 = vand.u32 %v1741, 2147483648
    %v1770 = vor.u32 1.1754944e-38, %v1769
    %v1771 = vsel %vm1768, %v1770, %v1766
    %v1772 = vmul.f32 1.0, %v1771
    %v1773 = vrcp.pop %v1742
    %v1774 = vmul.f32 %v1742, %v1773
    %v1775 = vsub.f32 1.0, %v1774
    %v1776 = vmul.f32 %v1773, %v1775
    %v1777 = vadd.f32 %v1773, %v1776
    %vm1778 = vweird.f32 %v1742
    %vm1779 = vweird.f32 %v1773
    %vm1780 = vmor %vm1778, %vm1779
    %v1781 = vsel %vm1780, %v1773, %v1777
    %v1782 = vand.u32 2147483647, %v1742
    %vm1783 = vcmp.eq.f32.partialorder %v1782, 8.507059e+37
    %v1784 = vand.u32 %v1742, 2147483648
    %v1785 = vor.u32 1.1754944e-38, %v1784
    %v1786 = vsel %vm1783, %v1785, %v1781
    %v1787 = vmul.f32 1.0, %v1786
    %v1788 = vtanh.pop %v1730
    %v1789 = vmul.f32 %v1772, %v1492
    %v1790 = vmul.f32 %v1757, %v1788
    %v1791 = vadd.f32 %v1789, %v1790
    %v1792 = vtanh.pop %v1791
    %v1793 = vmul.f32 %v1787, %v1792
    %s1794 = smul.u32 3, 4
    %s1795 = smul.addr %s1794, 8
    %s1796 = scalar_lea.vmem [#allocation2], %s1795
    %v1797 = vld [vmem:[%s1796] sm:$0xff]
    %v1798 = vld [vmem:[%s1796 + $0x8] sm:$0xff]
    %v1799 = vld [vmem:[%s1796 + $0x10] sm:$0xff]
    %v1800 = vld [vmem:[%s1796 + $0x18] sm:$0xff]
    %1801 = vmatpush.bf16.msra.mxu0 %v475
    %1802 = vmatpush.bf16.msra.mxu0 %v471
    %1803 = vmatpush.bf16.msra.mxu0 %v467
    %1804 = vmatpush.bf16.msra.mxu0 %v463
    %1805 = vmatpush.bf16.msra.mxu0 %v459
    %1806 = vmatpush.bf16.msra.mxu0 %v455
    %1807 = vmatpush.bf16.msra.mxu0 %v451
    %1808 = vmatpush.bf16.msra.mxu0 %v447
    %1809 = vmatmul.bf16.gmra.mxu0 %v1621
    %v1810 = vpop.f32.mrf.mxu0
    %v1811 = vadd.f32 0.0, %v1810
    %v1812 = vpop.f32.mrf.mxu0
    %1813 = vdwg.mxu0
    %1814 = vmatpush.bf16.msra.mxu0 %v476
    %1815 = vmatpush.bf16.msra.mxu0 %v472
    %1816 = vmatpush.bf16.msra.mxu0 %v468
    %1817 = vmatpush.bf16.msra.mxu0 %v464
    %1818 = vmatpush.bf16.msra.mxu0 %v460
    %1819 = vmatpush.bf16.msra.mxu0 %v456
    %1820 = vmatpush.bf16.msra.mxu0 %v452
    %1821 = vmatpush.bf16.msra.mxu0 %v448
    %1822 = vmatmul.bf16.gmra.mxu0 %v1621
    %v1823 = vpop.f32.mrf.mxu0
    %v1824 = vadd.f32 0.0, %v1823
    %v1825 = vpop.f32.mrf.mxu0
    %1826 = vdwg.mxu0
    %1827 = vmatpush.bf16.msra.mxu0 %v477
    %1828 = vmatpush.bf16.msra.mxu0 %v473
    %1829 = vmatpush.bf16.msra.mxu0 %v469
    %1830 = vmatpush.bf16.msra.mxu0 %v465
    %1831 = vmatpush.bf16.msra.mxu0 %v461
    %1832 = vmatpush.bf16.msra.mxu0 %v457
    %1833 = vmatpush.bf16.msra.mxu0 %v453
    %1834 = vmatpush.bf16.msra.mxu0 %v449
    %1835 = vmatmul.bf16.gmra.mxu0 %v1621
    %v1836 = vpop.f32.mrf.mxu0
    %v1837 = vadd.f32 0.0, %v1836
    %v1838 = vpop.f32.mrf.mxu0
    %1839 = vdwg.mxu0
    %1840 = vmatpush.bf16.msra.mxu0 %v478
    %1841 = vmatpush.bf16.msra.mxu0 %v474
    %1842 = vmatpush.bf16.msra.mxu0 %v470
    %1843 = vmatpush.bf16.msra.mxu0 %v466
    %1844 = vmatpush.bf16.msra.mxu0 %v462
    %1845 = vmatpush.bf16.msra.mxu0 %v458
    %1846 = vmatpush.bf16.msra.mxu0 %v454
    %1847 = vmatpush.bf16.msra.mxu0 %v450
    %1848 = vmatmul.bf16.gmra.mxu0 %v1621
    %v1849 = vpop.f32.mrf.mxu0
    %v1850 = vadd.f32 0.0, %v1849
    %v1851 = vpop.f32.mrf.mxu0
    %1852 = vdwg.mxu0
    %v1853 = vadd.f32 %v1797, %v1811
    %v1854 = vadd.f32 %v1798, %v1824
    %v1855 = vadd.f32 %v1799, %v1837
    %v1856 = vadd.f32 %v1800, %v1850
    %v1857 = vxor.u32 %v1853, 2147483648
    %v1858 = vxor.u32 %v1854, 2147483648
    %v1859 = vxor.u32 %v1855, 2147483648
    %v1860 = vmul.f32 %v1857, 1.442695
    %v1861 = vpow.pop %v1860
    %v1862 = vmul.f32 %v1858, 1.442695
    %v1863 = vpow.pop %v1862
    %v1864 = vmul.f32 %v1859, 1.442695
    %v1865 = vpow.pop %v1864
    %v1866 = vadd.f32 %v1861, 1.0
    %v1867 = vadd.f32 %v1863, 1.0
    %v1868 = vadd.f32 %v1865, 1.0
    %v1869 = vrcp.pop %v1866
    %v1870 = vmul.f32 %v1866, %v1869
    %v1871 = vsub.f32 1.0, %v1870
    %v1872 = vmul.f32 %v1869, %v1871
    %v1873 = vadd.f32 %v1869, %v1872
    %vm1874 = vweird.f32 %v1866
    %vm1875 = vweird.f32 %v1869
    %vm1876 = vmor %vm1874, %vm1875
    %v1877 = vsel %vm1876, %v1869, %v1873
    %v1878 = vand.u32 2147483647, %v1866
    %vm1879 = vcmp.eq.f32.partialorder %v1878, 8.507059e+37
    %v1880 = vand.u32 %v1866, 2147483648
    %v1881 = vor.u32 1.1754944e-38, %v1880
    %v1882 = vsel %vm1879, %v1881, %v1877
    %v1883 = vmul.f32 1.0, %v1882
    %v1884 = vrcp.pop %v1867
    %v1885 = vmul.f32 %v1867, %v1884
    %v1886 = vsub.f32 1.0, %v1885
    %v1887 = vmul.f32 %v1884, %v1886
    %v1888 = vadd.f32 %v1884, %v1887
    %vm1889 = vweird.f32 %v1867
    %vm1890 = vweird.f32 %v1884
    %vm1891 = vmor %vm1889, %vm1890
    %v1892 = vsel %vm1891, %v1884, %v1888
    %v1893 = vand.u32 2147483647, %v1867
    %vm1894 = vcmp.eq.f32.partialorder %v1893, 8.507059e+37
    %v1895 = vand.u32 %v1867, 2147483648
    %v1896 = vor.u32 1.1754944e-38, %v1895
    %v1897 = vsel %vm1894, %v1896, %v1892
    %v1898 = vmul.f32 1.0, %v1897
    %v1899 = vrcp.pop %v1868
    %v1900 = vmul.f32 %v1868, %v1899
    %v1901 = vsub.f32 1.0, %v1900
    %v1902 = vmul.f32 %v1899, %v1901
    %v1903 = vadd.f32 %v1899, %v1902
    %vm1904 = vweird.f32 %v1868
    %vm1905 = vweird.f32 %v1899
    %vm1906 = vmor %vm1904, %vm1905
    %v1907 = vsel %vm1906, %v1899, %v1903
    %v1908 = vand.u32 2147483647, %v1868
    %vm1909 = vcmp.eq.f32.partialorder %v1908, 8.507059e+37
    %v1910 = vand.u32 %v1868, 2147483648
    %v1911 = vor.u32 1.1754944e-38, %v1910
    %v1912 = vsel %vm1909, %v1911, %v1907
    %v1913 = vmul.f32 1.0, %v1912
    %v1914 = vtanh.pop %v1856
    %v1915 = vmul.f32 %v1898, %v1618
    %v1916 = vmul.f32 %v1883, %v1914
    %v1917 = vadd.f32 %v1915, %v1916
    %v1918 = vtanh.pop %v1917
    %v1919 = vmul.f32 %v1913, %v1918
    %v1920 = vpack.c.bf16 %v1919, %v1919
    %v1921 = vpack.c.bf16 %v1793, %v1793
    %1922 = vmatpush.bf16.msra.mxu0 %v916
    %1923 = vmatpush.bf16.msra.mxu0 %v912
    %1924 = vmatpush.bf16.msra.mxu0 %v908
    %1925 = vmatpush.bf16.msra.mxu0 %v904
    %1926 = vmatpush.bf16.msra.mxu0 %v900
    %1927 = vmatpush.bf16.msra.mxu0 %v896
    %1928 = vmatpush.bf16.msra.mxu0 %v892
    %1929 = vmatpush.bf16.msra.mxu0 %v888
    %1930 = vmatmul.bf16.gmra.mxu0 %v1920
    %v1931 = vpop.f32.mrf.mxu0
    %v1932 = vadd.f32 0.0, %v1931
    %v1933 = vpop.f32.mrf.mxu0
    %1934 = vdwg.mxu0
    %1935 = vmatpush.bf16.msra.mxu0 %v948
    %1936 = vmatpush.bf16.msra.mxu0 %v944
    %1937 = vmatpush.bf16.msra.mxu0 %v940
    %1938 = vmatpush.bf16.msra.mxu0 %v936
    %1939 = vmatpush.bf16.msra.mxu0 %v932
    %1940 = vmatpush.bf16.msra.mxu0 %v928
    %1941 = vmatpush.bf16.msra.mxu0 %v924
    %1942 = vmatpush.bf16.msra.mxu0 %v920
    %1943 = vmatmul.bf16.gmra.mxu0 %v1921
    %v1944 = vpop.f32.mrf.mxu0
    %v1945 = vadd.f32 %v1932, %v1944
    %v1946 = vpop.f32.mrf.mxu0
    %1947 = vdwg.mxu0
    %1948 = vmatpush.bf16.msra.mxu0 %v917
    %1949 = vmatpush.bf16.msra.mxu0 %v913
    %1950 = vmatpush.bf16.msra.mxu0 %v909
    %1951 = vmatpush.bf16.msra.mxu0 %v905
    %1952 = vmatpush.bf16.msra.mxu0 %v901
    %1953 = vmatpush.bf16.msra.mxu0 %v897
    %1954 = vmatpush.bf16.msra.mxu0 %v893
    %1955 = vmatpush.bf16.msra.mxu0 %v889
    %1956 = vmatmul.bf16.gmra.mxu0 %v1920
    %v1957 = vpop.f32.mrf.mxu0
    %v1958 = vadd.f32 0.0, %v1957
    %v1959 = vpop.f32.mrf.mxu0
    %1960 = vdwg.mxu0
    %1961 = vmatpush.bf16.msra.mxu0 %v949
    %1962 = vmatpush.bf16.msra.mxu0 %v945
    %1963 = vmatpush.bf16.msra.mxu0 %v941
    %1964 = vmatpush.bf16.msra.mxu0 %v937
    %1965 = vmatpush.bf16.msra.mxu0 %v933
    %1966 = vmatpush.bf16.msra.mxu0 %v929
    %1967 = vmatpush.bf16.msra.mxu0 %v925
    %1968 = vmatpush.bf16.msra.mxu0 %v921
    %1969 = vmatmul.bf16.gmra.mxu0 %v1921
    %v1970 = vpop.f32.mrf.mxu0
    %v1971 = vadd.f32 %v1958, %v1970
    %v1972 = vpop.f32.mrf.mxu0
    %1973 = vdwg.mxu0
    %1974 = vmatpush.bf16.msra.mxu0 %v918
    %1975 = vmatpush.bf16.msra.mxu0 %v914
    %1976 = vmatpush.bf16.msra.mxu0 %v910
    %1977 = vmatpush.bf16.msra.mxu0 %v906
    %1978 = vmatpush.bf16.msra.mxu0 %v902
    %1979 = vmatpush.bf16.msra.mxu0 %v898
    %1980 = vmatpush.bf16.msra.mxu0 %v894
    %1981 = vmatpush.bf16.msra.mxu0 %v890
    %1982 = vmatmul.bf16.gmra.mxu0 %v1920
    %v1983 = vpop.f32.mrf.mxu0
    %v1984 = vadd.f32 0.0, %v1983
    %v1985 = vpop.f32.mrf.mxu0
    %1986 = vdwg.mxu0
    %1987 = vmatpush.bf16.msra.mxu0 %v950
    %1988 = vmatpush.bf16.msra.mxu0 %v946
    %1989 = vmatpush.bf16.msra.mxu0 %v942
    %1990 = vmatpush.bf16.msra.mxu0 %v938
    %1991 = vmatpush.bf16.msra.mxu0 %v934
    %1992 = vmatpush.bf16.msra.mxu0 %v930
    %1993 = vmatpush.bf16.msra.mxu0 %v926
    %1994 = vmatpush.bf16.msra.mxu0 %v922
    %1995 = vmatmul.bf16.gmra.mxu0 %v1921
    %v1996 = vpop.f32.mrf.mxu0
    %v1997 = vadd.f32 %v1984, %v1996
    %v1998 = vpop.f32.mrf.mxu0
    %1999 = vdwg.mxu0
    %2000 = vmatpush.bf16.msra.mxu0 %v919
    %2001 = vmatpush.bf16.msra.mxu0 %v915
    %2002 = vmatpush.bf16.msra.mxu0 %v911
    %2003 = vmatpush.bf16.msra.mxu0 %v907
    %2004 = vmatpush.bf16.msra.mxu0 %v903
    %2005 = vmatpush.bf16.msra.mxu0 %v899
    %2006 = vmatpush.bf16.msra.mxu0 %v895
    %2007 = vmatpush.bf16.msra.mxu0 %v891
    %2008 = vmatmul.bf16.gmra.mxu0 %v1920
    %v2009 = vpop.f32.mrf.mxu0
    %v2010 = vadd.f32 0.0, %v2009
    %v2011 = vpop.f32.mrf.mxu0
    %2012 = vdwg.mxu0
    %2013 = vmatpush.bf16.msra.mxu0 %v951
    %2014 = vmatpush.bf16.msra.mxu0 %v947
    %2015 = vmatpush.bf16.msra.mxu0 %v943
    %2016 = vmatpush.bf16.msra.mxu0 %v939
    %2017 = vmatpush.bf16.msra.mxu0 %v935
    %2018 = vmatpush.bf16.msra.mxu0 %v931
    %2019 = vmatpush.bf16.msra.mxu0 %v927
    %2020 = vmatpush.bf16.msra.mxu0 %v923
    %2021 = vmatmul.bf16.gmra.mxu0 %v1921
    %v2022 = vpop.f32.mrf.mxu0
    %v2023 = vadd.f32 %v2010, %v2022
    %v2024 = vpop.f32.mrf.mxu0
    %2025 = vdwg.mxu0
    %v2026 = vadd.f32 %v1121, %v1945
    %v2027 = vadd.f32 %v1122, %v1971
    %v2028 = vadd.f32 %v1123, %v1997
    %v2029 = vadd.f32 %v1124, %v2023
    %v2030 = vxor.u32 %v2026, 2147483648
    %v2031 = vxor.u32 %v2027, 2147483648
    %v2032 = vxor.u32 %v2028, 2147483648
    %v2033 = vmul.f32 %v2030, 1.442695
    %v2034 = vpow.pop %v2033
    %v2035 = vmul.f32 %v2031, 1.442695
    %v2036 = vpow.pop %v2035
    %v2037 = vmul.f32 %v2032, 1.442695
    %v2038 = vpow.pop %v2037
    %v2039 = vadd.f32 %v2034, 1.0
    %v2040 = vadd.f32 %v2036, 1.0
    %v2041 = vadd.f32 %v2038, 1.0
    %v2042 = vrcp.pop %v2039
    %v2043 = vmul.f32 %v2039, %v2042
    %v2044 = vsub.f32 1.0, %v2043
    %v2045 = vmul.f32 %v2042, %v2044
    %v2046 = vadd.f32 %v2042, %v2045
    %vm2047 = vweird.f32 %v2039
    %vm2048 = vweird.f32 %v2042
    %vm2049 = vmor %vm2047, %vm2048
    %v2050 = vsel %vm2049, %v2042, %v2046
    %v2051 = vand.u32 2147483647, %v2039
    %vm2052 = vcmp.eq.f32.partialorder %v2051, 8.507059e+37
    %v2053 = vand.u32 %v2039, 2147483648
    %v2054 = vor.u32 1.1754944e-38, %v2053
    %v2055 = vsel %vm2052, %v2054, %v2050
    %v2056 = vmul.f32 1.0, %v2055
    %v2057 = vrcp.pop %v2040
    %v2058 = vmul.f32 %v2040, %v2057
    %v2059 = vsub.f32 1.0, %v2058
    %v2060 = vmul.f32 %v2057, %v2059
    %v2061 = vadd.f32 %v2057, %v2060
    %vm2062 = vweird.f32 %v2040
    %vm2063 = vweird.f32 %v2057
    %vm2064 = vmor %vm2062, %vm2063
    %v2065 = vsel %vm2064, %v2057, %v2061
    %v2066 = vand.u32 2147483647, %v2040
    %vm2067 = vcmp.eq.f32.partialorder %v2066, 8.507059e+37
    %v2068 = vand.u32 %v2040, 2147483648
    %v2069 = vor.u32 1.1754944e-38, %v2068
    %v2070 = vsel %vm2067, %v2069, %v2065
    %v2071 = vmul.f32 1.0, %v2070
    %v2072 = vrcp.pop %v2041
    %v2073 = vmul.f32 %v2041, %v2072
    %v2074 = vsub.f32 1.0, %v2073
    %v2075 = vmul.f32 %v2072, %v2074
    %v2076 = vadd.f32 %v2072, %v2075
    %vm2077 = vweird.f32 %v2041
    %vm2078 = vweird.f32 %v2072
    %vm2079 = vmor %vm2077, %vm2078
    %v2080 = vsel %vm2079, %v2072, %v2076
    %v2081 = vand.u32 2147483647, %v2041
    %vm2082 = vcmp.eq.f32.partialorder %v2081, 8.507059e+37
    %v2083 = vand.u32 %v2041, 2147483648
    %v2084 = vor.u32 1.1754944e-38, %v2083
    %v2085 = vsel %vm2082, %v2084, %v2080
    %v2086 = vmul.f32 1.0, %v2085
    %v2087 = vtanh.pop %v2029
    %v2088 = vmul.f32 %v2071, %v1791
    %v2089 = vmul.f32 %v2056, %v2087
    %v2090 = vadd.f32 %v2088, %v2089
    %v2091 = vtanh.pop %v2090
    %v2092 = vmul.f32 %v2086, %v2091
    %s2093 = smul.u32 4, 4
    %s2094 = smul.addr %s2093, 8
    %s2095 = scalar_lea.vmem [#allocation2], %s2094
    %v2096 = vld [vmem:[%s2095] sm:$0xff]
    %v2097 = vld [vmem:[%s2095 + $0x8] sm:$0xff]
    %v2098 = vld [vmem:[%s2095 + $0x10] sm:$0xff]
    %v2099 = vld [vmem:[%s2095 + $0x18] sm:$0xff]
    %2100 = vmatpush.bf16.msra.mxu0 %v475
    %2101 = vmatpush.bf16.msra.mxu0 %v471
    %2102 = vmatpush.bf16.msra.mxu0 %v467
    %2103 = vmatpush.bf16.msra.mxu0 %v463
    %2104 = vmatpush.bf16.msra.mxu0 %v459
    %2105 = vmatpush.bf16.msra.mxu0 %v455
    %2106 = vmatpush.bf16.msra.mxu0 %v451
    %2107 = vmatpush.bf16.msra.mxu0 %v447
    %2108 = vmatmul.bf16.gmra.mxu0 %v1920
    %v2109 = vpop.f32.mrf.mxu0
    %v2110 = vadd.f32 0.0, %v2109
    %v2111 = vpop.f32.mrf.mxu0
    %2112 = vdwg.mxu0
    %2113 = vmatpush.bf16.msra.mxu0 %v476
    %2114 = vmatpush.bf16.msra.mxu0 %v472
    %2115 = vmatpush.bf16.msra.mxu0 %v468
    %2116 = vmatpush.bf16.msra.mxu0 %v464
    %2117 = vmatpush.bf16.msra.mxu0 %v460
    %2118 = vmatpush.bf16.msra.mxu0 %v456
    %2119 = vmatpush.bf16.msra.mxu0 %v452
    %2120 = vmatpush.bf16.msra.mxu0 %v448
    %2121 = vmatmul.bf16.gmra.mxu0 %v1920
    %v2122 = vpop.f32.mrf.mxu0
    %v2123 = vadd.f32 0.0, %v2122
    %v2124 = vpop.f32.mrf.mxu0
    %2125 = vdwg.mxu0
    %2126 = vmatpush.bf16.msra.mxu0 %v477
    %2127 = vmatpush.bf16.msra.mxu0 %v473
    %2128 = vmatpush.bf16.msra.mxu0 %v469
    %2129 = vmatpush.bf16.msra.mxu0 %v465
    %2130 = vmatpush.bf16.msra.mxu0 %v461
    %2131 = vmatpush.bf16.msra.mxu0 %v457
    %2132 = vmatpush.bf16.msra.mxu0 %v453
    %2133 = vmatpush.bf16.msra.mxu0 %v449
    %2134 = vmatmul.bf16.gmra.mxu0 %v1920
    %v2135 = vpop.f32.mrf.mxu0
    %v2136 = vadd.f32 0.0, %v2135
    %v2137 = vpop.f32.mrf.mxu0
    %2138 = vdwg.mxu0
    %2139 = vmatpush.bf16.msra.mxu0 %v478
    %2140 = vmatpush.bf16.msra.mxu0 %v474
    %2141 = vmatpush.bf16.msra.mxu0 %v470
    %2142 = vmatpush.bf16.msra.mxu0 %v466
    %2143 = vmatpush.bf16.msra.mxu0 %v462
    %2144 = vmatpush.bf16.msra.mxu0 %v458
    %2145 = vmatpush.bf16.msra.mxu0 %v454
    %2146 = vmatpush.bf16.msra.mxu0 %v450
    %2147 = vmatmul.bf16.gmra.mxu0 %v1920
    %v2148 = vpop.f32.mrf.mxu0
    %v2149 = vadd.f32 0.0, %v2148
    %v2150 = vpop.f32.mrf.mxu0
    %2151 = vdwg.mxu0
    %v2152 = vadd.f32 %v2096, %v2110
    %v2153 = vadd.f32 %v2097, %v2123
    %v2154 = vadd.f32 %v2098, %v2136
    %v2155 = vadd.f32 %v2099, %v2149
    %v2156 = vxor.u32 %v2152, 2147483648
    %v2157 = vxor.u32 %v2153, 2147483648
    %v2158 = vxor.u32 %v2154, 2147483648
    %v2159 = vmul.f32 %v2156, 1.442695
    %v2160 = vpow.pop %v2159
    %v2161 = vmul.f32 %v2157, 1.442695
    %v2162 = vpow.pop %v2161
    %v2163 = vmul.f32 %v2158, 1.442695
    %v2164 = vpow.pop %v2163
    %v2165 = vadd.f32 %v2160, 1.0
    %v2166 = vadd.f32 %v2162, 1.0
    %v2167 = vadd.f32 %v2164, 1.0
    %v2168 = vrcp.pop %v2165
    %v2169 = vmul.f32 %v2165, %v2168
    %v2170 = vsub.f32 1.0, %v2169
    %v2171 = vmul.f32 %v2168, %v2170
    %v2172 = vadd.f32 %v2168, %v2171
    %vm2173 = vweird.f32 %v2165
    %vm2174 = vweird.f32 %v2168
    %vm2175 = vmor %vm2173, %vm2174
    %v2176 = vsel %vm2175, %v2168, %v2172
    %v2177 = vand.u32 2147483647, %v2165
    %vm2178 = vcmp.eq.f32.partialorder %v2177, 8.507059e+37
    %v2179 = vand.u32 %v2165, 2147483648
    %v2180 = vor.u32 1.1754944e-38, %v2179
    %v2181 = vsel %vm2178, %v2180, %v2176
    %v2182 = vmul.f32 1.0, %v2181
    %v2183 = vrcp.pop %v2166
    %v2184 = vmul.f32 %v2166, %v2183
    %v2185 = vsub.f32 1.0, %v2184
    %v2186 = vmul.f32 %v2183, %v2185
    %v2187 = vadd.f32 %v2183, %v2186
    %vm2188 = vweird.f32 %v2166
    %vm2189 = vweird.f32 %v2183
    %vm2190 = vmor %vm2188, %vm2189
    %v2191 = vsel %vm2190, %v2183, %v2187
    %v2192 = vand.u32 2147483647, %v2166
    %vm2193 = vcmp.eq.f32.partialorder %v2192, 8.507059e+37
    %v2194 = vand.u32 %v2166, 2147483648
    %v2195 = vor.u32 1.1754944e-38, %v2194
    %v2196 = vsel %vm2193, %v2195, %v2191
    %v2197 = vmul.f32 1.0, %v2196
    %v2198 = vrcp.pop %v2167
    %v2199 = vmul.f32 %v2167, %v2198
    %v2200 = vsub.f32 1.0, %v2199
    %v2201 = vmul.f32 %v2198, %v2200
    %v2202 = vadd.f32 %v2198, %v2201
    %vm2203 = vweird.f32 %v2167
    %vm2204 = vweird.f32 %v2198
    %vm2205 = vmor %vm2203, %vm2204
    %v2206 = vsel %vm2205, %v2198, %v2202
    %v2207 = vand.u32 2147483647, %v2167
    %vm2208 = vcmp.eq.f32.partialorder %v2207, 8.507059e+37
    %v2209 = vand.u32 %v2167, 2147483648
    %v2210 = vor.u32 1.1754944e-38, %v2209
    %v2211 = vsel %vm2208, %v2210, %v2206
    %v2212 = vmul.f32 1.0, %v2211
    %v2213 = vtanh.pop %v2155
    %v2214 = vmul.f32 %v2197, %v1917
    %v2215 = vmul.f32 %v2182, %v2213
    %v2216 = vadd.f32 %v2214, %v2215
    %v2217 = vtanh.pop %v2216
    %v2218 = vmul.f32 %v2212, %v2217
    %v2219 = vpack.c.bf16 %v2218, %v2218
    %v2220 = vpack.c.bf16 %v2092, %v2092
    %2221 = vmatpush.bf16.msra.mxu0 %v916
    %2222 = vmatpush.bf16.msra.mxu0 %v912
    %2223 = vmatpush.bf16.msra.mxu0 %v908
    %2224 = vmatpush.bf16.msra.mxu0 %v904
    %2225 = vmatpush.bf16.msra.mxu0 %v900
    %2226 = vmatpush.bf16.msra.mxu0 %v896
    %2227 = vmatpush.bf16.msra.mxu0 %v892
    %2228 = vmatpush.bf16.msra.mxu0 %v888
    %2229 = vmatmul.bf16.gmra.mxu0 %v2219
    %v2230 = vpop.f32.mrf.mxu0
    %v2231 = vadd.f32 0.0, %v2230
    %v2232 = vpop.f32.mrf.mxu0
    %2233 = vdwg.mxu0
    %2234 = vmatpush.bf16.msra.mxu0 %v948
    %2235 = vmatpush.bf16.msra.mxu0 %v944
    %2236 = vmatpush.bf16.msra.mxu0 %v940
    %2237 = vmatpush.bf16.msra.mxu0 %v936
    %2238 = vmatpush.bf16.msra.mxu0 %v932
    %2239 = vmatpush.bf16.msra.mxu0 %v928
    %2240 = vmatpush.bf16.msra.mxu0 %v924
    %2241 = vmatpush.bf16.msra.mxu0 %v920
    %2242 = vmatmul.bf16.gmra.mxu0 %v2220
    %v2243 = vpop.f32.mrf.mxu0
    %v2244 = vadd.f32 %v2231, %v2243
    %v2245 = vpop.f32.mrf.mxu0
    %2246 = vdwg.mxu0
    %2247 = vmatpush.bf16.msra.mxu0 %v917
    %2248 = vmatpush.bf16.msra.mxu0 %v913
    %2249 = vmatpush.bf16.msra.mxu0 %v909
    %2250 = vmatpush.bf16.msra.mxu0 %v905
    %2251 = vmatpush.bf16.msra.mxu0 %v901
    %2252 = vmatpush.bf16.msra.mxu0 %v897
    %2253 = vmatpush.bf16.msra.mxu0 %v893
    %2254 = vmatpush.bf16.msra.mxu0 %v889
    %2255 = vmatmul.bf16.gmra.mxu0 %v2219
    %v2256 = vpop.f32.mrf.mxu0
    %v2257 = vadd.f32 0.0, %v2256
    %v2258 = vpop.f32.mrf.mxu0
    %2259 = vdwg.mxu0
    %2260 = vmatpush.bf16.msra.mxu0 %v949
    %2261 = vmatpush.bf16.msra.mxu0 %v945
    %2262 = vmatpush.bf16.msra.mxu0 %v941
    %2263 = vmatpush.bf16.msra.mxu0 %v937
    %2264 = vmatpush.bf16.msra.mxu0 %v933
    %2265 = vmatpush.bf16.msra.mxu0 %v929
    %2266 = vmatpush.bf16.msra.mxu0 %v925
    %2267 = vmatpush.bf16.msra.mxu0 %v921
    %2268 = vmatmul.bf16.gmra.mxu0 %v2220
    %v2269 = vpop.f32.mrf.mxu0
    %v2270 = vadd.f32 %v2257, %v2269
    %v2271 = vpop.f32.mrf.mxu0
    %2272 = vdwg.mxu0
    %2273 = vmatpush.bf16.msra.mxu0 %v918
    %2274 = vmatpush.bf16.msra.mxu0 %v914
    %2275 = vmatpush.bf16.msra.mxu0 %v910
    %2276 = vmatpush.bf16.msra.mxu0 %v906
    %2277 = vmatpush.bf16.msra.mxu0 %v902
    %2278 = vmatpush.bf16.msra.mxu0 %v898
    %2279 = vmatpush.bf16.msra.mxu0 %v894
    %2280 = vmatpush.bf16.msra.mxu0 %v890
    %2281 = vmatmul.bf16.gmra.mxu0 %v2219
    %v2282 = vpop.f32.mrf.mxu0
    %v2283 = vadd.f32 0.0, %v2282
    %v2284 = vpop.f32.mrf.mxu0
    %2285 = vdwg.mxu0
    %2286 = vmatpush.bf16.msra.mxu0 %v950
    %2287 = vmatpush.bf16.msra.mxu0 %v946
    %2288 = vmatpush.bf16.msra.mxu0 %v942
    %2289 = vmatpush.bf16.msra.mxu0 %v938
    %2290 = vmatpush.bf16.msra.mxu0 %v934
    %2291 = vmatpush.bf16.msra.mxu0 %v930
    %2292 = vmatpush.bf16.msra.mxu0 %v926
    %2293 = vmatpush.bf16.msra.mxu0 %v922
    %2294 = vmatmul.bf16.gmra.mxu0 %v2220
    %v2295 = vpop.f32.mrf.mxu0
    %v2296 = vadd.f32 %v2283, %v2295
    %v2297 = vpop.f32.mrf.mxu0
    %2298 = vdwg.mxu0
    %2299 = vmatpush.bf16.msra.mxu0 %v919
    %2300 = vmatpush.bf16.msra.mxu0 %v915
    %2301 = vmatpush.bf16.msra.mxu0 %v911
    %2302 = vmatpush.bf16.msra.mxu0 %v907
    %2303 = vmatpush.bf16.msra.mxu0 %v903
    %2304 = vmatpush.bf16.msra.mxu0 %v899
    %2305 = vmatpush.bf16.msra.mxu0 %v895
    %2306 = vmatpush.bf16.msra.mxu0 %v891
    %2307 = vmatmul.bf16.gmra.mxu0 %v2219
    %v2308 = vpop.f32.mrf.mxu0
    %v2309 = vadd.f32 0.0, %v2308
    %v2310 = vpop.f32.mrf.mxu0
    %2311 = vdwg.mxu0
    %2312 = vmatpush.bf16.msra.mxu0 %v951
    %2313 = vmatpush.bf16.msra.mxu0 %v947
    %2314 = vmatpush.bf16.msra.mxu0 %v943
    %2315 = vmatpush.bf16.msra.mxu0 %v939
    %2316 = vmatpush.bf16.msra.mxu0 %v935
    %2317 = vmatpush.bf16.msra.mxu0 %v931
    %2318 = vmatpush.bf16.msra.mxu0 %v927
    %2319 = vmatpush.bf16.msra.mxu0 %v923
    %2320 = vmatmul.bf16.gmra.mxu0 %v2220
    %v2321 = vpop.f32.mrf.mxu0
    %v2322 = vadd.f32 %v2309, %v2321
    %v2323 = vpop.f32.mrf.mxu0
    %2324 = vdwg.mxu0
    %v2325 = vadd.f32 %v1121, %v2244
    %v2326 = vadd.f32 %v1122, %v2270
    %v2327 = vadd.f32 %v1123, %v2296
    %v2328 = vadd.f32 %v1124, %v2322
    %v2329 = vxor.u32 %v2325, 2147483648
    %v2330 = vxor.u32 %v2326, 2147483648
    %v2331 = vxor.u32 %v2327, 2147483648
    %v2332 = vmul.f32 %v2329, 1.442695
    %v2333 = vpow.pop %v2332
    %v2334 = vmul.f32 %v2330, 1.442695
    %v2335 = vpow.pop %v2334
    %v2336 = vmul.f32 %v2331, 1.442695
    %v2337 = vpow.pop %v2336
    %v2338 = vadd.f32 %v2333, 1.0
    %v2339 = vadd.f32 %v2335, 1.0
    %v2340 = vadd.f32 %v2337, 1.0
    %v2341 = vrcp.pop %v2338
    %v2342 = vmul.f32 %v2338, %v2341
    %v2343 = vsub.f32 1.0, %v2342
    %v2344 = vmul.f32 %v2341, %v2343
    %v2345 = vadd.f32 %v2341, %v2344
    %vm2346 = vweird.f32 %v2338
    %vm2347 = vweird.f32 %v2341
    %vm2348 = vmor %vm2346, %vm2347
    %v2349 = vsel %vm2348, %v2341, %v2345
    %v2350 = vand.u32 2147483647, %v2338
    %vm2351 = vcmp.eq.f32.partialorder %v2350, 8.507059e+37
    %v2352 = vand.u32 %v2338, 2147483648
    %v2353 = vor.u32 1.1754944e-38, %v2352
    %v2354 = vsel %vm2351, %v2353, %v2349
    %v2355 = vmul.f32 1.0, %v2354
    %v2356 = vrcp.pop %v2339
    %v2357 = vmul.f32 %v2339, %v2356
    %v2358 = vsub.f32 1.0, %v2357
    %v2359 = vmul.f32 %v2356, %v2358
    %v2360 = vadd.f32 %v2356, %v2359
    %vm2361 = vweird.f32 %v2339
    %vm2362 = vweird.f32 %v2356
    %vm2363 = vmor %vm2361, %vm2362
    %v2364 = vsel %vm2363, %v2356, %v2360
    %v2365 = vand.u32 2147483647, %v2339
    %vm2366 = vcmp.eq.f32.partialorder %v2365, 8.507059e+37
    %v2367 = vand.u32 %v2339, 2147483648
    %v2368 = vor.u32 1.1754944e-38, %v2367
    %v2369 = vsel %vm2366, %v2368, %v2364
    %v2370 = vmul.f32 1.0, %v2369
    %v2371 = vrcp.pop %v2340
    %v2372 = vmul.f32 %v2340, %v2371
    %v2373 = vsub.f32 1.0, %v2372
    %v2374 = vmul.f32 %v2371, %v2373
    %v2375 = vadd.f32 %v2371, %v2374
    %vm2376 = vweird.f32 %v2340
    %vm2377 = vweird.f32 %v2371
    %vm2378 = vmor %vm2376, %vm2377
    %v2379 = vsel %vm2378, %v2371, %v2375
    %v2380 = vand.u32 2147483647, %v2340
    %vm2381 = vcmp.eq.f32.partialorder %v2380, 8.507059e+37
    %v2382 = vand.u32 %v2340, 2147483648
    %v2383 = vor.u32 1.1754944e-38, %v2382
    %v2384 = vsel %vm2381, %v2383, %v2379
    %v2385 = vmul.f32 1.0, %v2384
    %v2386 = vtanh.pop %v2328
    %v2387 = vmul.f32 %v2370, %v2090
    %v2388 = vmul.f32 %v2355, %v2386
    %v2389 = vadd.f32 %v2387, %v2388
    %v2390 = vtanh.pop %v2389
    %v2391 = vmul.f32 %v2385, %v2390
    %s2392 = smul.u32 5, 4
    %s2393 = smul.addr %s2392, 8
    %s2394 = scalar_lea.vmem [#allocation2], %s2393
    %v2395 = vld [vmem:[%s2394] sm:$0xff]
    %v2396 = vld [vmem:[%s2394 + $0x8] sm:$0xff]
    %v2397 = vld [vmem:[%s2394 + $0x10] sm:$0xff]
    %v2398 = vld [vmem:[%s2394 + $0x18] sm:$0xff]
    %2399 = vmatpush.bf16.msra.mxu0 %v475
    %2400 = vmatpush.bf16.msra.mxu0 %v471
    %2401 = vmatpush.bf16.msra.mxu0 %v467
    %2402 = vmatpush.bf16.msra.mxu0 %v463
    %2403 = vmatpush.bf16.msra.mxu0 %v459
    %2404 = vmatpush.bf16.msra.mxu0 %v455
    %2405 = vmatpush.bf16.msra.mxu0 %v451
    %2406 = vmatpush.bf16.msra.mxu0 %v447
    %2407 = vmatmul.bf16.gmra.mxu0 %v2219
    %v2408 = vpop.f32.mrf.mxu0
    %v2409 = vadd.f32 0.0, %v2408
    %v2410 = vpop.f32.mrf.mxu0
    %2411 = vdwg.mxu0
    %2412 = vmatpush.bf16.msra.mxu0 %v476
    %2413 = vmatpush.bf16.msra.mxu0 %v472
    %2414 = vmatpush.bf16.msra.mxu0 %v468
    %2415 = vmatpush.bf16.msra.mxu0 %v464
    %2416 = vmatpush.bf16.msra.mxu0 %v460
    %2417 = vmatpush.bf16.msra.mxu0 %v456
    %2418 = vmatpush.bf16.msra.mxu0 %v452
    %2419 = vmatpush.bf16.msra.mxu0 %v448
    %2420 = vmatmul.bf16.gmra.mxu0 %v2219
    %v2421 = vpop.f32.mrf.mxu0
    %v2422 = vadd.f32 0.0, %v2421
    %v2423 = vpop.f32.mrf.mxu0
    %2424 = vdwg.mxu0
    %2425 = vmatpush.bf16.msra.mxu0 %v477
    %2426 = vmatpush.bf16.msra.mxu0 %v473
    %2427 = vmatpush.bf16.msra.mxu0 %v469
    %2428 = vmatpush.bf16.msra.mxu0 %v465
    %2429 = vmatpush.bf16.msra.mxu0 %v461
    %2430 = vmatpush.bf16.msra.mxu0 %v457
    %2431 = vmatpush.bf16.msra.mxu0 %v453
    %2432 = vmatpush.bf16.msra.mxu0 %v449
    %2433 = vmatmul.bf16.gmra.mxu0 %v2219
    %v2434 = vpop.f32.mrf.mxu0
    %v2435 = vadd.f32 0.0, %v2434
    %v2436 = vpop.f32.mrf.mxu0
    %2437 = vdwg.mxu0
    %2438 = vmatpush.bf16.msra.mxu0 %v478
    %2439 = vmatpush.bf16.msra.mxu0 %v474
    %2440 = vmatpush.bf16.msra.mxu0 %v470
    %2441 = vmatpush.bf16.msra.mxu0 %v466
    %2442 = vmatpush.bf16.msra.mxu0 %v462
    %2443 = vmatpush.bf16.msra.mxu0 %v458
    %2444 = vmatpush.bf16.msra.mxu0 %v454
    %2445 = vmatpush.bf16.msra.mxu0 %v450
    %2446 = vmatmul.bf16.gmra.mxu0 %v2219
    %v2447 = vpop.f32.mrf.mxu0
    %v2448 = vadd.f32 0.0, %v2447
    %v2449 = vpop.f32.mrf.mxu0
    %2450 = vdwg.mxu0
    %v2451 = vadd.f32 %v2395, %v2409
    %v2452 = vadd.f32 %v2396, %v2422
    %v2453 = vadd.f32 %v2397, %v2435
    %v2454 = vadd.f32 %v2398, %v2448
    %v2455 = vxor.u32 %v2451, 2147483648
    %v2456 = vxor.u32 %v2452, 2147483648
    %v2457 = vxor.u32 %v2453, 2147483648
    %v2458 = vmul.f32 %v2455, 1.442695
    %v2459 = vpow.pop %v2458
    %v2460 = vmul.f32 %v2456, 1.442695
    %v2461 = vpow.pop %v2460
    %v2462 = vmul.f32 %v2457, 1.442695
    %v2463 = vpow.pop %v2462
    %v2464 = vadd.f32 %v2459, 1.0
    %v2465 = vadd.f32 %v2461, 1.0
    %v2466 = vadd.f32 %v2463, 1.0
    %v2467 = vrcp.pop %v2464
    %v2468 = vmul.f32 %v2464, %v2467
    %v2469 = vsub.f32 1.0, %v2468
    %v2470 = vmul.f32 %v2467, %v2469
    %v2471 = vadd.f32 %v2467, %v2470
    %vm2472 = vweird.f32 %v2464
    %vm2473 = vweird.f32 %v2467
    %vm2474 = vmor %vm2472, %vm2473
    %v2475 = vsel %vm2474, %v2467, %v2471
    %v2476 = vand.u32 2147483647, %v2464
    %vm2477 = vcmp.eq.f32.partialorder %v2476, 8.507059e+37
    %v2478 = vand.u32 %v2464, 2147483648
    %v2479 = vor.u32 1.1754944e-38, %v2478
    %v2480 = vsel %vm2477, %v2479, %v2475
    %v2481 = vmul.f32 1.0, %v2480
    %v2482 = vrcp.pop %v2465
    %v2483 = vmul.f32 %v2465, %v2482
    %v2484 = vsub.f32 1.0, %v2483
    %v2485 = vmul.f32 %v2482, %v2484
    %v2486 = vadd.f32 %v2482, %v2485
    %vm2487 = vweird.f32 %v2465
    %vm2488 = vweird.f32 %v2482
    %vm2489 = vmor %vm2487, %vm2488
    %v2490 = vsel %vm2489, %v2482, %v2486
    %v2491 = vand.u32 2147483647, %v2465
    %vm2492 = vcmp.eq.f32.partialorder %v2491, 8.507059e+37
    %v2493 = vand.u32 %v2465, 2147483648
    %v2494 = vor.u32 1.1754944e-38, %v2493
    %v2495 = vsel %vm2492, %v2494, %v2490
    %v2496 = vmul.f32 1.0, %v2495
    %v2497 = vrcp.pop %v2466
    %v2498 = vmul.f32 %v2466, %v2497
    %v2499 = vsub.f32 1.0, %v2498
    %v2500 = vmul.f32 %v2497, %v2499
    %v2501 = vadd.f32 %v2497, %v2500
    %vm2502 = vweird.f32 %v2466
    %vm2503 = vweird.f32 %v2497
    %vm2504 = vmor %vm2502, %vm2503
    %v2505 = vsel %vm2504, %v2497, %v2501
    %v2506 = vand.u32 2147483647, %v2466
    %vm2507 = vcmp.eq.f32.partialorder %v2506, 8.507059e+37
    %v2508 = vand.u32 %v2466, 2147483648
    %v2509 = vor.u32 1.1754944e-38, %v2508
    %v2510 = vsel %vm2507, %v2509, %v2505
    %v2511 = vmul.f32 1.0, %v2510
    %v2512 = vtanh.pop %v2454
    %v2513 = vmul.f32 %v2496, %v2216
    %v2514 = vmul.f32 %v2481, %v2512
    %v2515 = vadd.f32 %v2513, %v2514
    %v2516 = vtanh.pop %v2515
    %v2517 = vmul.f32 %v2511, %v2516
    %v2518 = vpack.c.bf16 %v2517, %v2517
    %v2519 = vpack.c.bf16 %v2391, %v2391
    %2520 = vmatpush.bf16.msra.mxu0 %v916
    %2521 = vmatpush.bf16.msra.mxu0 %v912
    %2522 = vmatpush.bf16.msra.mxu0 %v908
    %2523 = vmatpush.bf16.msra.mxu0 %v904
    %2524 = vmatpush.bf16.msra.mxu0 %v900
    %2525 = vmatpush.bf16.msra.mxu0 %v896
    %2526 = vmatpush.bf16.msra.mxu0 %v892
    %2527 = vmatpush.bf16.msra.mxu0 %v888
    %2528 = vmatmul.bf16.gmra.mxu0 %v2518
    %v2529 = vpop.f32.mrf.mxu0
    %v2530 = vadd.f32 0.0, %v2529
    %v2531 = vpop.f32.mrf.mxu0
    %2532 = vdwg.mxu0
    %2533 = vmatpush.bf16.msra.mxu0 %v948
    %2534 = vmatpush.bf16.msra.mxu0 %v944
    %2535 = vmatpush.bf16.msra.mxu0 %v940
    %2536 = vmatpush.bf16.msra.mxu0 %v936
    %2537 = vmatpush.bf16.msra.mxu0 %v932
    %2538 = vmatpush.bf16.msra.mxu0 %v928
    %2539 = vmatpush.bf16.msra.mxu0 %v924
    %2540 = vmatpush.bf16.msra.mxu0 %v920
    %2541 = vmatmul.bf16.gmra.mxu0 %v2519
    %v2542 = vpop.f32.mrf.mxu0
    %v2543 = vadd.f32 %v2530, %v2542
    %v2544 = vpop.f32.mrf.mxu0
    %2545 = vdwg.mxu0
    %2546 = vmatpush.bf16.msra.mxu0 %v917
    %2547 = vmatpush.bf16.msra.mxu0 %v913
    %2548 = vmatpush.bf16.msra.mxu0 %v909
    %2549 = vmatpush.bf16.msra.mxu0 %v905
    %2550 = vmatpush.bf16.msra.mxu0 %v901
    %2551 = vmatpush.bf16.msra.mxu0 %v897
    %2552 = vmatpush.bf16.msra.mxu0 %v893
    %2553 = vmatpush.bf16.msra.mxu0 %v889
    %2554 = vmatmul.bf16.gmra.mxu0 %v2518
    %v2555 = vpop.f32.mrf.mxu0
    %v2556 = vadd.f32 0.0, %v2555
    %v2557 = vpop.f32.mrf.mxu0
    %2558 = vdwg.mxu0
    %2559 = vmatpush.bf16.msra.mxu0 %v949
    %2560 = vmatpush.bf16.msra.mxu0 %v945
    %2561 = vmatpush.bf16.msra.mxu0 %v941
    %2562 = vmatpush.bf16.msra.mxu0 %v937
    %2563 = vmatpush.bf16.msra.mxu0 %v933
    %2564 = vmatpush.bf16.msra.mxu0 %v929
    %2565 = vmatpush.bf16.msra.mxu0 %v925
    %2566 = vmatpush.bf16.msra.mxu0 %v921
    %2567 = vmatmul.bf16.gmra.mxu0 %v2519
    %v2568 = vpop.f32.mrf.mxu0
    %v2569 = vadd.f32 %v2556, %v2568
    %v2570 = vpop.f32.mrf.mxu0
    %2571 = vdwg.mxu0
    %2572 = vmatpush.bf16.msra.mxu0 %v918
    %2573 = vmatpush.bf16.msra.mxu0 %v914
    %2574 = vmatpush.bf16.msra.mxu0 %v910
    %2575 = vmatpush.bf16.msra.mxu0 %v906
    %2576 = vmatpush.bf16.msra.mxu0 %v902
    %2577 = vmatpush.bf16.msra.mxu0 %v898
    %2578 = vmatpush.bf16.msra.mxu0 %v894
    %2579 = vmatpush.bf16.msra.mxu0 %v890
    %2580 = vmatmul.bf16.gmra.mxu0 %v2518
    %v2581 = vpop.f32.mrf.mxu0
    %v2582 = vadd.f32 0.0, %v2581
    %v2583 = vpop.f32.mrf.mxu0
    %2584 = vdwg.mxu0
    %2585 = vmatpush.bf16.msra.mxu0 %v950
    %2586 = vmatpush.bf16.msra.mxu0 %v946
    %2587 = vmatpush.bf16.msra.mxu0 %v942
    %2588 = vmatpush.bf16.msra.mxu0 %v938
    %2589 = vmatpush.bf16.msra.mxu0 %v934
    %2590 = vmatpush.bf16.msra.mxu0 %v930
    %2591 = vmatpush.bf16.msra.mxu0 %v926
    %2592 = vmatpush.bf16.msra.mxu0 %v922
    %2593 = vmatmul.bf16.gmra.mxu0 %v2519
    %v2594 = vpop.f32.mrf.mxu0
    %v2595 = vadd.f32 %v2582, %v2594
    %v2596 = vpop.f32.mrf.mxu0
    %2597 = vdwg.mxu0
    %2598 = vmatpush.bf16.msra.mxu0 %v919
    %2599 = vmatpush.bf16.msra.mxu0 %v915
    %2600 = vmatpush.bf16.msra.mxu0 %v911
    %2601 = vmatpush.bf16.msra.mxu0 %v907
    %2602 = vmatpush.bf16.msra.mxu0 %v903
    %2603 = vmatpush.bf16.msra.mxu0 %v899
    %2604 = vmatpush.bf16.msra.mxu0 %v895
    %2605 = vmatpush.bf16.msra.mxu0 %v891
    %2606 = vmatmul.bf16.gmra.mxu0 %v2518
    %v2607 = vpop.f32.mrf.mxu0
    %v2608 = vadd.f32 0.0, %v2607
    %v2609 = vpop.f32.mrf.mxu0
    %2610 = vdwg.mxu0
    %2611 = vmatpush.bf16.msra.mxu0 %v951
    %2612 = vmatpush.bf16.msra.mxu0 %v947
    %2613 = vmatpush.bf16.msra.mxu0 %v943
    %2614 = vmatpush.bf16.msra.mxu0 %v939
    %2615 = vmatpush.bf16.msra.mxu0 %v935
    %2616 = vmatpush.bf16.msra.mxu0 %v931
    %2617 = vmatpush.bf16.msra.mxu0 %v927
    %2618 = vmatpush.bf16.msra.mxu0 %v923
    %2619 = vmatmul.bf16.gmra.mxu0 %v2519
    %v2620 = vpop.f32.mrf.mxu0
    %v2621 = vadd.f32 %v2608, %v2620
    %v2622 = vpop.f32.mrf.mxu0
    %2623 = vdwg.mxu0
    %v2624 = vadd.f32 %v1121, %v2543
    %v2625 = vadd.f32 %v1122, %v2569
    %v2626 = vadd.f32 %v1123, %v2595
    %v2627 = vadd.f32 %v1124, %v2621
    %v2628 = vxor.u32 %v2624, 2147483648
    %v2629 = vxor.u32 %v2625, 2147483648
    %v2630 = vxor.u32 %v2626, 2147483648
    %v2631 = vmul.f32 %v2628, 1.442695
    %v2632 = vpow.pop %v2631
    %v2633 = vmul.f32 %v2629, 1.442695
    %v2634 = vpow.pop %v2633
    %v2635 = vmul.f32 %v2630, 1.442695
    %v2636 = vpow.pop %v2635
    %v2637 = vadd.f32 %v2632, 1.0
    %v2638 = vadd.f32 %v2634, 1.0
    %v2639 = vadd.f32 %v2636, 1.0
    %v2640 = vrcp.pop %v2637
    %v2641 = vmul.f32 %v2637, %v2640
    %v2642 = vsub.f32 1.0, %v2641
    %v2643 = vmul.f32 %v2640, %v2642
    %v2644 = vadd.f32 %v2640, %v2643
    %vm2645 = vweird.f32 %v2637
    %vm2646 = vweird.f32 %v2640
    %vm2647 = vmor %vm2645, %vm2646
    %v2648 = vsel %vm2647, %v2640, %v2644
    %v2649 = vand.u32 2147483647, %v2637
    %vm2650 = vcmp.eq.f32.partialorder %v2649, 8.507059e+37
    %v2651 = vand.u32 %v2637, 2147483648
    %v2652 = vor.u32 1.1754944e-38, %v2651
    %v2653 = vsel %vm2650, %v2652, %v2648
    %v2654 = vmul.f32 1.0, %v2653
    %v2655 = vrcp.pop %v2638
    %v2656 = vmul.f32 %v2638, %v2655
    %v2657 = vsub.f32 1.0, %v2656
    %v2658 = vmul.f32 %v2655, %v2657
    %v2659 = vadd.f32 %v2655, %v2658
    %vm2660 = vweird.f32 %v2638
    %vm2661 = vweird.f32 %v2655
    %vm2662 = vmor %vm2660, %vm2661
    %v2663 = vsel %vm2662, %v2655, %v2659
    %v2664 = vand.u32 2147483647, %v2638
    %vm2665 = vcmp.eq.f32.partialorder %v2664, 8.507059e+37
    %v2666 = vand.u32 %v2638, 2147483648
    %v2667 = vor.u32 1.1754944e-38, %v2666
    %v2668 = vsel %vm2665, %v2667, %v2663
    %v2669 = vmul.f32 1.0, %v2668
    %v2670 = vrcp.pop %v2639
    %v2671 = vmul.f32 %v2639, %v2670
    %v2672 = vsub.f32 1.0, %v2671
    %v2673 = vmul.f32 %v2670, %v2672
    %v2674 = vadd.f32 %v2670, %v2673
    %vm2675 = vweird.f32 %v2639
    %vm2676 = vweird.f32 %v2670
    %vm2677 = vmor %vm2675, %vm2676
    %v2678 = vsel %vm2677, %v2670, %v2674
    %v2679 = vand.u32 2147483647, %v2639
    %vm2680 = vcmp.eq.f32.partialorder %v2679, 8.507059e+37
    %v2681 = vand.u32 %v2639, 2147483648
    %v2682 = vor.u32 1.1754944e-38, %v2681
    %v2683 = vsel %vm2680, %v2682, %v2678
    %v2684 = vmul.f32 1.0, %v2683
    %v2685 = vtanh.pop %v2627
    %v2686 = vmul.f32 %v2669, %v2389
    %v2687 = vmul.f32 %v2654, %v2685
    %v2688 = vadd.f32 %v2686, %v2687
    %v2689 = vtanh.pop %v2688
    %v2690 = vmul.f32 %v2684, %v2689
    %s2691 = smul.u32 6, 4
    %s2692 = smul.addr %s2691, 8
    %s2693 = scalar_lea.vmem [#allocation2], %s2692
    %v2694 = vld [vmem:[%s2693] sm:$0xff]
    %v2695 = vld [vmem:[%s2693 + $0x8] sm:$0xff]
    %v2696 = vld [vmem:[%s2693 + $0x10] sm:$0xff]
    %v2697 = vld [vmem:[%s2693 + $0x18] sm:$0xff]
    %2698 = vmatpush.bf16.msra.mxu0 %v475
    %2699 = vmatpush.bf16.msra.mxu0 %v471
    %2700 = vmatpush.bf16.msra.mxu0 %v467
    %2701 = vmatpush.bf16.msra.mxu0 %v463
    %2702 = vmatpush.bf16.msra.mxu0 %v459
    %2703 = vmatpush.bf16.msra.mxu0 %v455
    %2704 = vmatpush.bf16.msra.mxu0 %v451
    %2705 = vmatpush.bf16.msra.mxu0 %v447
    %2706 = vmatmul.bf16.gmra.mxu0 %v2518
    %v2707 = vpop.f32.mrf.mxu0
    %v2708 = vadd.f32 0.0, %v2707
    %v2709 = vpop.f32.mrf.mxu0
    %2710 = vdwg.mxu0
    %2711 = vmatpush.bf16.msra.mxu0 %v476
    %2712 = vmatpush.bf16.msra.mxu0 %v472
    %2713 = vmatpush.bf16.msra.mxu0 %v468
    %2714 = vmatpush.bf16.msra.mxu0 %v464
    %2715 = vmatpush.bf16.msra.mxu0 %v460
    %2716 = vmatpush.bf16.msra.mxu0 %v456
    %2717 = vmatpush.bf16.msra.mxu0 %v452
    %2718 = vmatpush.bf16.msra.mxu0 %v448
    %2719 = vmatmul.bf16.gmra.mxu0 %v2518
    %v2720 = vpop.f32.mrf.mxu0
    %v2721 = vadd.f32 0.0, %v2720
    %v2722 = vpop.f32.mrf.mxu0
    %2723 = vdwg.mxu0
    %2724 = vmatpush.bf16.msra.mxu0 %v477
    %2725 = vmatpush.bf16.msra.mxu0 %v473
    %2726 = vmatpush.bf16.msra.mxu0 %v469
    %2727 = vmatpush.bf16.msra.mxu0 %v465
    %2728 = vmatpush.bf16.msra.mxu0 %v461
    %2729 = vmatpush.bf16.msra.mxu0 %v457
    %2730 = vmatpush.bf16.msra.mxu0 %v453
    %2731 = vmatpush.bf16.msra.mxu0 %v449
    %2732 = vmatmul.bf16.gmra.mxu0 %v2518
    %v2733 = vpop.f32.mrf.mxu0
    %v2734 = vadd.f32 0.0, %v2733
    %v2735 = vpop.f32.mrf.mxu0
    %2736 = vdwg.mxu0
    %2737 = vmatpush.bf16.msra.mxu0 %v478
    %2738 = vmatpush.bf16.msra.mxu0 %v474
    %2739 = vmatpush.bf16.msra.mxu0 %v470
    %2740 = vmatpush.bf16.msra.mxu0 %v466
    %2741 = vmatpush.bf16.msra.mxu0 %v462
    %2742 = vmatpush.bf16.msra.mxu0 %v458
    %2743 = vmatpush.bf16.msra.mxu0 %v454
    %2744 = vmatpush.bf16.msra.mxu0 %v450
    %2745 = vmatmul.bf16.gmra.mxu0 %v2518
    %v2746 = vpop.f32.mrf.mxu0
    %v2747 = vadd.f32 0.0, %v2746
    %v2748 = vpop.f32.mrf.mxu0
    %2749 = vdwg.mxu0
    %v2750 = vadd.f32 %v2694, %v2708
    %v2751 = vadd.f32 %v2695, %v2721
    %v2752 = vadd.f32 %v2696, %v2734
    %v2753 = vadd.f32 %v2697, %v2747
    %v2754 = vxor.u32 %v2750, 2147483648
    %v2755 = vxor.u32 %v2751, 2147483648
    %v2756 = vxor.u32 %v2752, 2147483648
    %v2757 = vmul.f32 %v2754, 1.442695
    %v2758 = vpow.pop %v2757
    %v2759 = vmul.f32 %v2755, 1.442695
    %v2760 = vpow.pop %v2759
    %v2761 = vmul.f32 %v2756, 1.442695
    %v2762 = vpow.pop %v2761
    %v2763 = vadd.f32 %v2758, 1.0
    %v2764 = vadd.f32 %v2760, 1.0
    %v2765 = vadd.f32 %v2762, 1.0
    %v2766 = vrcp.pop %v2763
    %v2767 = vmul.f32 %v2763, %v2766
    %v2768 = vsub.f32 1.0, %v2767
    %v2769 = vmul.f32 %v2766, %v2768
    %v2770 = vadd.f32 %v2766, %v2769
    %vm2771 = vweird.f32 %v2763
    %vm2772 = vweird.f32 %v2766
    %vm2773 = vmor %vm2771, %vm2772
    %v2774 = vsel %vm2773, %v2766, %v2770
    %v2775 = vand.u32 2147483647, %v2763
    %vm2776 = vcmp.eq.f32.partialorder %v2775, 8.507059e+37
    %v2777 = vand.u32 %v2763, 2147483648
    %v2778 = vor.u32 1.1754944e-38, %v2777
    %v2779 = vsel %vm2776, %v2778, %v2774
    %v2780 = vmul.f32 1.0, %v2779
    %v2781 = vrcp.pop %v2764
    %v2782 = vmul.f32 %v2764, %v2781
    %v2783 = vsub.f32 1.0, %v2782
    %v2784 = vmul.f32 %v2781, %v2783
    %v2785 = vadd.f32 %v2781, %v2784
    %vm2786 = vweird.f32 %v2764
    %vm2787 = vweird.f32 %v2781
    %vm2788 = vmor %vm2786, %vm2787
    %v2789 = vsel %vm2788, %v2781, %v2785
    %v2790 = vand.u32 2147483647, %v2764
    %vm2791 = vcmp.eq.f32.partialorder %v2790, 8.507059e+37
    %v2792 = vand.u32 %v2764, 2147483648
    %v2793 = vor.u32 1.1754944e-38, %v2792
    %v2794 = vsel %vm2791, %v2793, %v2789
    %v2795 = vmul.f32 1.0, %v2794
    %v2796 = vrcp.pop %v2765
    %v2797 = vmul.f32 %v2765, %v2796
    %v2798 = vsub.f32 1.0, %v2797
    %v2799 = vmul.f32 %v2796, %v2798
    %v2800 = vadd.f32 %v2796, %v2799
    %vm2801 = vweird.f32 %v2765
    %vm2802 = vweird.f32 %v2796
    %vm2803 = vmor %vm2801, %vm2802
    %v2804 = vsel %vm2803, %v2796, %v2800
    %v2805 = vand.u32 2147483647, %v2765
    %vm2806 = vcmp.eq.f32.partialorder %v2805, 8.507059e+37
    %v2807 = vand.u32 %v2765, 2147483648
    %v2808 = vor.u32 1.1754944e-38, %v2807
    %v2809 = vsel %vm2806, %v2808, %v2804
    %v2810 = vmul.f32 1.0, %v2809
    %v2811 = vtanh.pop %v2753
    %v2812 = vmul.f32 %v2795, %v2515
    %v2813 = vmul.f32 %v2780, %v2811
    %v2814 = vadd.f32 %v2812, %v2813
    %v2815 = vtanh.pop %v2814
    %v2816 = vmul.f32 %v2810, %v2815
    %v2817 = vpack.c.bf16 %v2816, %v2816
    %v2818 = vpack.c.bf16 %v2690, %v2690
    %2819 = vmatpush.bf16.msra.mxu0 %v916
    %2820 = vmatpush.bf16.msra.mxu0 %v912
    %2821 = vmatpush.bf16.msra.mxu0 %v908
    %2822 = vmatpush.bf16.msra.mxu0 %v904
    %2823 = vmatpush.bf16.msra.mxu0 %v900
    %2824 = vmatpush.bf16.msra.mxu0 %v896
    %2825 = vmatpush.bf16.msra.mxu0 %v892
    %2826 = vmatpush.bf16.msra.mxu0 %v888
    %2827 = vmatmul.bf16.gmra.mxu0 %v2817
    %v2828 = vpop.f32.mrf.mxu0
    %v2829 = vadd.f32 0.0, %v2828
    %v2830 = vpop.f32.mrf.mxu0
    %2831 = vdwg.mxu0
    %2832 = vmatpush.bf16.msra.mxu0 %v948
    %2833 = vmatpush.bf16.msra.mxu0 %v944
    %2834 = vmatpush.bf16.msra.mxu0 %v940
    %2835 = vmatpush.bf16.msra.mxu0 %v936
    %2836 = vmatpush.bf16.msra.mxu0 %v932
    %2837 = vmatpush.bf16.msra.mxu0 %v928
    %2838 = vmatpush.bf16.msra.mxu0 %v924
    %2839 = vmatpush.bf16.msra.mxu0 %v920
    %2840 = vmatmul.bf16.gmra.mxu0 %v2818
    %v2841 = vpop.f32.mrf.mxu0
    %v2842 = vadd.f32 %v2829, %v2841
    %v2843 = vpop.f32.mrf.mxu0
    %2844 = vdwg.mxu0
    %2845 = vmatpush.bf16.msra.mxu0 %v917
    %2846 = vmatpush.bf16.msra.mxu0 %v913
    %2847 = vmatpush.bf16.msra.mxu0 %v909
    %2848 = vmatpush.bf16.msra.mxu0 %v905
    %2849 = vmatpush.bf16.msra.mxu0 %v901
    %2850 = vmatpush.bf16.msra.mxu0 %v897
    %2851 = vmatpush.bf16.msra.mxu0 %v893
    %2852 = vmatpush.bf16.msra.mxu0 %v889
    %2853 = vmatmul.bf16.gmra.mxu0 %v2817
    %v2854 = vpop.f32.mrf.mxu0
    %v2855 = vadd.f32 0.0, %v2854
    %v2856 = vpop.f32.mrf.mxu0
    %2857 = vdwg.mxu0
    %2858 = vmatpush.bf16.msra.mxu0 %v949
    %2859 = vmatpush.bf16.msra.mxu0 %v945
    %2860 = vmatpush.bf16.msra.mxu0 %v941
    %2861 = vmatpush.bf16.msra.mxu0 %v937
    %2862 = vmatpush.bf16.msra.mxu0 %v933
    %2863 = vmatpush.bf16.msra.mxu0 %v929
    %2864 = vmatpush.bf16.msra.mxu0 %v925
    %2865 = vmatpush.bf16.msra.mxu0 %v921
    %2866 = vmatmul.bf16.gmra.mxu0 %v2818
    %v2867 = vpop.f32.mrf.mxu0
    %v2868 = vadd.f32 %v2855, %v2867
    %v2869 = vpop.f32.mrf.mxu0
    %2870 = vdwg.mxu0
    %2871 = vmatpush.bf16.msra.mxu0 %v918
    %2872 = vmatpush.bf16.msra.mxu0 %v914
    %2873 = vmatpush.bf16.msra.mxu0 %v910
    %2874 = vmatpush.bf16.msra.mxu0 %v906
    %2875 = vmatpush.bf16.msra.mxu0 %v902
    %2876 = vmatpush.bf16.msra.mxu0 %v898
    %2877 = vmatpush.bf16.msra.mxu0 %v894
    %2878 = vmatpush.bf16.msra.mxu0 %v890
    %2879 = vmatmul.bf16.gmra.mxu0 %v2817
    %v2880 = vpop.f32.mrf.mxu0
    %v2881 = vadd.f32 0.0, %v2880
    %v2882 = vpop.f32.mrf.mxu0
    %2883 = vdwg.mxu0
    %2884 = vmatpush.bf16.msra.mxu0 %v950
    %2885 = vmatpush.bf16.msra.mxu0 %v946
    %2886 = vmatpush.bf16.msra.mxu0 %v942
    %2887 = vmatpush.bf16.msra.mxu0 %v938
    %2888 = vmatpush.bf16.msra.mxu0 %v934
    %2889 = vmatpush.bf16.msra.mxu0 %v930
    %2890 = vmatpush.bf16.msra.mxu0 %v926
    %2891 = vmatpush.bf16.msra.mxu0 %v922
    %2892 = vmatmul.bf16.gmra.mxu0 %v2818
    %v2893 = vpop.f32.mrf.mxu0
    %v2894 = vadd.f32 %v2881, %v2893
    %v2895 = vpop.f32.mrf.mxu0
    %2896 = vdwg.mxu0
    %2897 = vmatpush.bf16.msra.mxu0 %v919
    %2898 = vmatpush.bf16.msra.mxu0 %v915
    %2899 = vmatpush.bf16.msra.mxu0 %v911
    %2900 = vmatpush.bf16.msra.mxu0 %v907
    %2901 = vmatpush.bf16.msra.mxu0 %v903
    %2902 = vmatpush.bf16.msra.mxu0 %v899
    %2903 = vmatpush.bf16.msra.mxu0 %v895
    %2904 = vmatpush.bf16.msra.mxu0 %v891
    %2905 = vmatmul.bf16.gmra.mxu0 %v2817
    %v2906 = vpop.f32.mrf.mxu0
    %v2907 = vadd.f32 0.0, %v2906
    %v2908 = vpop.f32.mrf.mxu0
    %2909 = vdwg.mxu0
    %2910 = vmatpush.bf16.msra.mxu0 %v951
    %2911 = vmatpush.bf16.msra.mxu0 %v947
    %2912 = vmatpush.bf16.msra.mxu0 %v943
    %2913 = vmatpush.bf16.msra.mxu0 %v939
    %2914 = vmatpush.bf16.msra.mxu0 %v935
    %2915 = vmatpush.bf16.msra.mxu0 %v931
    %2916 = vmatpush.bf16.msra.mxu0 %v927
    %2917 = vmatpush.bf16.msra.mxu0 %v923
    %2918 = vmatmul.bf16.gmra.mxu0 %v2818
    %v2919 = vpop.f32.mrf.mxu0
    %v2920 = vadd.f32 %v2907, %v2919
    %v2921 = vpop.f32.mrf.mxu0
    %2922 = vdwg.mxu0
    %v2923 = vadd.f32 %v1121, %v2842
    %v2924 = vadd.f32 %v1122, %v2868
    %v2925 = vadd.f32 %v1123, %v2894
    %v2926 = vadd.f32 %v1124, %v2920
    %v2927 = vxor.u32 %v2923, 2147483648
    %v2928 = vxor.u32 %v2924, 2147483648
    %v2929 = vxor.u32 %v2925, 2147483648
    %v2930 = vmul.f32 %v2927, 1.442695
    %v2931 = vpow.pop %v2930
    %v2932 = vmul.f32 %v2928, 1.442695
    %v2933 = vpow.pop %v2932
    %v2934 = vmul.f32 %v2929, 1.442695
    %v2935 = vpow.pop %v2934
    %v2936 = vadd.f32 %v2931, 1.0
    %v2937 = vadd.f32 %v2933, 1.0
    %v2938 = vadd.f32 %v2935, 1.0
    %v2939 = vrcp.pop %v2936
    %v2940 = vmul.f32 %v2936, %v2939
    %v2941 = vsub.f32 1.0, %v2940
    %v2942 = vmul.f32 %v2939, %v2941
    %v2943 = vadd.f32 %v2939, %v2942
    %vm2944 = vweird.f32 %v2936
    %vm2945 = vweird.f32 %v2939
    %vm2946 = vmor %vm2944, %vm2945
    %v2947 = vsel %vm2946, %v2939, %v2943
    %v2948 = vand.u32 2147483647, %v2936
    %vm2949 = vcmp.eq.f32.partialorder %v2948, 8.507059e+37
    %v2950 = vand.u32 %v2936, 2147483648
    %v2951 = vor.u32 1.1754944e-38, %v2950
    %v2952 = vsel %vm2949, %v2951, %v2947
    %v2953 = vmul.f32 1.0, %v2952
    %v2954 = vrcp.pop %v2937
    %v2955 = vmul.f32 %v2937, %v2954
    %v2956 = vsub.f32 1.0, %v2955
    %v2957 = vmul.f32 %v2954, %v2956
    %v2958 = vadd.f32 %v2954, %v2957
    %vm2959 = vweird.f32 %v2937
    %vm2960 = vweird.f32 %v2954
    %vm2961 = vmor %vm2959, %vm2960
    %v2962 = vsel %vm2961, %v2954, %v2958
    %v2963 = vand.u32 2147483647, %v2937
    %vm2964 = vcmp.eq.f32.partialorder %v2963, 8.507059e+37
    %v2965 = vand.u32 %v2937, 2147483648
    %v2966 = vor.u32 1.1754944e-38, %v2965
    %v2967 = vsel %vm2964, %v2966, %v2962
    %v2968 = vmul.f32 1.0, %v2967
    %v2969 = vrcp.pop %v2938
    %v2970 = vmul.f32 %v2938, %v2969
    %v2971 = vsub.f32 1.0, %v2970
    %v2972 = vmul.f32 %v2969, %v2971
    %v2973 = vadd.f32 %v2969, %v2972
    %vm2974 = vweird.f32 %v2938
    %vm2975 = vweird.f32 %v2969
    %vm2976 = vmor %vm2974, %vm2975
    %v2977 = vsel %vm2976, %v2969, %v2973
    %v2978 = vand.u32 2147483647, %v2938
    %vm2979 = vcmp.eq.f32.partialorder %v2978, 8.507059e+37
    %v2980 = vand.u32 %v2938, 2147483648
    %v2981 = vor.u32 1.1754944e-38, %v2980
    %v2982 = vsel %vm2979, %v2981, %v2977
    %v2983 = vmul.f32 1.0, %v2982
    %v2984 = vtanh.pop %v2926
    %v2985 = vmul.f32 %v2968, %v2688
    %v2986 = vmul.f32 %v2953, %v2984
    %v2987 = vadd.f32 %v2985, %v2986
    %v2988 = vtanh.pop %v2987
    %v2989 = vmul.f32 %v2983, %v2988
    %s2990 = smul.u32 7, 4
    %s2991 = smul.addr %s2990, 8
    %s2992 = scalar_lea.vmem [#allocation2], %s2991
    %v2993 = vld [vmem:[%s2992] sm:$0xff]
    %v2994 = vld [vmem:[%s2992 + $0x8] sm:$0xff]
    %v2995 = vld [vmem:[%s2992 + $0x10] sm:$0xff]
    %v2996 = vld [vmem:[%s2992 + $0x18] sm:$0xff]
    %2997 = vmatpush.bf16.msra.mxu0 %v475
    %2998 = vmatpush.bf16.msra.mxu0 %v471
    %2999 = vmatpush.bf16.msra.mxu0 %v467
    %3000 = vmatpush.bf16.msra.mxu0 %v463
    %3001 = vmatpush.bf16.msra.mxu0 %v459
    %3002 = vmatpush.bf16.msra.mxu0 %v455
    %3003 = vmatpush.bf16.msra.mxu0 %v451
    %3004 = vmatpush.bf16.msra.mxu0 %v447
    %3005 = vmatmul.bf16.gmra.mxu0 %v2817
    %v3006 = vpop.f32.mrf.mxu0
    %v3007 = vadd.f32 0.0, %v3006
    %v3008 = vpop.f32.mrf.mxu0
    %3009 = vdwg.mxu0
    %3010 = vmatpush.bf16.msra.mxu0 %v476
    %3011 = vmatpush.bf16.msra.mxu0 %v472
    %3012 = vmatpush.bf16.msra.mxu0 %v468
    %3013 = vmatpush.bf16.msra.mxu0 %v464
    %3014 = vmatpush.bf16.msra.mxu0 %v460
    %3015 = vmatpush.bf16.msra.mxu0 %v456
    %3016 = vmatpush.bf16.msra.mxu0 %v452
    %3017 = vmatpush.bf16.msra.mxu0 %v448
    %3018 = vmatmul.bf16.gmra.mxu0 %v2817
    %v3019 = vpop.f32.mrf.mxu0
    %v3020 = vadd.f32 0.0, %v3019
    %v3021 = vpop.f32.mrf.mxu0
    %3022 = vdwg.mxu0
    %3023 = vmatpush.bf16.msra.mxu0 %v477
    %3024 = vmatpush.bf16.msra.mxu0 %v473
    %3025 = vmatpush.bf16.msra.mxu0 %v469
    %3026 = vmatpush.bf16.msra.mxu0 %v465
    %3027 = vmatpush.bf16.msra.mxu0 %v461
    %3028 = vmatpush.bf16.msra.mxu0 %v457
    %3029 = vmatpush.bf16.msra.mxu0 %v453
    %3030 = vmatpush.bf16.msra.mxu0 %v449
    %3031 = vmatmul.bf16.gmra.mxu0 %v2817
    %v3032 = vpop.f32.mrf.mxu0
    %v3033 = vadd.f32 0.0, %v3032
    %v3034 = vpop.f32.mrf.mxu0
    %3035 = vdwg.mxu0
    %3036 = vmatpush.bf16.msra.mxu0 %v478
    %3037 = vmatpush.bf16.msra.mxu0 %v474
    %3038 = vmatpush.bf16.msra.mxu0 %v470
    %3039 = vmatpush.bf16.msra.mxu0 %v466
    %3040 = vmatpush.bf16.msra.mxu0 %v462
    %3041 = vmatpush.bf16.msra.mxu0 %v458
    %3042 = vmatpush.bf16.msra.mxu0 %v454
    %3043 = vmatpush.bf16.msra.mxu0 %v450
    %3044 = vmatmul.bf16.gmra.mxu0 %v2817
    %v3045 = vpop.f32.mrf.mxu0
    %v3046 = vadd.f32 0.0, %v3045
    %v3047 = vpop.f32.mrf.mxu0
    %3048 = vdwg.mxu0
    %v3049 = vadd.f32 %v2993, %v3007
    %v3050 = vadd.f32 %v2994, %v3020
    %v3051 = vadd.f32 %v2995, %v3033
    %v3052 = vadd.f32 %v2996, %v3046
    %v3053 = vxor.u32 %v3049, 2147483648
    %v3054 = vxor.u32 %v3050, 2147483648
    %v3055 = vxor.u32 %v3051, 2147483648
    %v3056 = vmul.f32 %v3053, 1.442695
    %v3057 = vpow.pop %v3056
    %v3058 = vmul.f32 %v3054, 1.442695
    %v3059 = vpow.pop %v3058
    %v3060 = vmul.f32 %v3055, 1.442695
    %v3061 = vpow.pop %v3060
    %v3062 = vadd.f32 %v3057, 1.0
    %v3063 = vadd.f32 %v3059, 1.0
    %v3064 = vadd.f32 %v3061, 1.0
    %v3065 = vrcp.pop %v3062
    %v3066 = vmul.f32 %v3062, %v3065
    %v3067 = vsub.f32 1.0, %v3066
    %v3068 = vmul.f32 %v3065, %v3067
    %v3069 = vadd.f32 %v3065, %v3068
    %vm3070 = vweird.f32 %v3062
    %vm3071 = vweird.f32 %v3065
    %vm3072 = vmor %vm3070, %vm3071
    %v3073 = vsel %vm3072, %v3065, %v3069
    %v3074 = vand.u32 2147483647, %v3062
    %vm3075 = vcmp.eq.f32.partialorder %v3074, 8.507059e+37
    %v3076 = vand.u32 %v3062, 2147483648
    %v3077 = vor.u32 1.1754944e-38, %v3076
    %v3078 = vsel %vm3075, %v3077, %v3073
    %v3079 = vmul.f32 1.0, %v3078
    %v3080 = vrcp.pop %v3063
    %v3081 = vmul.f32 %v3063, %v3080
    %v3082 = vsub.f32 1.0, %v3081
    %v3083 = vmul.f32 %v3080, %v3082
    %v3084 = vadd.f32 %v3080, %v3083
    %vm3085 = vweird.f32 %v3063
    %vm3086 = vweird.f32 %v3080
    %vm3087 = vmor %vm3085, %vm3086
    %v3088 = vsel %vm3087, %v3080, %v3084
    %v3089 = vand.u32 2147483647, %v3063
    %vm3090 = vcmp.eq.f32.partialorder %v3089, 8.507059e+37
    %v3091 = vand.u32 %v3063, 2147483648
    %v3092 = vor.u32 1.1754944e-38, %v3091
    %v3093 = vsel %vm3090, %v3092, %v3088
    %v3094 = vmul.f32 1.0, %v3093
    %v3095 = vrcp.pop %v3064
    %v3096 = vmul.f32 %v3064, %v3095
    %v3097 = vsub.f32 1.0, %v3096
    %v3098 = vmul.f32 %v3095, %v3097
    %v3099 = vadd.f32 %v3095, %v3098
    %vm3100 = vweird.f32 %v3064
    %vm3101 = vweird.f32 %v3095
    %vm3102 = vmor %vm3100, %vm3101
    %v3103 = vsel %vm3102, %v3095, %v3099
    %v3104 = vand.u32 2147483647, %v3064
    %vm3105 = vcmp.eq.f32.partialorder %v3104, 8.507059e+37
    %v3106 = vand.u32 %v3064, 2147483648
    %v3107 = vor.u32 1.1754944e-38, %v3106
    %v3108 = vsel %vm3105, %v3107, %v3103
    %v3109 = vmul.f32 1.0, %v3108
    %v3110 = vtanh.pop %v3052
    %v3111 = vmul.f32 %v3094, %v2814
    %v3112 = vmul.f32 %v3079, %v3110
    %v3113 = vadd.f32 %v3111, %v3112
    %v3114 = vtanh.pop %v3113
    %v3115 = vmul.f32 %v3109, %v3114
    %v3116 = vpack.c.bf16 %v3115, %v3115
    %v3117 = vpack.c.bf16 %v2989, %v2989
    %3118 = vmatpush.bf16.msra.mxu0 %v916
    %3119 = vmatpush.bf16.msra.mxu0 %v912
    %3120 = vmatpush.bf16.msra.mxu0 %v908
    %3121 = vmatpush.bf16.msra.mxu0 %v904
    %3122 = vmatpush.bf16.msra.mxu0 %v900
    %3123 = vmatpush.bf16.msra.mxu0 %v896
    %3124 = vmatpush.bf16.msra.mxu0 %v892
    %3125 = vmatpush.bf16.msra.mxu0 %v888
    %3126 = vmatmul.bf16.gmra.mxu0 %v3116
    %v3127 = vpop.f32.mrf.mxu0
    %v3128 = vadd.f32 0.0, %v3127
    %v3129 = vpop.f32.mrf.mxu0
    %3130 = vdwg.mxu0
    %3131 = vmatpush.bf16.msra.mxu0 %v948
    %3132 = vmatpush.bf16.msra.mxu0 %v944
    %3133 = vmatpush.bf16.msra.mxu0 %v940
    %3134 = vmatpush.bf16.msra.mxu0 %v936
    %3135 = vmatpush.bf16.msra.mxu0 %v932
    %3136 = vmatpush.bf16.msra.mxu0 %v928
    %3137 = vmatpush.bf16.msra.mxu0 %v924
    %3138 = vmatpush.bf16.msra.mxu0 %v920
    %3139 = vmatmul.bf16.gmra.mxu0 %v3117
    %v3140 = vpop.f32.mrf.mxu0
    %v3141 = vadd.f32 %v3128, %v3140
    %v3142 = vpop.f32.mrf.mxu0
    %3143 = vdwg.mxu0
    %3144 = vmatpush.bf16.msra.mxu0 %v917
    %3145 = vmatpush.bf16.msra.mxu0 %v913
    %3146 = vmatpush.bf16.msra.mxu0 %v909
    %3147 = vmatpush.bf16.msra.mxu0 %v905
    %3148 = vmatpush.bf16.msra.mxu0 %v901
    %3149 = vmatpush.bf16.msra.mxu0 %v897
    %3150 = vmatpush.bf16.msra.mxu0 %v893
    %3151 = vmatpush.bf16.msra.mxu0 %v889
    %3152 = vmatmul.bf16.gmra.mxu0 %v3116
    %v3153 = vpop.f32.mrf.mxu0
    %v3154 = vadd.f32 0.0, %v3153
    %v3155 = vpop.f32.mrf.mxu0
    %3156 = vdwg.mxu0
    %3157 = vmatpush.bf16.msra.mxu0 %v949
    %3158 = vmatpush.bf16.msra.mxu0 %v945
    %3159 = vmatpush.bf16.msra.mxu0 %v941
    %3160 = vmatpush.bf16.msra.mxu0 %v937
    %3161 = vmatpush.bf16.msra.mxu0 %v933
    %3162 = vmatpush.bf16.msra.mxu0 %v929
    %3163 = vmatpush.bf16.msra.mxu0 %v925
    %3164 = vmatpush.bf16.msra.mxu0 %v921
    %3165 = vmatmul.bf16.gmra.mxu0 %v3117
    %v3166 = vpop.f32.mrf.mxu0
    %v3167 = vadd.f32 %v3154, %v3166
    %v3168 = vpop.f32.mrf.mxu0
    %3169 = vdwg.mxu0
    %3170 = vmatpush.bf16.msra.mxu0 %v918
    %3171 = vmatpush.bf16.msra.mxu0 %v914
    %3172 = vmatpush.bf16.msra.mxu0 %v910
    %3173 = vmatpush.bf16.msra.mxu0 %v906
    %3174 = vmatpush.bf16.msra.mxu0 %v902
    %3175 = vmatpush.bf16.msra.mxu0 %v898
    %3176 = vmatpush.bf16.msra.mxu0 %v894
    %3177 = vmatpush.bf16.msra.mxu0 %v890
    %3178 = vmatmul.bf16.gmra.mxu0 %v3116
    %v3179 = vpop.f32.mrf.mxu0
    %v3180 = vadd.f32 0.0, %v3179
    %v3181 = vpop.f32.mrf.mxu0
    %3182 = vdwg.mxu0
    %3183 = vmatpush.bf16.msra.mxu0 %v950
    %3184 = vmatpush.bf16.msra.mxu0 %v946
    %3185 = vmatpush.bf16.msra.mxu0 %v942
    %3186 = vmatpush.bf16.msra.mxu0 %v938
    %3187 = vmatpush.bf16.msra.mxu0 %v934
    %3188 = vmatpush.bf16.msra.mxu0 %v930
    %3189 = vmatpush.bf16.msra.mxu0 %v926
    %3190 = vmatpush.bf16.msra.mxu0 %v922
    %3191 = vmatmul.bf16.gmra.mxu0 %v3117
    %v3192 = vpop.f32.mrf.mxu0
    %v3193 = vadd.f32 %v3180, %v3192
    %v3194 = vpop.f32.mrf.mxu0
    %3195 = vdwg.mxu0
    %3196 = vmatpush.bf16.msra.mxu0 %v919
    %3197 = vmatpush.bf16.msra.mxu0 %v915
    %3198 = vmatpush.bf16.msra.mxu0 %v911
    %3199 = vmatpush.bf16.msra.mxu0 %v907
    %3200 = vmatpush.bf16.msra.mxu0 %v903
    %3201 = vmatpush.bf16.msra.mxu0 %v899
    %3202 = vmatpush.bf16.msra.mxu0 %v895
    %3203 = vmatpush.bf16.msra.mxu0 %v891
    %3204 = vmatmul.bf16.gmra.mxu0 %v3116
    %v3205 = vpop.f32.mrf.mxu0
    %v3206 = vadd.f32 0.0, %v3205
    %v3207 = vpop.f32.mrf.mxu0
    %3208 = vdwg.mxu0
    %3209 = vmatpush.bf16.msra.mxu0 %v951
    %3210 = vmatpush.bf16.msra.mxu0 %v947
    %3211 = vmatpush.bf16.msra.mxu0 %v943
    %3212 = vmatpush.bf16.msra.mxu0 %v939
    %3213 = vmatpush.bf16.msra.mxu0 %v935
    %3214 = vmatpush.bf16.msra.mxu0 %v931
    %3215 = vmatpush.bf16.msra.mxu0 %v927
    %3216 = vmatpush.bf16.msra.mxu0 %v923
    %3217 = vmatmul.bf16.gmra.mxu0 %v3117
    %v3218 = vpop.f32.mrf.mxu0
    %v3219 = vadd.f32 %v3206, %v3218
    %v3220 = vpop.f32.mrf.mxu0
    %3221 = vdwg.mxu0
    %v3222 = vadd.f32 %v1121, %v3141
    %v3223 = vadd.f32 %v1122, %v3167
    %v3224 = vadd.f32 %v1123, %v3193
    %v3225 = vadd.f32 %v1124, %v3219
    %v3226 = vxor.u32 %v3222, 2147483648
    %v3227 = vxor.u32 %v3223, 2147483648
    %v3228 = vxor.u32 %v3224, 2147483648
    %v3229 = vmul.f32 %v3226, 1.442695
    %v3230 = vpow.pop %v3229
    %v3231 = vmul.f32 %v3227, 1.442695
    %v3232 = vpow.pop %v3231
    %v3233 = vmul.f32 %v3228, 1.442695
    %v3234 = vpow.pop %v3233
    %v3235 = vadd.f32 %v3230, 1.0
    %v3236 = vadd.f32 %v3232, 1.0
    %v3237 = vadd.f32 %v3234, 1.0
    %v3238 = vrcp.pop %v3235
    %v3239 = vmul.f32 %v3235, %v3238
    %v3240 = vsub.f32 1.0, %v3239
    %v3241 = vmul.f32 %v3238, %v3240
    %v3242 = vadd.f32 %v3238, %v3241
    %vm3243 = vweird.f32 %v3235
    %vm3244 = vweird.f32 %v3238
    %vm3245 = vmor %vm3243, %vm3244
    %v3246 = vsel %vm3245, %v3238, %v3242
    %v3247 = vand.u32 2147483647, %v3235
    %vm3248 = vcmp.eq.f32.partialorder %v3247, 8.507059e+37
    %v3249 = vand.u32 %v3235, 2147483648
    %v3250 = vor.u32 1.1754944e-38, %v3249
    %v3251 = vsel %vm3248, %v3250, %v3246
    %v3252 = vmul.f32 1.0, %v3251
    %v3253 = vrcp.pop %v3236
    %v3254 = vmul.f32 %v3236, %v3253
    %v3255 = vsub.f32 1.0, %v3254
    %v3256 = vmul.f32 %v3253, %v3255
    %v3257 = vadd.f32 %v3253, %v3256
    %vm3258 = vweird.f32 %v3236
    %vm3259 = vweird.f32 %v3253
    %vm3260 = vmor %vm3258, %vm3259
    %v3261 = vsel %vm3260, %v3253, %v3257
    %v3262 = vand.u32 2147483647, %v3236
    %vm3263 = vcmp.eq.f32.partialorder %v3262, 8.507059e+37
    %v3264 = vand.u32 %v3236, 2147483648
    %v3265 = vor.u32 1.1754944e-38, %v3264
    %v3266 = vsel %vm3263, %v3265, %v3261
    %v3267 = vmul.f32 1.0, %v3266
    %v3268 = vrcp.pop %v3237
    %v3269 = vmul.f32 %v3237, %v3268
    %v3270 = vsub.f32 1.0, %v3269
    %v3271 = vmul.f32 %v3268, %v3270
    %v3272 = vadd.f32 %v3268, %v3271
    %vm3273 = vweird.f32 %v3237
    %vm3274 = vweird.f32 %v3268
    %vm3275 = vmor %vm3273, %vm3274
    %v3276 = vsel %vm3275, %v3268, %v3272
    %v3277 = vand.u32 2147483647, %v3237
    %vm3278 = vcmp.eq.f32.partialorder %v3277, 8.507059e+37
    %v3279 = vand.u32 %v3237, 2147483648
    %v3280 = vor.u32 1.1754944e-38, %v3279
    %v3281 = vsel %vm3278, %v3280, %v3276
    %v3282 = vmul.f32 1.0, %v3281
    %v3283 = vtanh.pop %v3225
    %v3284 = vmul.f32 %v3267, %v2987
    %v3285 = vmul.f32 %v3252, %v3283
    %v3286 = vadd.f32 %v3284, %v3285
    %v3287 = vtanh.pop %v3286
    %v3288 = vmul.f32 %v3282, %v3287
    %v3289 = vld [vmem:[%s6] sm:$0xff]
    %v3290 = vld [vmem:[%s6 + $0x8] sm:$0xff]
    %v3291 = vld [vmem:[%s6 + $0x10] sm:$0xff]
    %v3292 = vld [vmem:[%s6 + $0x18] sm:$0xff]
    %v3293 = vld [vmem:[%s6 + $0x20] sm:$0xff]
    %v3294 = vld [vmem:[%s6 + $0x28] sm:$0xff]
    %v3295 = vld [vmem:[%s6 + $0x30] sm:$0xff]
    %v3296 = vld [vmem:[%s6 + $0x38] sm:$0xff]
    %v3297 = vld [vmem:[%s6 + $0x40] sm:$0xff]
    %v3298 = vld [vmem:[%s6 + $0x48] sm:$0xff]
    %v3299 = vld [vmem:[%s6 + $0x50] sm:$0xff]
    %v3300 = vld [vmem:[%s6 + $0x58] sm:$0xff]
    %v3301 = vld [vmem:[%s6 + $0x60] sm:$0xff]
    %v3302 = vld [vmem:[%s6 + $0x68] sm:$0xff]
    %v3303 = vld [vmem:[%s6 + $0x70] sm:$0xff]
    %v3304 = vld [vmem:[%s6 + $0x78] sm:$0xff]
    %v3305 = vld [vmem:[#allocation3] sm:$0x1]
    %v3307 = vperm.slane %v3305, 0
    %3309 = vmatpush.msra.mxu0 %v3304
    %3310 = vmatpush.msra.mxu0 %v3303
    %3311 = vmatpush.msra.mxu0 %v3302
    %3312 = vmatpush.msra.mxu0 %v3301
    %3313 = vmatpush.msra.mxu0 %v3300
    %3314 = vmatpush.msra.mxu0 %v3299
    %3315 = vmatpush.msra.mxu0 %v3298
    %3316 = vmatpush.msra.mxu0 %v3297
    %3317 = vmatpush.msra.mxu0 %v3296
    %3318 = vmatpush.msra.mxu0 %v3295
    %3319 = vmatpush.msra.mxu0 %v3294
    %3320 = vmatpush.msra.mxu0 %v3293
    %3321 = vmatpush.msra.mxu0 %v3292
    %3322 = vmatpush.msra.mxu0 %v3291
    %3323 = vmatpush.msra.mxu0 %v3290
    %3324 = vmatpush.msra.mxu0 %v3289
    %3325 = vmatmul.f32.gmra.mxu0 %v3288
    %v3326 = vpop.f32.mrf.mxu0
    %v3327 = vadd.f32 %v3307, %v3326
    %3328 = vdwg.mxu0
    %v3329 = vxor.u32 %v3327, 2147483648
    %v3330 = vmul.f32 %v3329, 1.442695
    %v3331 = vpow.pop %v3330
    %v3332 = vadd.f32 %v3331, 1.0
    %v3333 = vrcp.pop %v3332
    %v3334 = vmul.f32 %v3332, %v3333
    %v3335 = vsub.f32 1.0, %v3334
    %v3336 = vmul.f32 %v3333, %v3335
    %v3337 = vadd.f32 %v3333, %v3336
    %vm3338 = vweird.f32 %v3332
    %vm3339 = vweird.f32 %v3333
    %vm3340 = vmor %vm3338, %vm3339
    %v3341 = vsel %vm3340, %v3333, %v3337
    %v3342 = vand.u32 2147483647, %v3332
    %vm3343 = vcmp.eq.f32.partialorder %v3342, 8.507059e+37
    %v3344 = vand.u32 %v3332, 2147483648
    %v3345 = vor.u32 1.1754944e-38, %v3344
    %v3346 = vsel %vm3343, %v3345, %v3341
    %v3347 = vmul.f32 1.0, %v3346
    %vm3348 = vcmask 7168
    %3349 = vst.msk [vmem:[%s8] sm:$0xff] %vm3348, %v3347
    // Predicated region
    $region42: #{tpu_custom_call.1} parent=1 // pred_check
      _
    $region43: #{tpu_custom_call.1} parent=1 // pred_check_branch
      %3351 = sbr.rel (0) target = $region45
    $region44: #{tpu_custom_call.1} parent=1 // pred_region
      _
    $region45: #{tpu_custom_call.1} parent=1 // pred_fallthru
      _
    // Predicated region
    $region46: #{tpu_custom_call.1} parent=1 // pred_check
      _
    $region47: #{tpu_custom_call.1} parent=1 // pred_check_branch
      %3353 = sbr.rel (0) target = $region49
    $region48: #{tpu_custom_call.1} parent=1 // pred_region
      _
    $region49: #{tpu_custom_call.1} parent=1 // pred_fallthru
      _
    %3354 = vsyncpa [#allocation5], 1
    %3355 = vsyncpa [#allocation7], 1

</llo_original>
